<compile_context>
chip_gen: v7x
topology: tpu7x:2x2x1
jax: 0.10.0
libtpu: 0.0.40
codegen_flags: <defaults>
</compile_context>

<pallas_src>
import jax
import jax.numpy as jnp
from jax.experimental import pallas as pl
from jax.experimental.pallas import tpu as pltpu

Z_DIM = 100
EMB_DIM = 10
IN_DIM = Z_DIM + EMB_DIM          # 110
IN_PAD = 128                      # 110 -> 128 (lane-aligned K for layer 1)
H1, H2, H3 = 256, 512, 1024
OUT_DIM = 28 * 28                 # 784
OUT_PAD = 896                     # 784 -> 896 = 7*128 (lane-dense output)


def _round_up(x, m):
    return (x + m - 1) // m * m


def _leaky_relu(x, slope=0.2):
    return jnp.where(x > 0, x, slope * x)


def generator_mlp_kernel(x_ref,
                         w1_ref, b1_ref, b2_ref, b3_ref, b4_ref,
                         w2_hbm, w3_hbm, w4_hbm,
                         out_ref,
                         w2_vmem, w3_vmem, w4_vmem, dma_sems):
    # x: (TILE_M, 128) bf16; weights bf16; biases f32; accum / activations f32.
    is_first = pl.program_id(0) == 0

    def w2_copy():
        return pltpu.make_async_copy(w2_hbm, w2_vmem, dma_sems.at[0])

    def w3_copy():
        return pltpu.make_async_copy(w3_hbm, w3_vmem, dma_sems.at[1])

    def w4_copy():
        return pltpu.make_async_copy(w4_hbm, w4_vmem, dma_sems.at[2])

    # Kick off all big-weight fetches once; they land while layers 1..3 run.
    @pl.when(is_first)
    def _():
        w2_copy().start()
        w3_copy().start()
        w4_copy().start()

    # Layer 1: (TILE_M,128) x (128,256)  -- overlaps the w2/w3/w4 DMAs above.
    h = jnp.dot(x_ref[...], w1_ref[...],
                preferred_element_type=jnp.float32) + b1_ref[...]
    h = _leaky_relu(h)

    @pl.when(is_first)
    def _():
        w2_copy().wait()

    h = jnp.dot(h.astype(jnp.bfloat16), w2_vmem[...],
                preferred_element_type=jnp.float32) + b2_ref[...]
    h = _leaky_relu(h)

    @pl.when(is_first)
    def _():
        w3_copy().wait()

    h = jnp.dot(h.astype(jnp.bfloat16), w3_vmem[...],
                preferred_element_type=jnp.float32) + b3_ref[...]
    h = _leaky_relu(h)

    @pl.when(is_first)
    def _():
        w4_copy().wait()

    h = jnp.dot(h.astype(jnp.bfloat16), w4_vmem[...],
                preferred_element_type=jnp.float32) + b4_ref[...]
    out_ref[...] = jnp.tanh(h).astype(out_ref.dtype)   # bf16 store (lane-dense)


def pack_params(params):
    """One-time prep: zero-pad to lane-aligned shapes and cast weights to bf16."""
    w1 = jnp.zeros((IN_PAD, H1), jnp.float32).at[:IN_DIM, :].set(params["w1"])
    w4 = jnp.zeros((H3, OUT_PAD), jnp.float32).at[:, :OUT_DIM].set(params["w4"])
    b4 = jnp.zeros((1, OUT_PAD), jnp.float32).at[:, :OUT_DIM].set(params["b4"])
    bf16 = lambda a: a.astype(jnp.bfloat16)
    return dict(
        emb=params["emb"],
        w1=bf16(w1), b1=params["b1"],
        w2=bf16(params["w2"]), b2=params["b2"],
        w3=bf16(params["w3"]), b3=params["b3"],
        w4=bf16(w4), b4=b4,
    )


def generator_forward(z, labels, packed, tile_m=None, out_dtype=jnp.float32):
    """z: (B, 100) f32, labels: (B,) int32, packed = pack_params(...) -> (B, 28, 28)."""
    B = z.shape[0]
    z = z.reshape(B, Z_DIM)

    # Glue (plain JAX): embedding gather, concat, zero-pad K 110->128 and batch.
    c = jnp.take(packed["emb"], labels, axis=0)                       # (B, 10)
    x = jnp.concatenate([z, c], axis=1).astype(jnp.float32)           # (B, 110)

    if tile_m is None:
        tile_m = min(512, _round_up(B, 16))                           # bigger tiles = fewer grid steps
    Bp = _round_up(B, tile_m)

    x = jnp.pad(x, ((0, Bp - B), (0, IN_PAD - IN_DIM))).astype(jnp.bfloat16)  # (Bp, 128) bf16

    resident = lambda shape: pl.BlockSpec(shape, lambda i: (0, 0))    # small params stay in VMEM
    hbm = pl.BlockSpec(memory_space=pl.ANY)                           # big weights: manual DMA

    grid_spec = pltpu.PrefetchScalarGridSpec(
        num_scalar_prefetch=0,
        grid=(Bp // tile_m,),
        in_specs=[
            pl.BlockSpec((tile_m, IN_PAD), lambda i: (i, 0)),         # x tile (pipelined)
            resident((IN_PAD, H1)),                                   # w1 (64 KiB bf16)
            resident((1, H1)), resident((1, H2)),
            resident((1, H3)), resident((1, OUT_PAD)),                # biases (tiny)
            hbm, hbm, hbm,                                            # w2, w3, w4 in HBM
        ],
        out_specs=pl.BlockSpec((tile_m, OUT_PAD), lambda i: (i, 0)),  # lane-dense 7*128 output
        scratch_shapes=[
            pltpu.VMEM((H1, H2), jnp.bfloat16),                       # w2 (single copy)
            pltpu.VMEM((H2, H3), jnp.bfloat16),                       # w3
            pltpu.VMEM((H3, OUT_PAD), jnp.bfloat16),                  # w4
            pltpu.SemaphoreType.DMA((3,)),
        ],
    )

    out = pl.pallas_call(
        generator_mlp_kernel,
        out_shape=jax.ShapeDtypeStruct((Bp, OUT_PAD), jnp.bfloat16),
        grid_spec=grid_spec,
        compiler_params=pltpu.CompilerParams(
            # Sequential grid: required for fetch-once weights; also avoids
            # duplicating the ~3 MiB weight DMA across v7x's 2 TCs at small B.
            dimension_semantics=("arbitrary",),
            vmem_limit_bytes=32 * 1024 * 1024,
        ),
    )(x,
      packed["w1"], packed["b1"], packed["b2"], packed["b3"], packed["b4"],
      packed["w2"], packed["w3"], packed["w4"])

    # De-pad (half-size copy since out is bf16); cast to f32 for PyTorch semantics.
    return out[:B, :OUT_DIM].reshape(B, 28, 28).astype(out_dtype)


def init_params(key):
    """PyTorch-style init: Linear uniform +-1/sqrt(fan_in), Embedding ~ N(0,1)."""
    keys = jax.random.split(key, 9)

    def lin(kw, kb, fan_in, fan_out):
        bound = 1.0 / jnp.sqrt(fan_in)
        w = jax.random.uniform(kw, (fan_in, fan_out), jnp.float32, -bound, bound)
        b = jax.random.uniform(kb, (1, fan_out), jnp.float32, -bound, bound)
        return w, b

    emb = jax.random.normal(keys[0], (10, EMB_DIM), jnp.float32)
    w1, b1 = lin(keys[1], keys[2], IN_DIM, H1)
    w2, b2 = lin(keys[3], keys[4], H1, H2)
    w3, b3 = lin(keys[5], keys[6], H2, H3)
    w4, b4 = lin(keys[7], keys[8], H3, OUT_DIM)
    return dict(emb=emb, w1=w1, b1=b1, w2=w2, b2=b2, w3=w3, b3=b3, w4=w4, b4=b4)


def reference_forward_f32(z, labels, params):
    """Pure-f32 JAX reference (PyTorch semantics)."""
    B = z.shape[0]
    c = jnp.take(params["emb"], labels, axis=0)
    x = jnp.concatenate([z.reshape(B, Z_DIM), c], axis=1)
    h = x @ params["w1"] + params["b1"]
    h = jnp.where(h > 0, h, 0.2 * h)
    h = h @ params["w2"] + params["b2"]
    h = jnp.where(h > 0, h, 0.2 * h)
    h = h @ params["w3"] + params["b3"]
    h = jnp.where(h > 0, h, 0.2 * h)
    h = jnp.tanh(h @ params["w4"] + params["b4"])
    return h.reshape(B, 28, 28)


def reference_forward_bf16(z, labels, params):
    """Reference that mirrors the kernel's numerics (bf16 dot operands, f32 accum)."""
    B = z.shape[0]
    c = jnp.take(params["emb"], labels, axis=0)
    x = jnp.concatenate([z.reshape(B, Z_DIM), c], axis=1)

    def lin(h, w, b):
        return jnp.dot(h.astype(jnp.bfloat16), w.astype(jnp.bfloat16),
                       preferred_element_type=jnp.float32) + b

    h = lin(x, params["w1"], params["b1"]); h = jnp.where(h > 0, h, 0.2 * h)
    h = lin(h, params["w2"], params["b2"]); h = jnp.where(h > 0, h, 0.2 * h)
    h = lin(h, params["w3"], params["b3"]); h = jnp.where(h > 0, h, 0.2 * h)
    h = jnp.tanh(lin(h, params["w4"], params["b4"]))
    return h.reshape(B, 28, 28)


if __name__ == "__main__":
    key = jax.random.PRNGKey(0)
    k_param, k_z, k_lbl = jax.random.split(key, 3)

    B = 8
    params = init_params(k_param)
    packed = pack_params(params)
    z = jax.random.normal(k_z, (B, Z_DIM), jnp.float32)
    labels = jax.random.randint(k_lbl, (B,), 0, 10, jnp.int32)

    out = generator_forward(z, labels, packed)
    out = jax.block_until_ready(out)
    assert out.shape == (B, 28, 28), out.shape

    # Check vs a reference using the same bf16-operand / f32-accum numerics
    # (kernel output is bf16, so allow bf16-rounding slack).
    ref_bf16 = reference_forward_bf16(z, labels, params)
    assert jnp.allclose(out, ref_bf16, atol=1e-2, rtol=1e-2), "mismatch vs bf16-matched reference"

    # Loose sanity check vs the pure-f32 (PyTorch-semantics) reference.
    ref_f32 = reference_forward_f32(z, labels, params)
    assert jnp.max(jnp.abs(out - ref_f32)) < 0.1, "too far from f32 reference"

    print("KERNEL_OK")
</pallas_src>

<mosaic_0001>
module attributes {stable_mosaic.version = 11 : i64} {
  func.func @generator_mlp_kernel(%arg0: i32, %arg1: memref<16x128xbf16, #tpu.memory_space<vmem>>, %arg2: memref<128x256xbf16, #tpu.memory_space<vmem>>, %arg3: memref<1x256xf32, #tpu.memory_space<vmem>>, %arg4: memref<1x512xf32, #tpu.memory_space<vmem>>, %arg5: memref<1x1024xf32, #tpu.memory_space<vmem>>, %arg6: memref<1x896xf32, #tpu.memory_space<vmem>>, %arg7: memref<256x512xbf16, #tpu.memory_space<any>>, %arg8: memref<512x1024xbf16, #tpu.memory_space<any>>, %arg9: memref<1024x896xbf16, #tpu.memory_space<any>>, %arg10: memref<16x896xbf16, #tpu.memory_space<vmem>>, %arg11: memref<256x512xbf16, #tpu.memory_space<vmem>>, %arg12: memref<512x1024xbf16, #tpu.memory_space<vmem>>, %arg13: memref<1024x896xbf16, #tpu.memory_space<vmem>>, %arg14: memref<3x!tpu.dma_semaphore, #tpu.memory_space<semaphore_mem>>) attributes {dimension_semantics = [#tpu.dimension_semantics<arbitrary>], iteration_bounds = array<i64: 1>, scalar_prefetch = 0 : i64, scratch_operands = 4 : i64, tpu.core_type = #tpu.core_type<tc>, window_params = [{transform_indices = @transform_0, window_bounds = array<i64: 16, 128>}, {pipeline_mode = #tpu.pipeline_mode<synchronous>, transform_indices = @transform_1, window_bounds = array<i64: 128, 256>}, {pipeline_mode = #tpu.pipeline_mode<synchronous>, transform_indices = @transform_2, window_bounds = array<i64: 1, 256>}, {pipeline_mode = #tpu.pipeline_mode<synchronous>, transform_indices = @transform_3, window_bounds = array<i64: 1, 512>}, {pipeline_mode = #tpu.pipeline_mode<synchronous>, transform_indices = @transform_4, window_bounds = array<i64: 1, 1024>}, {pipeline_mode = #tpu.pipeline_mode<synchronous>, transform_indices = @transform_5, window_bounds = array<i64: 1, 896>}, {}, {}, {}, {transform_indices = @transform_9, window_bounds = array<i64: 16, 896>}]} {
    %c0_i32 = arith.constant 0 : i32
    %0 = arith.cmpi eq, %arg0, %c0_i32 : i32
    %1 = arith.extui %0 : i1 to i32
    %c0_i32_0 = arith.constant 0 : i32
    %2 = arith.cmpi ne, %1, %c0_i32_0 : i32
    scf.if %2 {
      %c0_i32_32 = arith.constant 0 : i32
      %51 = tpu.memref_slice %arg14[%c0_i32_32] : memref<3x!tpu.dma_semaphore, #tpu.memory_space<semaphore_mem>> -> memref<1x!tpu.dma_semaphore, #tpu.memory_space<semaphore_mem>>
      %52 = tpu.memref_squeeze %51 : memref<1x!tpu.dma_semaphore, #tpu.memory_space<semaphore_mem>> -> memref<!tpu.dma_semaphore, #tpu.memory_space<semaphore_mem>>
      tpu.enqueue_dma source(%arg7 : memref<256x512xbf16, #tpu.memory_space<any>>) target(%arg11 : memref<256x512xbf16, #tpu.memory_space<vmem>>) target_semaphore(%52 : memref<!tpu.dma_semaphore, #tpu.memory_space<semaphore_mem>>)
      %c1_i32 = arith.constant 1 : i32
      %53 = tpu.memref_slice %arg14[%c1_i32] : memref<3x!tpu.dma_semaphore, #tpu.memory_space<semaphore_mem>> -> memref<1x!tpu.dma_semaphore, #tpu.memory_space<semaphore_mem>>
      %54 = tpu.memref_squeeze %53 : memref<1x!tpu.dma_semaphore, #tpu.memory_space<semaphore_mem>> -> memref<!tpu.dma_semaphore, #tpu.memory_space<semaphore_mem>>
      tpu.enqueue_dma source(%arg8 : memref<512x1024xbf16, #tpu.memory_space<any>>) target(%arg12 : memref<512x1024xbf16, #tpu.memory_space<vmem>>) target_semaphore(%54 : memref<!tpu.dma_semaphore, #tpu.memory_space<semaphore_mem>>)
      %c2_i32 = arith.constant 2 : i32
      %55 = tpu.memref_slice %arg14[%c2_i32] : memref<3x!tpu.dma_semaphore, #tpu.memory_space<semaphore_mem>> -> memref<1x!tpu.dma_semaphore, #tpu.memory_space<semaphore_mem>>
      %56 = tpu.memref_squeeze %55 : memref<1x!tpu.dma_semaphore, #tpu.memory_space<semaphore_mem>> -> memref<!tpu.dma_semaphore, #tpu.memory_space<semaphore_mem>>
      tpu.enqueue_dma source(%arg9 : memref<1024x896xbf16, #tpu.memory_space<any>>) target(%arg13 : memref<1024x896xbf16, #tpu.memory_space<vmem>>) target_semaphore(%56 : memref<!tpu.dma_semaphore, #tpu.memory_space<semaphore_mem>>)
    } else {
    }
    %c0 = arith.constant 0 : index
    %c0_1 = arith.constant 0 : index
    %3 = vector.load %arg1[%c0, %c0_1] : memref<16x128xbf16, #tpu.memory_space<vmem>>, vector<16x128xbf16>
    %c0_2 = arith.constant 0 : index
    %c0_3 = arith.constant 0 : index
    %4 = vector.load %arg2[%c0_2, %c0_3] : memref<128x256xbf16, #tpu.memory_space<vmem>>, vector<128x256xbf16>
    %cst = arith.constant dense<0.000000e+00> : vector<16x256xf32>
    %5 = tpu.matmul %3, %4, %cst {dimension_numbers = #tpu.dot_dimension_numbers<[1], [0], [0], [1], [0, 0, 1, 1], [], []>} : vector<16x128xbf16>, vector<128x256xbf16>, vector<16x256xf32> -> vector<16x256xf32>
    %c0_4 = arith.constant 0 : index
    %c0_5 = arith.constant 0 : index
    %6 = vector.load %arg3[%c0_4, %c0_5] : memref<1x256xf32, #tpu.memory_space<vmem>>, vector<1x256xf32>
    %7 = vector.broadcast %6 : vector<1x256xf32> to vector<16x256xf32>
    %8 = arith.addf %5, %7 : vector<16x256xf32>
    %cst_6 = arith.constant 0.000000e+00 : f32
    %9 = vector.broadcast %cst_6 : f32 to vector<16x256xf32>
    %10 = arith.cmpf ogt, %8, %9 : vector<16x256xf32>
    %cst_7 = arith.constant 2.000000e-01 : f32
    %11 = vector.broadcast %cst_7 : f32 to vector<16x256xf32>
    %12 = arith.mulf %11, %8 : vector<16x256xf32>
    %13 = arith.select %10, %8, %12 : vector<16x256xi1>, vector<16x256xf32>
    %14 = arith.extui %0 : i1 to i32
    %c0_i32_8 = arith.constant 0 : i32
    %15 = arith.cmpi ne, %14, %c0_i32_8 : i32
    scf.if %15 {
      %c0_i32_32 = arith.constant 0 : i32
      %51 = tpu.memref_slice %arg14[%c0_i32_32] : memref<3x!tpu.dma_semaphore, #tpu.memory_space<semaphore_mem>> -> memref<1x!tpu.dma_semaphore, #tpu.memory_space<semaphore_mem>>
      %52 = tpu.memref_squeeze %51 : memref<1x!tpu.dma_semaphore, #tpu.memory_space<semaphore_mem>> -> memref<!tpu.dma_semaphore, #tpu.memory_space<semaphore_mem>>
      tpu.wait_dma2 semaphore(%52 : memref<!tpu.dma_semaphore, #tpu.memory_space<semaphore_mem>>) src(%arg7 : memref<256x512xbf16, #tpu.memory_space<any>>) dst(%arg11 : memref<256x512xbf16, #tpu.memory_space<vmem>>)
    } else {
    }
    %16 = arith.truncf %13 : vector<16x256xf32> to vector<16x256xbf16>
    %c0_9 = arith.constant 0 : index
    %c0_10 = arith.constant 0 : index
    %17 = vector.load %arg11[%c0_9, %c0_10] : memref<256x512xbf16, #tpu.memory_space<vmem>>, vector<256x512xbf16>
    %cst_11 = arith.constant dense<0.000000e+00> : vector<16x512xf32>
    %18 = tpu.matmul %16, %17, %cst_11 {dimension_numbers = #tpu.dot_dimension_numbers<[1], [0], [0], [1], [0, 0, 1, 1], [], []>} : vector<16x256xbf16>, vector<256x512xbf16>, vector<16x512xf32> -> vector<16x512xf32>
    %c0_12 = arith.constant 0 : index
    %c0_13 = arith.constant 0 : index
    %19 = vector.load %arg4[%c0_12, %c0_13] : memref<1x512xf32, #tpu.memory_space<vmem>>, vector<1x512xf32>
    %20 = vector.broadcast %19 : vector<1x512xf32> to vector<16x512xf32>
    %21 = arith.addf %18, %20 : vector<16x512xf32>
    %cst_14 = arith.constant 0.000000e+00 : f32
    %22 = vector.broadcast %cst_14 : f32 to vector<16x512xf32>
    %23 = arith.cmpf ogt, %21, %22 : vector<16x512xf32>
    %cst_15 = arith.constant 2.000000e-01 : f32
    %24 = vector.broadcast %cst_15 : f32 to vector<16x512xf32>
    %25 = arith.mulf %24, %21 : vector<16x512xf32>
    %26 = arith.select %23, %21, %25 : vector<16x512xi1>, vector<16x512xf32>
    %27 = arith.extui %0 : i1 to i32
    %c0_i32_16 = arith.constant 0 : i32
    %28 = arith.cmpi ne, %27, %c0_i32_16 : i32
    scf.if %28 {
      %c1_i32 = arith.constant 1 : i32
      %51 = tpu.memref_slice %arg14[%c1_i32] : memref<3x!tpu.dma_semaphore, #tpu.memory_space<semaphore_mem>> -> memref<1x!tpu.dma_semaphore, #tpu.memory_space<semaphore_mem>>
      %52 = tpu.memref_squeeze %51 : memref<1x!tpu.dma_semaphore, #tpu.memory_space<semaphore_mem>> -> memref<!tpu.dma_semaphore, #tpu.memory_space<semaphore_mem>>
      tpu.wait_dma2 semaphore(%52 : memref<!tpu.dma_semaphore, #tpu.memory_space<semaphore_mem>>) src(%arg8 : memref<512x1024xbf16, #tpu.memory_space<any>>) dst(%arg12 : memref<512x1024xbf16, #tpu.memory_space<vmem>>)
    } else {
    }
    %29 = arith.truncf %26 : vector<16x512xf32> to vector<16x512xbf16>
    %c0_17 = arith.constant 0 : index
    %c0_18 = arith.constant 0 : index
    %30 = vector.load %arg12[%c0_17, %c0_18] : memref<512x1024xbf16, #tpu.memory_space<vmem>>, vector<512x1024xbf16>
    %cst_19 = arith.constant dense<0.000000e+00> : vector<16x1024xf32>
    %31 = tpu.matmul %29, %30, %cst_19 {dimension_numbers = #tpu.dot_dimension_numbers<[1], [0], [0], [1], [0, 0, 1, 1], [], []>} : vector<16x512xbf16>, vector<512x1024xbf16>, vector<16x1024xf32> -> vector<16x1024xf32>
    %c0_20 = arith.constant 0 : index
    %c0_21 = arith.constant 0 : index
    %32 = vector.load %arg5[%c0_20, %c0_21] : memref<1x1024xf32, #tpu.memory_space<vmem>>, vector<1x1024xf32>
    %33 = vector.broadcast %32 : vector<1x1024xf32> to vector<16x1024xf32>
    %34 = arith.addf %31, %33 : vector<16x1024xf32>
    %cst_22 = arith.constant 0.000000e+00 : f32
    %35 = vector.broadcast %cst_22 : f32 to vector<16x1024xf32>
    %36 = arith.cmpf ogt, %34, %35 : vector<16x1024xf32>
    %cst_23 = arith.constant 2.000000e-01 : f32
    %37 = vector.broadcast %cst_23 : f32 to vector<16x1024xf32>
    %38 = arith.mulf %37, %34 : vector<16x1024xf32>
    %39 = arith.select %36, %34, %38 : vector<16x1024xi1>, vector<16x1024xf32>
    %40 = arith.extui %0 : i1 to i32
    %c0_i32_24 = arith.constant 0 : i32
    %41 = arith.cmpi ne, %40, %c0_i32_24 : i32
    scf.if %41 {
      %c2_i32 = arith.constant 2 : i32
      %51 = tpu.memref_slice %arg14[%c2_i32] : memref<3x!tpu.dma_semaphore, #tpu.memory_space<semaphore_mem>> -> memref<1x!tpu.dma_semaphore, #tpu.memory_space<semaphore_mem>>
      %52 = tpu.memref_squeeze %51 : memref<1x!tpu.dma_semaphore, #tpu.memory_space<semaphore_mem>> -> memref<!tpu.dma_semaphore, #tpu.memory_space<semaphore_mem>>
      tpu.wait_dma2 semaphore(%52 : memref<!tpu.dma_semaphore, #tpu.memory_space<semaphore_mem>>) src(%arg9 : memref<1024x896xbf16, #tpu.memory_space<any>>) dst(%arg13 : memref<1024x896xbf16, #tpu.memory_space<vmem>>)
    } else {
    }
    %42 = arith.truncf %39 : vector<16x1024xf32> to vector<16x1024xbf16>
    %c0_25 = arith.constant 0 : index
    %c0_26 = arith.constant 0 : index
    %43 = vector.load %arg13[%c0_25, %c0_26] : memref<1024x896xbf16, #tpu.memory_space<vmem>>, vector<1024x896xbf16>
    %cst_27 = arith.constant dense<0.000000e+00> : vector<16x896xf32>
    %44 = tpu.matmul %42, %43, %cst_27 {dimension_numbers = #tpu.dot_dimension_numbers<[1], [0], [0], [1], [0, 0, 1, 1], [], []>} : vector<16x1024xbf16>, vector<1024x896xbf16>, vector<16x896xf32> -> vector<16x896xf32>
    %c0_28 = arith.constant 0 : index
    %c0_29 = arith.constant 0 : index
    %45 = vector.load %arg6[%c0_28, %c0_29] : memref<1x896xf32, #tpu.memory_space<vmem>>, vector<1x896xf32>
    %46 = vector.broadcast %45 : vector<1x896xf32> to vector<16x896xf32>
    %47 = arith.addf %44, %46 : vector<16x896xf32>
    %48 = math.tanh %47 : vector<16x896xf32>
    %49 = arith.truncf %48 : vector<16x896xf32> to vector<16x896xbf16>
    %c0_30 = arith.constant 0 : index
    %c0_31 = arith.constant 0 : index
    %50 = vector.load %arg10[%c0_30, %c0_31] : memref<16x896xbf16, #tpu.memory_space<vmem>>, vector<16x896xbf16>
    tpu.vector_store %arg10[%c0_30, %c0_31], %49 {strides = array<i32>} : memref<16x896xbf16, #tpu.memory_space<vmem>>, vector<16x896xbf16>,
    return
  }
  func.func @transform_0(%arg0: i32) -> (i32, i32) {
    %c0_i32 = arith.constant 0 : i32
    %c0_i32_0 = arith.constant 0 : i32
    return %arg0, %c0_i32 : i32, i32
  }
  func.func @transform_1(%arg0: i32) -> (i32, i32) {
    %c0_i32 = arith.constant 0 : i32
    %c0_i32_0 = arith.constant 0 : i32
    %c0_i32_1 = arith.constant 0 : i32
    return %c0_i32, %c0_i32_0 : i32, i32
  }
  func.func @transform_2(%arg0: i32) -> (i32, i32) {
    %c0_i32 = arith.constant 0 : i32
    %c0_i32_0 = arith.constant 0 : i32
    %c0_i32_1 = arith.constant 0 : i32
    return %c0_i32, %c0_i32_0 : i32, i32
  }
  func.func @transform_3(%arg0: i32) -> (i32, i32) {
    %c0_i32 = arith.constant 0 : i32
    %c0_i32_0 = arith.constant 0 : i32
    %c0_i32_1 = arith.constant 0 : i32
    return %c0_i32, %c0_i32_0 : i32, i32
  }
  func.func @transform_4(%arg0: i32) -> (i32, i32) {
    %c0_i32 = arith.constant 0 : i32
    %c0_i32_0 = arith.constant 0 : i32
    %c0_i32_1 = arith.constant 0 : i32
    return %c0_i32, %c0_i32_0 : i32, i32
  }
  func.func @transform_5(%arg0: i32) -> (i32, i32) {
    %c0_i32 = arith.constant 0 : i32
    %c0_i32_0 = arith.constant 0 : i32
    %c0_i32_1 = arith.constant 0 : i32
    return %c0_i32, %c0_i32_0 : i32, i32
  }
  func.func @transform_9(%arg0: i32) -> (i32, i32) {
    %c0_i32 = arith.constant 0 : i32
    %c0_i32_0 = arith.constant 0 : i32
    return %arg0, %c0_i32 : i32, i32
  }
}

</mosaic_0001>

<llo_original>
// kernel: tpu_custom_call.1
$region0: #{tpu_custom_call.1}
  #allocation0 [shape = 'u32[]', space=smem, size = 0x4, offset = 0x4, fixed_abs, tag = 'smem constant byte address 0x4 - core index']
  #allocation1 [shape = 'u32[144,128]{1,0:T(1,128)}', space=vmem, size = 0x12000, scoped, tag = 'internal scratch']
  #allocation2 [shape = 'bf16[256,512]{1,0:T(16,128)(2,1)}', space=vmem, size = 0x40000, scoped, tag = 'scratch operand']
  #allocation3 [shape = 'bf16[512,1024]{1,0:T(16,128)(2,1)}', space=vmem, size = 0x100000, scoped, tag = 'scratch operand']
  #allocation4 [shape = 'bf16[1024,896]{1,0:T(16,128)(2,1)}', space=vmem, size = 0x1c0000, scoped, tag = 'scratch operand']
  #allocation5 [shape = 's32[3]{0}', space=sflag, size = 0xc, scoped, tag = 'scratch operand']
  #allocation18 [shape = 's32[]', space=sflag, size = 0x4, offset = 0, fixed_abs, tag = 'sflag constant byte address 0x0 - dummy sync flag']
  #allocation20 [shape = 's32[]', space=sflag, size = 0x4, offset = 0, fixed_abs, tag = 'sflag constant byte address 0x0 - dummy sync flag']
  #allocation22 [shape = 's32[]', space=sflag, size = 0x4, offset = 0, fixed_abs, tag = 'sflag constant byte address 0x0 - dummy sync flag']
  %s0 = inlined_call_operand.hbm [shape: bf16[16,128], index: 0, kind: input, shape index: {}]
  %s1 = inlined_call_operand.hbm [shape: bf16[128,256], index: 1, kind: input, shape index: {}]
  %s2 = inlined_call_operand.hbm [shape: f32[1,256], index: 2, kind: input, shape index: {}]
  %s3 = inlined_call_operand.hbm [shape: f32[1,512], index: 3, kind: input, shape index: {}]
  %s4 = inlined_call_operand.hbm [shape: f32[1,1024], index: 4, kind: input, shape index: {}]
  %s5 = inlined_call_operand.hbm [shape: f32[1,896], index: 5, kind: input, shape index: {}]
  %s6 = inlined_call_operand.hbm [shape: bf16[256,512], index: 6, kind: input, shape index: {}]
  %s7 = inlined_call_operand.hbm [shape: bf16[512,1024], index: 7, kind: input, shape index: {}]
  %s8 = inlined_call_operand.hbm [shape: bf16[1024,896], index: 8, kind: input, shape index: {}]
  %s9 = inlined_call_operand.hbm [shape: bf16[16,896], index: 9, kind: output, shape index: {}]
  %s10 = sld [smem:[#allocation0]]
  $region74: #{tpu_custom_call.1} parent=0
    _
  %s12 = ssub.s32 1, %s10
  %s13 = scalar_select 0, %s12, %s10
  $region1: #{tpu_custom_call.1} parent=0
    #allocation6 [shape = 'u8[4096]{0}', space=vmem, size = 0x1000, scoped, tag = 'input window, operand 0, single buffered']
    #allocation7 [shape = 's32[1]{0}', space=sflag, size = 0x4, scoped, tag = 'scoped memory for tpu_custom_call.1']
    #allocation8 [shape = 's32[1]{0}', space=sflag, size = 0x4, scoped, tag = 'scoped memory for tpu_custom_call.1']
    #allocation9 [shape = 'u8[65536]{0}', space=vmem, size = 0x10000, scoped, tag = 'input window, operand 1, single buffered']
    #allocation10 [shape = 's32[1]{0}', space=sflag, size = 0x4, scoped, tag = 'scoped memory for tpu_custom_call.1']
    #allocation11 [shape = 'u8[1024]{0}', space=vmem, size = 0x400, scoped, tag = 'input window, operand 2, single buffered']
    #allocation12 [shape = 'u8[2048]{0}', space=vmem, size = 0x800, scoped, tag = 'input window, operand 3, single buffered']
    #allocation13 [shape = 's32[1]{0}', space=sflag, size = 0x4, scoped, tag = 'scoped memory for tpu_custom_call.1']
    #allocation14 [shape = 'u8[4096]{0}', space=vmem, size = 0x1000, scoped, tag = 'input window, operand 4, single buffered']
    #allocation15 [shape = 'u8[3584]{0}', space=vmem, size = 0x1000, scoped, tag = 'input window, operand 5, single buffered']
    #allocation16 [shape = 's32[1]{0}', space=sflag, size = 0x4, scoped, tag = 'scoped memory for tpu_custom_call.1']
    #allocation17 [shape = 'u8[28672]{0}', space=vmem, size = 0x7000, scoped, tag = 'output window, operand 0, single buffered']
    %14 = vsyncpa [#allocation7], 0
    %15 = vsyncpa [#allocation10], 0
    %16 = vsyncpa [#allocation13], 0
    %17 = vsyncpa [#allocation16], 0
    %18 = vsyncpa [#allocation8], 0
    // Predicated region
    $region2: #{tpu_custom_call.1} parent=1 // pred_check
      _
    $region3: #{tpu_custom_call.1} parent=1 // pred_check_branch
      %20 = sbr.rel (0) target = $region5
    $region4: #{tpu_custom_call.1} parent=1 // pred_region
      %s22 = ssub.s32 128, 128
      %23 = vsyncadd [#allocation7], %s22
      %s24 = sshll.u32 [#allocation6], 4
      %s25 = int_to_ptr.vmem [resolvable:$true] %s24
      %30 = dma.hbm_to_vmem [thread:$0]  %s0, 128, %s25, [#allocation7], 64, 64, 4
    $region5: #{tpu_custom_call.1} parent=1 // pred_fallthru
      _
    // Predicated region
    $region6: #{tpu_custom_call.1} parent=1 // pred_check
      _
    $region7: #{tpu_custom_call.1} parent=1 // pred_check_branch
      %32 = sbr.rel (0) target = $region9
    $region8: #{tpu_custom_call.1} parent=1 // pred_region
      %s34 = ssub.s32 2048, 2048
      %35 = vsyncadd [#allocation10], %s34
      %s36 = sshll.u32 [#allocation9], 4
      %s37 = int_to_ptr.vmem [resolvable:$true] %s36
      %42 = dma.hbm_to_vmem [thread:$0]  %s1, 2048, %s37, [#allocation10], 128, 128, 8
    $region9: #{tpu_custom_call.1} parent=1 // pred_fallthru
      _
    // Predicated region
    $region10: #{tpu_custom_call.1} parent=1 // pred_check
      _
    $region11: #{tpu_custom_call.1} parent=1 // pred_check_branch
      %44 = sbr.rel (0) target = $region13
    $region12: #{tpu_custom_call.1} parent=1 // pred_region
      %s46 = ssub.s32 32, 32
      %47 = vsyncadd [#allocation10], %s46
      %s49 = sshll.u32 [#allocation11], 4
      %s50 = int_to_ptr.vmem [resolvable:$true] %s49
      %52 = dma.hbm_to_vmem [thread:$0]  %s2, 32, %s50, [#allocation10]
    $region13: #{tpu_custom_call.1} parent=1 // pred_fallthru
      _
    // Predicated region
    $region14: #{tpu_custom_call.1} parent=1 // pred_check
      _
    $region15: #{tpu_custom_call.1} parent=1 // pred_check_branch
      %54 = sbr.rel (0) target = $region17
    $region16: #{tpu_custom_call.1} parent=1 // pred_region
      %s56 = ssub.s32 64, 64
      %57 = vsyncadd [#allocation13], %s56
      %s59 = sshll.u32 [#allocation12], 4
      %s60 = int_to_ptr.vmem [resolvable:$true] %s59
      %62 = dma.hbm_to_vmem [thread:$0]  %s3, 64, %s60, [#allocation13]
    $region17: #{tpu_custom_call.1} parent=1 // pred_fallthru
      _
    // Predicated region
    $region18: #{tpu_custom_call.1} parent=1 // pred_check
      _
    $region19: #{tpu_custom_call.1} parent=1 // pred_check_branch
      %64 = sbr.rel (0) target = $region21
    $region20: #{tpu_custom_call.1} parent=1 // pred_region
      %s66 = ssub.s32 128, 128
      %67 = vsyncadd [#allocation13], %s66
      %s69 = sshll.u32 [#allocation14], 4
      %s70 = int_to_ptr.vmem [resolvable:$true] %s69
      %72 = dma.hbm_to_vmem [thread:$0]  %s4, 128, %s70, [#allocation13]
    $region21: #{tpu_custom_call.1} parent=1 // pred_fallthru
      _
    // Predicated region
    $region22: #{tpu_custom_call.1} parent=1 // pred_check
      _
    $region23: #{tpu_custom_call.1} parent=1 // pred_check_branch
      %74 = sbr.rel (0) target = $region25
    $region24: #{tpu_custom_call.1} parent=1 // pred_region
      %s76 = ssub.s32 112, 112
      %77 = vsyncadd [#allocation16], %s76
      %s79 = sshll.u32 [#allocation15], 4
      %s80 = int_to_ptr.vmem [resolvable:$true] %s79
      %82 = dma.hbm_to_vmem [thread:$0]  %s5, 112, %s80, [#allocation16]
    $region25: #{tpu_custom_call.1} parent=1 // pred_fallthru
      _
    // Predicated region
    $region26: #{tpu_custom_call.1} parent=1 // pred_check
      _
    $region27: #{tpu_custom_call.1} parent=1 // pred_check_branch
      %84 = sbr.rel (0) target = $region29
    $region28: #{tpu_custom_call.1} parent=1 // pred_region
      %85 = dma.done [#allocation7], 128
    $region29: #{tpu_custom_call.1} parent=1 // pred_fallthru
      _
    // Predicated region
    $region30: #{tpu_custom_call.1} parent=1 // pred_check
      _
    $region31: #{tpu_custom_call.1} parent=1 // pred_check_branch
      %87 = sbr.rel (0) target = $region33
    $region32: #{tpu_custom_call.1} parent=1 // pred_region
      %88 = dma.done [#allocation10], 2048
    $region33: #{tpu_custom_call.1} parent=1 // pred_fallthru
      _
    // Predicated region
    $region34: #{tpu_custom_call.1} parent=1 // pred_check
      _
    $region35: #{tpu_custom_call.1} parent=1 // pred_check_branch
      %90 = sbr.rel (0) target = $region37
    $region36: #{tpu_custom_call.1} parent=1 // pred_region
      %91 = dma.done [#allocation10], 32
    $region37: #{tpu_custom_call.1} parent=1 // pred_fallthru
      _
    // Predicated region
    $region38: #{tpu_custom_call.1} parent=1 // pred_check
      _
    $region39: #{tpu_custom_call.1} parent=1 // pred_check_branch
      %93 = sbr.rel (0) target = $region41
    $region40: #{tpu_custom_call.1} parent=1 // pred_region
      %94 = dma.done [#allocation13], 64
    $region41: #{tpu_custom_call.1} parent=1 // pred_fallthru
      _
    // Predicated region
    $region42: #{tpu_custom_call.1} parent=1 // pred_check
      _
    $region43: #{tpu_custom_call.1} parent=1 // pred_check_branch
      %96 = sbr.rel (0) target = $region45
    $region44: #{tpu_custom_call.1} parent=1 // pred_region
      %97 = dma.done [#allocation13], 128
    $region45: #{tpu_custom_call.1} parent=1 // pred_fallthru
      _
    // Predicated region
    $region46: #{tpu_custom_call.1} parent=1 // pred_check
      _
    $region47: #{tpu_custom_call.1} parent=1 // pred_check_branch
      %99 = sbr.rel (0) target = $region49
    $region48: #{tpu_custom_call.1} parent=1 // pred_region
      %100 = dma.done [#allocation16], 112
    $region49: #{tpu_custom_call.1} parent=1 // pred_fallthru
      _
    %p102 = scmp.eq.s32.totalorder 0, 0
    // Predicated region
    $region50: #{tpu_custom_call.1} parent=1 // pred_check
      %p103 = pneg %p102
    $region51: #{tpu_custom_call.1} parent=1 // pred_check_branch
      %105 = sbr.rel (%p103) target = $region53
    $region52: #{tpu_custom_call.1} parent=1 // pred_region
      #allocation19 [shape = 'u32[9]{0}', space=smem, size = 0x24, scoped, tag = 'DMA stride descriptor']
      #allocation21 [shape = 'u32[9]{0}', space=smem, size = 0x24, scoped, tag = 'DMA stride descriptor']
      #allocation23 [shape = 'u32[9]{0}', space=smem, size = 0x24, scoped, tag = 'DMA stride descriptor']
      %s107 = sshll.u32 1, 14
      %s108 = sxor.u32 4294967295, %s107
      %s110 = sld [smem:[#allocation0]]
      %s111 = sadd.s32 2, %s110
      %s113 = sshll.u32 7, 26
      %s114 = sxor.u32 4294967295, %s113
      %s115 = sand.u32 0, %s114
      %s116 = sshll.u32 %s111, 26
      %s117 = sor.u32 %s115, %s116
      %s118 = sshll.u32 [#allocation2], 4
      %s119 = int_to_ptr.vmem [resolvable:$true] %s118
      %122 = sst [smem:[#allocation19]] 512
      %s123 = scalar_lea.smem [#allocation19], 1
      %124 = sst [smem:[%s123]] 512
      %s125 = scalar_lea.smem [#allocation19], 2
      %126 = sst [smem:[%s125]] 4
      %s127 = scalar_lea.smem [#allocation19], 3
      %128 = sst [smem:[%s127]] 64
      %s129 = scalar_lea.smem [#allocation19], 4
      %130 = sst [smem:[%s129]] 128
      %s131 = scalar_lea.smem [#allocation19], 5
      %132 = sst [smem:[%s131]] 2
      %s133 = scalar_lea.smem [#allocation19], 6
      %134 = sst [smem:[%s133]] 256
      %s135 = scalar_lea.smem [#allocation19], 7
      %136 = sst [smem:[%s135]] 64
      %s137 = scalar_lea.smem [#allocation19], 8
      %138 = sst [smem:[%s137]] 4
      %140 = dma.general %s6, 8192, %s119, [#allocation5], [#allocation18], [#allocation19], %s117, 0
      %s141 = scalar_lea.sflag [#allocation5], 1
      %s143 = sshll.u32 1, 14
      %s144 = sxor.u32 4294967295, %s143
      %s146 = sadd.s32 2, %s110
      %s148 = sshll.u32 7, 26
      %s149 = sxor.u32 4294967295, %s148
      %s150 = sand.u32 0, %s149
      %s151 = sshll.u32 %s146, 26
      %s152 = sor.u32 %s150, %s151
      %s153 = sshll.u32 [#allocation3], 4
      %s154 = int_to_ptr.vmem [resolvable:$true] %s153
      %157 = sst [smem:[#allocation21]] 1024
      %s158 = scalar_lea.smem [#allocation21], 1
      %159 = sst [smem:[%s158]] 1024
      %s160 = scalar_lea.smem [#allocation21], 2
      %161 = sst [smem:[%s160]] 8
      %s162 = scalar_lea.smem [#allocation21], 3
      %163 = sst [smem:[%s162]] 64
      %s164 = scalar_lea.smem [#allocation21], 4
      %165 = sst [smem:[%s164]] 128
      %s166 = scalar_lea.smem [#allocation21], 5
      %167 = sst [smem:[%s166]] 2
      %s168 = scalar_lea.smem [#allocation21], 6
      %169 = sst [smem:[%s168]] 512
      %s170 = scalar_lea.smem [#allocation21], 7
      %171 = sst [smem:[%s170]] 64
      %s172 = scalar_lea.smem [#allocation21], 8
      %173 = sst [smem:[%s172]] 4
      %175 = dma.general %s7, 32768, %s154, %s141, [#allocation20], [#allocation21], %s152, 0
      %s176 = scalar_lea.sflag [#allocation5], 2
      %s178 = sshll.u32 1, 14
      %s179 = sxor.u32 4294967295, %s178
      %s181 = sadd.s32 2, %s110
      %s183 = sshll.u32 7, 26
      %s184 = sxor.u32 4294967295, %s183
      %s185 = sand.u32 0, %s184
      %s186 = sshll.u32 %s181, 26
      %s187 = sor.u32 %s185, %s186
      %s188 = sshll.u32 [#allocation4], 4
      %s189 = int_to_ptr.vmem [resolvable:$true] %s188
      %192 = sst [smem:[#allocation23]] 896
      %s193 = scalar_lea.smem [#allocation23], 1
      %194 = sst [smem:[%s193]] 896
      %s195 = scalar_lea.smem [#allocation23], 2
      %196 = sst [smem:[%s195]] 7
      %s197 = scalar_lea.smem [#allocation23], 3
      %198 = sst [smem:[%s197]] 64
      %s199 = scalar_lea.smem [#allocation23], 4
      %200 = sst [smem:[%s199]] 128
      %s201 = scalar_lea.smem [#allocation23], 5
      %202 = sst [smem:[%s201]] 2
      %s203 = scalar_lea.smem [#allocation23], 6
      %204 = sst [smem:[%s203]] 448
      %s205 = scalar_lea.smem [#allocation23], 7
      %206 = sst [smem:[%s205]] 64
      %s207 = scalar_lea.smem [#allocation23], 8
      %208 = sst [smem:[%s207]] 4
      %210 = dma.general %s8, 57344, %s189, %s176, [#allocation22], [#allocation23], %s187, 0
    $region53: #{tpu_custom_call.1} parent=1 // pred_fallthru
      _
    %v211 = vld [vmem:[#allocation6] sm:$0xf]
    %v212 = vld [vmem:[#allocation6 + $0x4] sm:$0xf]
    %v213 = vld [vmem:[#allocation9] sm:$0xff]
    %v214 = vld [vmem:[#allocation9 + $0x8] sm:$0xff]
    %v215 = vld [vmem:[#allocation9 + $0x10] sm:$0xff]
    %v216 = vld [vmem:[#allocation9 + $0x18] sm:$0xff]
    %v217 = vld [vmem:[#allocation9 + $0x20] sm:$0xff]
    %v218 = vld [vmem:[#allocation9 + $0x28] sm:$0xff]
    %v219 = vld [vmem:[#allocation9 + $0x30] sm:$0xff]
    %v220 = vld [vmem:[#allocation9 + $0x38] sm:$0xff]
    %v221 = vld [vmem:[#allocation9 + $0x40] sm:$0xff]
    %v222 = vld [vmem:[#allocation9 + $0x48] sm:$0xff]
    %v223 = vld [vmem:[#allocation9 + $0x50] sm:$0xff]
    %v224 = vld [vmem:[#allocation9 + $0x58] sm:$0xff]
    %v225 = vld [vmem:[#allocation9 + $0x60] sm:$0xff]
    %v226 = vld [vmem:[#allocation9 + $0x68] sm:$0xff]
    %v227 = vld [vmem:[#allocation9 + $0x70] sm:$0xff]
    %v228 = vld [vmem:[#allocation9 + $0x78] sm:$0xff]
    %v229 = vld [vmem:[#allocation11] sm:$0x3]
    %v231 = vlaneseq
    %v232 = vshrl.u32 %v231, 7
    %v233 = vsub.s32 0, %v232
    %v234 = vrot.slane %v229, %v233
    %v235 = vlaneseq
    %v236 = vshrl.u32 %v235, 7
    %v237 = vsub.s32 1, %v236
    %v238 = vrot.slane %v229, %v237
    %v243 = vunpack.c.l.b16 %v211
    %v244 = vunpack.c.l.b16 %v212
    %v245 = vpack.c.b16 %v244, %v243
    %v263 = vunpack.c.l.b16 %v213
    %v264 = vunpack.c.h.b16 %v213
    %v265 = vunpack.c.l.b16 %v214
    %v266 = vunpack.c.h.b16 %v214
    %v267 = vunpack.c.l.b16 %v215
    %v268 = vunpack.c.h.b16 %v215
    %v269 = vunpack.c.l.b16 %v216
    %v270 = vunpack.c.h.b16 %v216
    %v271 = vunpack.c.l.b16 %v217
    %v272 = vunpack.c.h.b16 %v217
    %v273 = vunpack.c.l.b16 %v218
    %v274 = vunpack.c.h.b16 %v218
    %v275 = vunpack.c.l.b16 %v219
    %v276 = vunpack.c.h.b16 %v219
    %v277 = vunpack.c.l.b16 %v220
    %v278 = vunpack.c.h.b16 %v220
    %v279 = vunpack.c.l.b16 %v221
    %v280 = vunpack.c.h.b16 %v221
    %v281 = vunpack.c.l.b16 %v222
    %v282 = vunpack.c.h.b16 %v222
    %v283 = vunpack.c.l.b16 %v223
    %v284 = vunpack.c.h.b16 %v223
    %v285 = vunpack.c.l.b16 %v224
    %v286 = vunpack.c.h.b16 %v224
    %v287 = vunpack.c.l.b16 %v225
    %v288 = vunpack.c.h.b16 %v225
    %v289 = vunpack.c.l.b16 %v226
    %v290 = vunpack.c.h.b16 %v226
    %v291 = vunpack.c.l.b16 %v227
    %v292 = vunpack.c.h.b16 %v227
    %v293 = vunpack.c.l.b16 %v228
    %v294 = vunpack.c.h.b16 %v228
    %v295 = vpack.c.b16 %v265, %v263
    %v296 = vpack.c.b16 %v266, %v264
    %v297 = vpack.c.b16 %v269, %v267
    %v298 = vpack.c.b16 %v270, %v268
    %v299 = vpack.c.b16 %v273, %v271
    %v300 = vpack.c.b16 %v274, %v272
    %v301 = vpack.c.b16 %v277, %v275
    %v302 = vpack.c.b16 %v278, %v276
    %v303 = vpack.c.b16 %v281, %v279
    %v304 = vpack.c.b16 %v282, %v280
    %v305 = vpack.c.b16 %v285, %v283
    %v306 = vpack.c.b16 %v286, %v284
    %v307 = vpack.c.b16 %v289, %v287
    %v308 = vpack.c.b16 %v290, %v288
    %v309 = vpack.c.b16 %v293, %v291
    %v310 = vpack.c.b16 %v294, %v292
    %327 = vmatprep.subr.bf16.mxu0 %v296
    %328 = vmatpush1.bf16.msra.mxu0 %v295
    %329 = vmatprep.subr.bf16.mxu0 %v298
    %330 = vmatpush1.bf16.msra.mxu0 %v297
    %331 = vmatprep.subr.bf16.mxu0 %v300
    %332 = vmatpush1.bf16.msra.mxu0 %v299
    %333 = vmatprep.subr.bf16.mxu0 %v302
    %334 = vmatpush1.bf16.msra.mxu0 %v301
    %335 = vmatprep.subr.bf16.mxu0 %v304
    %336 = vmatpush1.bf16.msra.mxu0 %v303
    %337 = vmatprep.subr.bf16.mxu0 %v306
    %338 = vmatpush1.bf16.msra.mxu0 %v305
    %339 = vmatprep.subr.bf16.mxu0 %v308
    %340 = vmatpush1.bf16.msra.mxu0 %v307
    %341 = vmatprep.subr.bf16.mxu0 %v310
    %342 = vmatpush1.bf16.msra.mxu0 %v309
    %343 = vmatprep.subr.bf16.mxu0 0
    %344 = vmatpush1.bf16.msra.mxu0 0
    %345 = vmatprep.subr.bf16.mxu0 0
    %346 = vmatpush1.bf16.msra.mxu0 0
    %347 = vmatprep.subr.bf16.mxu0 0
    %348 = vmatpush1.bf16.msra.mxu0 0
    %349 = vmatprep.subr.bf16.mxu0 0
    %350 = vmatpush1.bf16.msra.mxu0 0
    %351 = vmatprep.subr.bf16.mxu0 0
    %352 = vmatpush1.bf16.msra.mxu0 0
    %353 = vmatprep.subr.bf16.mxu0 0
    %354 = vmatpush1.bf16.msra.mxu0 0
    %355 = vmatprep.subr.bf16.mxu0 0
    %356 = vmatpush1.bf16.msra.mxu0 0
    %357 = vmatprep.subr.bf16.mxu0 0
    %358 = vmatpush1.bf16.msra.mxu0 0
    %359 = vmatprep.mubr.bf16.mxu0 0
    %360 = vmatmul.mubr.bf16.gmra.mrb[0].mxu0 %v245
    %v361 = vpop.f32.mrb[0].mxu0
    %v362 = vadd.f32 %v234, %v361
    %v363 = vpop.f32.mrb[0].mxu0
    %v364 = vadd.f32 %v238, %v363
    %v365 = vpop.f32.mrb[0].mxu0
    %v366 = vadd.f32 %v234, %v365
    %v367 = vpop.f32.mrb[0].mxu0
    %v368 = vadd.f32 %v238, %v367
    %369 = vdwg.mxu0
    %vm370 = vcmp.gt.f32.partialorder %v362, 0.0
    %vm371 = vcmp.gt.f32.partialorder %v364, 0.0
    %vm372 = vcmp.gt.f32.partialorder %v366, 0.0
    %vm373 = vcmp.gt.f32.partialorder %v368, 0.0
    %v374 = vmul.f32 %v362, 0.2
    %v375 = vmul.f32 %v364, 0.2
    %v376 = vmul.f32 %v366, 0.2
    %v377 = vmul.f32 %v368, 0.2
    %v378 = vsel %vm370, %v362, %v374
    %v379 = vsel %vm371, %v364, %v375
    %v380 = vsel %vm372, %v366, %v376
    %v381 = vsel %vm373, %v368, %v377
    // Predicated region
    $region54: #{tpu_custom_call.1} parent=1 // pred_check
      %p382 = pneg %p102
    $region55: #{tpu_custom_call.1} parent=1 // pred_check_branch
      %384 = sbr.rel (%p382) target = $region57
    $region56: #{tpu_custom_call.1} parent=1 // pred_region
      %s385 = smul.u32 4, 32
      %s386 = smul.u32 %s385, 4
      %s387 = sshll.u32 %s386, 4
      %388 = dma.done [#allocation5], %s387
    $region57: #{tpu_custom_call.1} parent=1 // pred_fallthru
      _
    %v389 = vpack.c.bf16 %v380, %v378
    %v390 = vpack.c.bf16 %v381, %v379
    %v391 = vld [vmem:[#allocation2] sm:$0xff]
    %v392 = vld [vmem:[#allocation2 + $0x8] sm:$0xff]
    %v393 = vld [vmem:[#allocation2 + $0x10] sm:$0xff]
    %v394 = vld [vmem:[#allocation2 + $0x18] sm:$0xff]
    %v395 = vld [vmem:[#allocation2 + $0x20] sm:$0xff]
    %v396 = vld [vmem:[#allocation2 + $0x28] sm:$0xff]
    %v397 = vld [vmem:[#allocation2 + $0x30] sm:$0xff]
    %v398 = vld [vmem:[#allocation2 + $0x38] sm:$0xff]
    %v399 = vld [vmem:[#allocation2 + $0x40] sm:$0xff]
    %v400 = vld [vmem:[#allocation2 + $0x48] sm:$0xff]
    %v401 = vld [vmem:[#allocation2 + $0x50] sm:$0xff]
    %v402 = vld [vmem:[#allocation2 + $0x58] sm:$0xff]
    %v403 = vld [vmem:[#allocation2 + $0x60] sm:$0xff]
    %v404 = vld [vmem:[#allocation2 + $0x68] sm:$0xff]
    %v405 = vld [vmem:[#allocation2 + $0x70] sm:$0xff]
    %v406 = vld [vmem:[#allocation2 + $0x78] sm:$0xff]
    %v407 = vld [vmem:[#allocation2 + $0x80] sm:$0xff]
    %v408 = vld [vmem:[#allocation2 + $0x88] sm:$0xff]
    %v409 = vld [vmem:[#allocation2 + $0x90] sm:$0xff]
    %v410 = vld [vmem:[#allocation2 + $0x98] sm:$0xff]
    %v411 = vld [vmem:[#allocation2 + $0xa0] sm:$0xff]
    %v412 = vld [vmem:[#allocation2 + $0xa8] sm:$0xff]
    %v413 = vld [vmem:[#allocation2 + $0xb0] sm:$0xff]
    %v414 = vld [vmem:[#allocation2 + $0xb8] sm:$0xff]
    %v415 = vld [vmem:[#allocation2 + $0xc0] sm:$0xff]
    %v416 = vld [vmem:[#allocation2 + $0xc8] sm:$0xff]
    %v417 = vld [vmem:[#allocation2 + $0xd0] sm:$0xff]
    %v418 = vld [vmem:[#allocation2 + $0xd8] sm:$0xff]
    %v419 = vld [vmem:[#allocation2 + $0xe0] sm:$0xff]
    %v420 = vld [vmem:[#allocation2 + $0xe8] sm:$0xff]
    %v421 = vld [vmem:[#allocation2 + $0xf0] sm:$0xff]
    %v422 = vld [vmem:[#allocation2 + $0xf8] sm:$0xff]
    %v423 = vld [vmem:[#allocation2 + $0x100] sm:$0xff]
    %v424 = vld [vmem:[#allocation2 + $0x108] sm:$0xff]
    %v425 = vld [vmem:[#allocation2 + $0x110] sm:$0xff]
    %v426 = vld [vmem:[#allocation2 + $0x118] sm:$0xff]
    %v427 = vld [vmem:[#allocation2 + $0x120] sm:$0xff]
    %v428 = vld [vmem:[#allocation2 + $0x128] sm:$0xff]
    %v429 = vld [vmem:[#allocation2 + $0x130] sm:$0xff]
    %v430 = vld [vmem:[#allocation2 + $0x138] sm:$0xff]
    %v431 = vld [vmem:[#allocation2 + $0x140] sm:$0xff]
    %v432 = vld [vmem:[#allocation2 + $0x148] sm:$0xff]
    %v433 = vld [vmem:[#allocation2 + $0x150] sm:$0xff]
    %v434 = vld [vmem:[#allocation2 + $0x158] sm:$0xff]
    %v435 = vld [vmem:[#allocation2 + $0x160] sm:$0xff]
    %v436 = vld [vmem:[#allocation2 + $0x168] sm:$0xff]
    %v437 = vld [vmem:[#allocation2 + $0x170] sm:$0xff]
    %v438 = vld [vmem:[#allocation2 + $0x178] sm:$0xff]
    %v439 = vld [vmem:[#allocation2 + $0x180] sm:$0xff]
    %v440 = vld [vmem:[#allocation2 + $0x188] sm:$0xff]
    %v441 = vld [vmem:[#allocation2 + $0x190] sm:$0xff]
    %v442 = vld [vmem:[#allocation2 + $0x198] sm:$0xff]
    %v443 = vld [vmem:[#allocation2 + $0x1a0] sm:$0xff]
    %v444 = vld [vmem:[#allocation2 + $0x1a8] sm:$0xff]
    %v445 = vld [vmem:[#allocation2 + $0x1b0] sm:$0xff]
    %v446 = vld [vmem:[#allocation2 + $0x1b8] sm:$0xff]
    %v447 = vld [vmem:[#allocation2 + $0x1c0] sm:$0xff]
    %v448 = vld [vmem:[#allocation2 + $0x1c8] sm:$0xff]
    %v449 = vld [vmem:[#allocation2 + $0x1d0] sm:$0xff]
    %v450 = vld [vmem:[#allocation2 + $0x1d8] sm:$0xff]
    %v451 = vld [vmem:[#allocation2 + $0x1e0] sm:$0xff]
    %v452 = vld [vmem:[#allocation2 + $0x1e8] sm:$0xff]
    %v453 = vld [vmem:[#allocation2 + $0x1f0] sm:$0xff]
    %v454 = vld [vmem:[#allocation2 + $0x1f8] sm:$0xff]
    %v455 = vld [vmem:[#allocation12] sm:$0xf]
    %v457 = vlaneseq
    %v458 = vshrl.u32 %v457, 7
    %v459 = vsub.s32 0, %v458
    %v460 = vrot.slane %v455, %v459
    %v461 = vlaneseq
    %v462 = vshrl.u32 %v461, 7
    %v463 = vsub.s32 1, %v462
    %v464 = vrot.slane %v455, %v463
    %v465 = vlaneseq
    %v466 = vshrl.u32 %v465, 7
    %v467 = vsub.s32 2, %v466
    %v468 = vrot.slane %v455, %v467
    %v469 = vlaneseq
    %v470 = vshrl.u32 %v469, 7
    %v471 = vsub.s32 3, %v470
    %v472 = vrot.slane %v455, %v471
    %477 = vmatprep.subr.bf16.mxu0 %v392
    %478 = vmatpush1.bf16.msra.mxu0 %v391
    %479 = vmatprep.subr.bf16.mxu0 %v396
    %480 = vmatpush1.bf16.msra.mxu0 %v395
    %481 = vmatprep.subr.bf16.mxu0 %v400
    %482 = vmatpush1.bf16.msra.mxu0 %v399
    %483 = vmatprep.subr.bf16.mxu0 %v404
    %484 = vmatpush1.bf16.msra.mxu0 %v403
    %485 = vmatprep.subr.bf16.mxu0 %v408
    %486 = vmatpush1.bf16.msra.mxu0 %v407
    %487 = vmatprep.subr.bf16.mxu0 %v412
    %488 = vmatpush1.bf16.msra.mxu0 %v411
    %489 = vmatprep.subr.bf16.mxu0 %v416
    %490 = vmatpush1.bf16.msra.mxu0 %v415
    %491 = vmatprep.subr.bf16.mxu0 %v420
    %492 = vmatpush1.bf16.msra.mxu0 %v419
    %493 = vmatprep.subr.bf16.mxu0 %v424
    %494 = vmatpush1.bf16.msra.mxu0 %v423
    %495 = vmatprep.subr.bf16.mxu0 %v428
    %496 = vmatpush1.bf16.msra.mxu0 %v427
    %497 = vmatprep.subr.bf16.mxu0 %v432
    %498 = vmatpush1.bf16.msra.mxu0 %v431
    %499 = vmatprep.subr.bf16.mxu0 %v436
    %500 = vmatpush1.bf16.msra.mxu0 %v435
    %501 = vmatprep.subr.bf16.mxu0 %v440
    %502 = vmatpush1.bf16.msra.mxu0 %v439
    %503 = vmatprep.subr.bf16.mxu0 %v444
    %504 = vmatpush1.bf16.msra.mxu0 %v443
    %505 = vmatprep.subr.bf16.mxu0 %v448
    %506 = vmatpush1.bf16.msra.mxu0 %v447
    %507 = vmatprep.subr.bf16.mxu0 %v452
    %508 = vmatpush1.bf16.msra.mxu0 %v451
    %509 = vmatprep.mubr.bf16.mxu0 %v390
    %510 = vmatmul.mubr.bf16.gmra.mrb[0].mxu0 %v389
    %v511 = vpop.f32.mrb[0].mxu0
    %v512 = vadd.f32 %v460, %v511
    %v513 = vpop.f32.mrb[0].mxu0
    %v514 = vadd.f32 %v464, %v513
    %v515 = vpop.f32.mrb[0].mxu0
    %v516 = vadd.f32 %v460, %v515
    %v517 = vpop.f32.mrb[0].mxu0
    %v518 = vadd.f32 %v464, %v517
    %519 = vdwg.mxu0
    %520 = vmatprep.subr.bf16.mxu0 %v394
    %521 = vmatpush1.bf16.msra.mxu0 %v393
    %522 = vmatprep.subr.bf16.mxu0 %v398
    %523 = vmatpush1.bf16.msra.mxu0 %v397
    %524 = vmatprep.subr.bf16.mxu0 %v402
    %525 = vmatpush1.bf16.msra.mxu0 %v401
    %526 = vmatprep.subr.bf16.mxu0 %v406
    %527 = vmatpush1.bf16.msra.mxu0 %v405
    %528 = vmatprep.subr.bf16.mxu0 %v410
    %529 = vmatpush1.bf16.msra.mxu0 %v409
    %530 = vmatprep.subr.bf16.mxu0 %v414
    %531 = vmatpush1.bf16.msra.mxu0 %v413
    %532 = vmatprep.subr.bf16.mxu0 %v418
    %533 = vmatpush1.bf16.msra.mxu0 %v417
    %534 = vmatprep.subr.bf16.mxu0 %v422
    %535 = vmatpush1.bf16.msra.mxu0 %v421
    %536 = vmatprep.subr.bf16.mxu0 %v426
    %537 = vmatpush1.bf16.msra.mxu0 %v425
    %538 = vmatprep.subr.bf16.mxu0 %v430
    %539 = vmatpush1.bf16.msra.mxu0 %v429
    %540 = vmatprep.subr.bf16.mxu0 %v434
    %541 = vmatpush1.bf16.msra.mxu0 %v433
    %542 = vmatprep.subr.bf16.mxu0 %v438
    %543 = vmatpush1.bf16.msra.mxu0 %v437
    %544 = vmatprep.subr.bf16.mxu0 %v442
    %545 = vmatpush1.bf16.msra.mxu0 %v441
    %546 = vmatprep.subr.bf16.mxu0 %v446
    %547 = vmatpush1.bf16.msra.mxu0 %v445
    %548 = vmatprep.subr.bf16.mxu0 %v450
    %549 = vmatpush1.bf16.msra.mxu0 %v449
    %550 = vmatprep.subr.bf16.mxu0 %v454
    %551 = vmatpush1.bf16.msra.mxu0 %v453
    %552 = vmatprep.mubr.bf16.mxu0 %v390
    %553 = vmatmul.mubr.bf16.gmra.mrb[0].mxu0 %v389
    %v554 = vpop.f32.mrb[0].mxu0
    %v555 = vadd.f32 %v468, %v554
    %v556 = vpop.f32.mrb[0].mxu0
    %v557 = vadd.f32 %v472, %v556
    %v558 = vpop.f32.mrb[0].mxu0
    %v559 = vadd.f32 %v468, %v558
    %v560 = vpop.f32.mrb[0].mxu0
    %v561 = vadd.f32 %v472, %v560
    %562 = vdwg.mxu0
    %vm563 = vcmp.gt.f32.partialorder %v512, 0.0
    %vm564 = vcmp.gt.f32.partialorder %v514, 0.0
    %vm565 = vcmp.gt.f32.partialorder %v555, 0.0
    %vm566 = vcmp.gt.f32.partialorder %v557, 0.0
    %vm567 = vcmp.gt.f32.partialorder %v516, 0.0
    %vm568 = vcmp.gt.f32.partialorder %v518, 0.0
    %vm569 = vcmp.gt.f32.partialorder %v559, 0.0
    %vm570 = vcmp.gt.f32.partialorder %v561, 0.0
    %v571 = vmul.f32 %v512, 0.2
    %v572 = vmul.f32 %v514, 0.2
    %v573 = vmul.f32 %v555, 0.2
    %v574 = vmul.f32 %v557, 0.2
    %v575 = vmul.f32 %v516, 0.2
    %v576 = vmul.f32 %v518, 0.2
    %v577 = vmul.f32 %v559, 0.2
    %v578 = vmul.f32 %v561, 0.2
    %v579 = vsel %vm563, %v512, %v571
    %v580 = vsel %vm564, %v514, %v572
    %v581 = vsel %vm565, %v555, %v573
    %v582 = vsel %vm566, %v557, %v574
    %v583 = vsel %vm567, %v516, %v575
    %v584 = vsel %vm568, %v518, %v576
    %v585 = vsel %vm569, %v559, %v577
    %v586 = vsel %vm570, %v561, %v578
    // Predicated region
    $region58: #{tpu_custom_call.1} parent=1 // pred_check
      %p587 = pneg %p102
    $region59: #{tpu_custom_call.1} parent=1 // pred_check_branch
      %589 = sbr.rel (%p587) target = $region61
    $region60: #{tpu_custom_call.1} parent=1 // pred_region
      %s590 = scalar_lea.sflag [#allocation5], 1
      %s591 = smul.u32 4, 64
      %s592 = smul.u32 %s591, 8
      %s593 = sshll.u32 %s592, 4
      %594 = dma.done %s590, %s593
    $region61: #{tpu_custom_call.1} parent=1 // pred_fallthru
      _
    %v595 = vpack.c.bf16 %v583, %v579
    %v596 = vpack.c.bf16 %v584, %v580
    %v597 = vpack.c.bf16 %v585, %v581
    %v598 = vpack.c.bf16 %v586, %v582
    %v599 = vld [vmem:[#allocation3] sm:$0xff]
    %v600 = vld [vmem:[#allocation3 + $0x8] sm:$0xff]
    %v601 = vld [vmem:[#allocation3 + $0x10] sm:$0xff]
    %v602 = vld [vmem:[#allocation3 + $0x18] sm:$0xff]
    %v603 = vld [vmem:[#allocation3 + $0x20] sm:$0xff]
    %v604 = vld [vmem:[#allocation3 + $0x28] sm:$0xff]
    %v605 = vld [vmem:[#allocation3 + $0x30] sm:$0xff]
    %v606 = vld [vmem:[#allocation3 + $0x38] sm:$0xff]
    %v607 = vld [vmem:[#allocation3 + $0x40] sm:$0xff]
    %v608 = vld [vmem:[#allocation3 + $0x48] sm:$0xff]
    %v609 = vld [vmem:[#allocation3 + $0x50] sm:$0xff]
    %v610 = vld [vmem:[#allocation3 + $0x58] sm:$0xff]
    %v611 = vld [vmem:[#allocation3 + $0x60] sm:$0xff]
    %v612 = vld [vmem:[#allocation3 + $0x68] sm:$0xff]
    %v613 = vld [vmem:[#allocation3 + $0x70] sm:$0xff]
    %v614 = vld [vmem:[#allocation3 + $0x78] sm:$0xff]
    %v615 = vld [vmem:[#allocation3 + $0x80] sm:$0xff]
    %v616 = vld [vmem:[#allocation3 + $0x88] sm:$0xff]
    %v617 = vld [vmem:[#allocation3 + $0x90] sm:$0xff]
    %v618 = vld [vmem:[#allocation3 + $0x98] sm:$0xff]
    %v619 = vld [vmem:[#allocation3 + $0xa0] sm:$0xff]
    %v620 = vld [vmem:[#allocation3 + $0xa8] sm:$0xff]
    %v621 = vld [vmem:[#allocation3 + $0xb0] sm:$0xff]
    %v622 = vld [vmem:[#allocation3 + $0xb8] sm:$0xff]
    %v623 = vld [vmem:[#allocation3 + $0xc0] sm:$0xff]
    %v624 = vld [vmem:[#allocation3 + $0xc8] sm:$0xff]
    %v625 = vld [vmem:[#allocation3 + $0xd0] sm:$0xff]
    %v626 = vld [vmem:[#allocation3 + $0xd8] sm:$0xff]
    %v627 = vld [vmem:[#allocation3 + $0xe0] sm:$0xff]
    %v628 = vld [vmem:[#allocation3 + $0xe8] sm:$0xff]
    %v629 = vld [vmem:[#allocation3 + $0xf0] sm:$0xff]
    %v630 = vld [vmem:[#allocation3 + $0xf8] sm:$0xff]
    %v631 = vld [vmem:[#allocation3 + $0x100] sm:$0xff]
    %v632 = vld [vmem:[#allocation3 + $0x108] sm:$0xff]
    %v633 = vld [vmem:[#allocation3 + $0x110] sm:$0xff]
    %v634 = vld [vmem:[#allocation3 + $0x118] sm:$0xff]
    %v635 = vld [vmem:[#allocation3 + $0x120] sm:$0xff]
    %v636 = vld [vmem:[#allocation3 + $0x128] sm:$0xff]
    %v637 = vld [vmem:[#allocation3 + $0x130] sm:$0xff]
    %v638 = vld [vmem:[#allocation3 + $0x138] sm:$0xff]
    %v639 = vld [vmem:[#allocation3 + $0x140] sm:$0xff]
    %v640 = vld [vmem:[#allocation3 + $0x148] sm:$0xff]
    %v641 = vld [vmem:[#allocation3 + $0x150] sm:$0xff]
    %v642 = vld [vmem:[#allocation3 + $0x158] sm:$0xff]
    %v643 = vld [vmem:[#allocation3 + $0x160] sm:$0xff]
    %v644 = vld [vmem:[#allocation3 + $0x168] sm:$0xff]
    %v645 = vld [vmem:[#allocation3 + $0x170] sm:$0xff]
    %v646 = vld [vmem:[#allocation3 + $0x178] sm:$0xff]
    %v647 = vld [vmem:[#allocation3 + $0x180] sm:$0xff]
    %v648 = vld [vmem:[#allocation3 + $0x188] sm:$0xff]
    %v649 = vld [vmem:[#allocation3 + $0x190] sm:$0xff]
    %v650 = vld [vmem:[#allocation3 + $0x198] sm:$0xff]
    %v651 = vld [vmem:[#allocation3 + $0x1a0] sm:$0xff]
    %v652 = vld [vmem:[#allocation3 + $0x1a8] sm:$0xff]
    %v653 = vld [vmem:[#allocation3 + $0x1b0] sm:$0xff]
    %v654 = vld [vmem:[#allocation3 + $0x1b8] sm:$0xff]
    %v655 = vld [vmem:[#allocation3 + $0x1c0] sm:$0xff]
    %v656 = vld [vmem:[#allocation3 + $0x1c8] sm:$0xff]
    %v657 = vld [vmem:[#allocation3 + $0x1d0] sm:$0xff]
    %v658 = vld [vmem:[#allocation3 + $0x1d8] sm:$0xff]
    %v659 = vld [vmem:[#allocation3 + $0x1e0] sm:$0xff]
    %v660 = vld [vmem:[#allocation3 + $0x1e8] sm:$0xff]
    %v661 = vld [vmem:[#allocation3 + $0x1f0] sm:$0xff]
    %v662 = vld [vmem:[#allocation3 + $0x1f8] sm:$0xff]
    %v663 = vld [vmem:[#allocation3 + $0x200] sm:$0xff]
    %v664 = vld [vmem:[#allocation3 + $0x208] sm:$0xff]
    %v665 = vld [vmem:[#allocation3 + $0x210] sm:$0xff]
    %v666 = vld [vmem:[#allocation3 + $0x218] sm:$0xff]
    %v667 = vld [vmem:[#allocation3 + $0x220] sm:$0xff]
    %v668 = vld [vmem:[#allocation3 + $0x228] sm:$0xff]
    %v669 = vld [vmem:[#allocation3 + $0x230] sm:$0xff]
    %v670 = vld [vmem:[#allocation3 + $0x238] sm:$0xff]
    %v671 = vld [vmem:[#allocation3 + $0x240] sm:$0xff]
    %v672 = vld [vmem:[#allocation3 + $0x248] sm:$0xff]
    %v673 = vld [vmem:[#allocation3 + $0x250] sm:$0xff]
    %v674 = vld [vmem:[#allocation3 + $0x258] sm:$0xff]
    %v675 = vld [vmem:[#allocation3 + $0x260] sm:$0xff]
    %v676 = vld [vmem:[#allocation3 + $0x268] sm:$0xff]
    %v677 = vld [vmem:[#allocation3 + $0x270] sm:$0xff]
    %v678 = vld [vmem:[#allocation3 + $0x278] sm:$0xff]
    %v679 = vld [vmem:[#allocation3 + $0x280] sm:$0xff]
    %v680 = vld [vmem:[#allocation3 + $0x288] sm:$0xff]
    %v681 = vld [vmem:[#allocation3 + $0x290] sm:$0xff]
    %v682 = vld [vmem:[#allocation3 + $0x298] sm:$0xff]
    %v683 = vld [vmem:[#allocation3 + $0x2a0] sm:$0xff]
    %v684 = vld [vmem:[#allocation3 + $0x2a8] sm:$0xff]
    %v685 = vld [vmem:[#allocation3 + $0x2b0] sm:$0xff]
    %v686 = vld [vmem:[#allocation3 + $0x2b8] sm:$0xff]
    %v687 = vld [vmem:[#allocation3 + $0x2c0] sm:$0xff]
    %v688 = vld [vmem:[#allocation3 + $0x2c8] sm:$0xff]
    %v689 = vld [vmem:[#allocation3 + $0x2d0] sm:$0xff]
    %v690 = vld [vmem:[#allocation3 + $0x2d8] sm:$0xff]
    %v691 = vld [vmem:[#allocation3 + $0x2e0] sm:$0xff]
    %v692 = vld [vmem:[#allocation3 + $0x2e8] sm:$0xff]
    %v693 = vld [vmem:[#allocation3 + $0x2f0] sm:$0xff]
    %v694 = vld [vmem:[#allocation3 + $0x2f8] sm:$0xff]
    %v695 = vld [vmem:[#allocation3 + $0x300] sm:$0xff]
    %v696 = vld [vmem:[#allocation3 + $0x308] sm:$0xff]
    %v697 = vld [vmem:[#allocation3 + $0x310] sm:$0xff]
    %v698 = vld [vmem:[#allocation3 + $0x318] sm:$0xff]
    %v699 = vld [vmem:[#allocation3 + $0x320] sm:$0xff]
    %v700 = vld [vmem:[#allocation3 + $0x328] sm:$0xff]
    %v701 = vld [vmem:[#allocation3 + $0x330] sm:$0xff]
    %v702 = vld [vmem:[#allocation3 + $0x338] sm:$0xff]
    %v703 = vld [vmem:[#allocation3 + $0x340] sm:$0xff]
    %v704 = vld [vmem:[#allocation3 + $0x348] sm:$0xff]
    %v705 = vld [vmem:[#allocation3 + $0x350] sm:$0xff]
    %v706 = vld [vmem:[#allocation3 + $0x358] sm:$0xff]
    %v707 = vld [vmem:[#allocation3 + $0x360] sm:$0xff]
    %v708 = vld [vmem:[#allocation3 + $0x368] sm:$0xff]
    %v709 = vld [vmem:[#allocation3 + $0x370] sm:$0xff]
    %v710 = vld [vmem:[#allocation3 + $0x378] sm:$0xff]
    %v711 = vld [vmem:[#allocation3 + $0x380] sm:$0xff]
    %v712 = vld [vmem:[#allocation3 + $0x388] sm:$0xff]
    %v713 = vld [vmem:[#allocation3 + $0x390] sm:$0xff]
    %v714 = vld [vmem:[#allocation3 + $0x398] sm:$0xff]
    %v715 = vld [vmem:[#allocation3 + $0x3a0] sm:$0xff]
    %v716 = vld [vmem:[#allocation3 + $0x3a8] sm:$0xff]
    %v717 = vld [vmem:[#allocation3 + $0x3b0] sm:$0xff]
    %v718 = vld [vmem:[#allocation3 + $0x3b8] sm:$0xff]
    %v719 = vld [vmem:[#allocation3 + $0x3c0] sm:$0xff]
    %v720 = vld [vmem:[#allocation3 + $0x3c8] sm:$0xff]
    %v721 = vld [vmem:[#allocation3 + $0x3d0] sm:$0xff]
    %v722 = vld [vmem:[#allocation3 + $0x3d8] sm:$0xff]
    %v723 = vld [vmem:[#allocation3 + $0x3e0] sm:$0xff]
    %v724 = vld [vmem:[#allocation3 + $0x3e8] sm:$0xff]
    %v725 = vld [vmem:[#allocation3 + $0x3f0] sm:$0xff]
    %v726 = vld [vmem:[#allocation3 + $0x3f8] sm:$0xff]
    %v727 = vld [vmem:[#allocation3 + $0x400] sm:$0xff]
    %v728 = vld [vmem:[#allocation3 + $0x408] sm:$0xff]
    %v729 = vld [vmem:[#allocation3 + $0x410] sm:$0xff]
    %v730 = vld [vmem:[#allocation3 + $0x418] sm:$0xff]
    %v731 = vld [vmem:[#allocation3 + $0x420] sm:$0xff]
    %v732 = vld [vmem:[#allocation3 + $0x428] sm:$0xff]
    %v733 = vld [vmem:[#allocation3 + $0x430] sm:$0xff]
    %v734 = vld [vmem:[#allocation3 + $0x438] sm:$0xff]
    %v735 = vld [vmem:[#allocation3 + $0x440] sm:$0xff]
    %v736 = vld [vmem:[#allocation3 + $0x448] sm:$0xff]
    %v737 = vld [vmem:[#allocation3 + $0x450] sm:$0xff]
    %v738 = vld [vmem:[#allocation3 + $0x458] sm:$0xff]
    %v739 = vld [vmem:[#allocation3 + $0x460] sm:$0xff]
    %v740 = vld [vmem:[#allocation3 + $0x468] sm:$0xff]
    %v741 = vld [vmem:[#allocation3 + $0x470] sm:$0xff]
    %v742 = vld [vmem:[#allocation3 + $0x478] sm:$0xff]
    %v743 = vld [vmem:[#allocation3 + $0x480] sm:$0xff]
    %v744 = vld [vmem:[#allocation3 + $0x488] sm:$0xff]
    %v745 = vld [vmem:[#allocation3 + $0x490] sm:$0xff]
    %v746 = vld [vmem:[#allocation3 + $0x498] sm:$0xff]
    %v747 = vld [vmem:[#allocation3 + $0x4a0] sm:$0xff]
    %v748 = vld [vmem:[#allocation3 + $0x4a8] sm:$0xff]
    %v749 = vld [vmem:[#allocation3 + $0x4b0] sm:$0xff]
    %v750 = vld [vmem:[#allocation3 + $0x4b8] sm:$0xff]
    %v751 = vld [vmem:[#allocation3 + $0x4c0] sm:$0xff]
    %v752 = vld [vmem:[#allocation3 + $0x4c8] sm:$0xff]
    %v753 = vld [vmem:[#allocation3 + $0x4d0] sm:$0xff]
    %v754 = vld [vmem:[#allocation3 + $0x4d8] sm:$0xff]
    %v755 = vld [vmem:[#allocation3 + $0x4e0] sm:$0xff]
    %v756 = vld [vmem:[#allocation3 + $0x4e8] sm:$0xff]
    %v757 = vld [vmem:[#allocation3 + $0x4f0] sm:$0xff]
    %v758 = vld [vmem:[#allocation3 + $0x4f8] sm:$0xff]
    %v759 = vld [vmem:[#allocation3 + $0x500] sm:$0xff]
    %v760 = vld [vmem:[#allocation3 + $0x508] sm:$0xff]
    %v761 = vld [vmem:[#allocation3 + $0x510] sm:$0xff]
    %v762 = vld [vmem:[#allocation3 + $0x518] sm:$0xff]
    %v763 = vld [vmem:[#allocation3 + $0x520] sm:$0xff]
    %v764 = vld [vmem:[#allocation3 + $0x528] sm:$0xff]
    %v765 = vld [vmem:[#allocation3 + $0x530] sm:$0xff]
    %v766 = vld [vmem:[#allocation3 + $0x538] sm:$0xff]
    %v767 = vld [vmem:[#allocation3 + $0x540] sm:$0xff]
    %v768 = vld [vmem:[#allocation3 + $0x548] sm:$0xff]
    %v769 = vld [vmem:[#allocation3 + $0x550] sm:$0xff]
    %v770 = vld [vmem:[#allocation3 + $0x558] sm:$0xff]
    %v771 = vld [vmem:[#allocation3 + $0x560] sm:$0xff]
    %v772 = vld [vmem:[#allocation3 + $0x568] sm:$0xff]
    %v773 = vld [vmem:[#allocation3 + $0x570] sm:$0xff]
    %v774 = vld [vmem:[#allocation3 + $0x578] sm:$0xff]
    %v775 = vld [vmem:[#allocation3 + $0x580] sm:$0xff]
    %v776 = vld [vmem:[#allocation3 + $0x588] sm:$0xff]
    %v777 = vld [vmem:[#allocation3 + $0x590] sm:$0xff]
    %v778 = vld [vmem:[#allocation3 + $0x598] sm:$0xff]
    %v779 = vld [vmem:[#allocation3 + $0x5a0] sm:$0xff]
    %v780 = vld [vmem:[#allocation3 + $0x5a8] sm:$0xff]
    %v781 = vld [vmem:[#allocation3 + $0x5b0] sm:$0xff]
    %v782 = vld [vmem:[#allocation3 + $0x5b8] sm:$0xff]
    %v783 = vld [vmem:[#allocation3 + $0x5c0] sm:$0xff]
    %v784 = vld [vmem:[#allocation3 + $0x5c8] sm:$0xff]
    %v785 = vld [vmem:[#allocation3 + $0x5d0] sm:$0xff]
    %v786 = vld [vmem:[#allocation3 + $0x5d8] sm:$0xff]
    %v787 = vld [vmem:[#allocation3 + $0x5e0] sm:$0xff]
    %v788 = vld [vmem:[#allocation3 + $0x5e8] sm:$0xff]
    %v789 = vld [vmem:[#allocation3 + $0x5f0] sm:$0xff]
    %v790 = vld [vmem:[#allocation3 + $0x5f8] sm:$0xff]
    %v791 = vld [vmem:[#allocation3 + $0x600] sm:$0xff]
    %v792 = vld [vmem:[#allocation3 + $0x608] sm:$0xff]
    %v793 = vld [vmem:[#allocation3 + $0x610] sm:$0xff]
    %v794 = vld [vmem:[#allocation3 + $0x618] sm:$0xff]
    %v795 = vld [vmem:[#allocation3 + $0x620] sm:$0xff]
    %v796 = vld [vmem:[#allocation3 + $0x628] sm:$0xff]
    %v797 = vld [vmem:[#allocation3 + $0x630] sm:$0xff]
    %v798 = vld [vmem:[#allocation3 + $0x638] sm:$0xff]
    %v799 = vld [vmem:[#allocation3 + $0x640] sm:$0xff]
    %v800 = vld [vmem:[#allocation3 + $0x648] sm:$0xff]
    %v801 = vld [vmem:[#allocation3 + $0x650] sm:$0xff]
    %v802 = vld [vmem:[#allocation3 + $0x658] sm:$0xff]
    %v803 = vld [vmem:[#allocation3 + $0x660] sm:$0xff]
    %v804 = vld [vmem:[#allocation3 + $0x668] sm:$0xff]
    %v805 = vld [vmem:[#allocation3 + $0x670] sm:$0xff]
    %v806 = vld [vmem:[#allocation3 + $0x678] sm:$0xff]
    %v807 = vld [vmem:[#allocation3 + $0x680] sm:$0xff]
    %v808 = vld [vmem:[#allocation3 + $0x688] sm:$0xff]
    %v809 = vld [vmem:[#allocation3 + $0x690] sm:$0xff]
    %v810 = vld [vmem:[#allocation3 + $0x698] sm:$0xff]
    %v811 = vld [vmem:[#allocation3 + $0x6a0] sm:$0xff]
    %v812 = vld [vmem:[#allocation3 + $0x6a8] sm:$0xff]
    %v813 = vld [vmem:[#allocation3 + $0x6b0] sm:$0xff]
    %v814 = vld [vmem:[#allocation3 + $0x6b8] sm:$0xff]
    %v815 = vld [vmem:[#allocation3 + $0x6c0] sm:$0xff]
    %v816 = vld [vmem:[#allocation3 + $0x6c8] sm:$0xff]
    %v817 = vld [vmem:[#allocation3 + $0x6d0] sm:$0xff]
    %v818 = vld [vmem:[#allocation3 + $0x6d8] sm:$0xff]
    %v819 = vld [vmem:[#allocation3 + $0x6e0] sm:$0xff]
    %v820 = vld [vmem:[#allocation3 + $0x6e8] sm:$0xff]
    %v821 = vld [vmem:[#allocation3 + $0x6f0] sm:$0xff]
    %v822 = vld [vmem:[#allocation3 + $0x6f8] sm:$0xff]
    %v823 = vld [vmem:[#allocation3 + $0x700] sm:$0xff]
    %v824 = vld [vmem:[#allocation3 + $0x708] sm:$0xff]
    %v825 = vld [vmem:[#allocation3 + $0x710] sm:$0xff]
    %v826 = vld [vmem:[#allocation3 + $0x718] sm:$0xff]
    %v827 = vld [vmem:[#allocation3 + $0x720] sm:$0xff]
    %v828 = vld [vmem:[#allocation3 + $0x728] sm:$0xff]
    %v829 = vld [vmem:[#allocation3 + $0x730] sm:$0xff]
    %v830 = vld [vmem:[#allocation3 + $0x738] sm:$0xff]
    %v831 = vld [vmem:[#allocation3 + $0x740] sm:$0xff]
    %v832 = vld [vmem:[#allocation3 + $0x748] sm:$0xff]
    %v833 = vld [vmem:[#allocation3 + $0x750] sm:$0xff]
    %v834 = vld [vmem:[#allocation3 + $0x758] sm:$0xff]
    %v835 = vld [vmem:[#allocation3 + $0x760] sm:$0xff]
    %v836 = vld [vmem:[#allocation3 + $0x768] sm:$0xff]
    %v837 = vld [vmem:[#allocation3 + $0x770] sm:$0xff]
    %v838 = vld [vmem:[#allocation3 + $0x778] sm:$0xff]
    %v839 = vld [vmem:[#allocation3 + $0x780] sm:$0xff]
    %v840 = vld [vmem:[#allocation3 + $0x788] sm:$0xff]
    %v841 = vld [vmem:[#allocation3 + $0x790] sm:$0xff]
    %v842 = vld [vmem:[#allocation3 + $0x798] sm:$0xff]
    %v843 = vld [vmem:[#allocation3 + $0x7a0] sm:$0xff]
    %v844 = vld [vmem:[#allocation3 + $0x7a8] sm:$0xff]
    %v845 = vld [vmem:[#allocation3 + $0x7b0] sm:$0xff]
    %v846 = vld [vmem:[#allocation3 + $0x7b8] sm:$0xff]
    %v847 = vld [vmem:[#allocation3 + $0x7c0] sm:$0xff]
    %v848 = vld [vmem:[#allocation3 + $0x7c8] sm:$0xff]
    %v849 = vld [vmem:[#allocation3 + $0x7d0] sm:$0xff]
    %v850 = vld [vmem:[#allocation3 + $0x7d8] sm:$0xff]
    %v851 = vld [vmem:[#allocation3 + $0x7e0] sm:$0xff]
    %v852 = vld [vmem:[#allocation3 + $0x7e8] sm:$0xff]
    %v853 = vld [vmem:[#allocation3 + $0x7f0] sm:$0xff]
    %v854 = vld [vmem:[#allocation3 + $0x7f8] sm:$0xff]
    %v855 = vld [vmem:[#allocation14] sm:$0xff]
    %v857 = vlaneseq
    %v858 = vshrl.u32 %v857, 7
    %v859 = vsub.s32 0, %v858
    %v860 = vrot.slane %v855, %v859
    %v861 = vlaneseq
    %v862 = vshrl.u32 %v861, 7
    %v863 = vsub.s32 1, %v862
    %v864 = vrot.slane %v855, %v863
    %v865 = vlaneseq
    %v866 = vshrl.u32 %v865, 7
    %v867 = vsub.s32 2, %v866
    %v868 = vrot.slane %v855, %v867
    %v869 = vlaneseq
    %v870 = vshrl.u32 %v869, 7
    %v871 = vsub.s32 3, %v870
    %v872 = vrot.slane %v855, %v871
    %v873 = vlaneseq
    %v874 = vshrl.u32 %v873, 7
    %v875 = vsub.s32 4, %v874
    %v876 = vrot.slane %v855, %v875
    %v877 = vlaneseq
    %v878 = vshrl.u32 %v877, 7
    %v879 = vsub.s32 5, %v878
    %v880 = vrot.slane %v855, %v879
    %v881 = vlaneseq
    %v882 = vshrl.u32 %v881, 7
    %v883 = vsub.s32 6, %v882
    %v884 = vrot.slane %v855, %v883
    %v885 = vlaneseq
    %v886 = vshrl.u32 %v885, 7
    %v887 = vsub.s32 7, %v886
    %v888 = vrot.slane %v855, %v887
    %897 = vmatprep.subr.bf16.mxu0 %v600
    %898 = vmatpush1.bf16.msra.mxu0 %v599
    %899 = vmatprep.subr.bf16.mxu0 %v608
    %900 = vmatpush1.bf16.msra.mxu0 %v607
    %901 = vmatprep.subr.bf16.mxu0 %v616
    %902 = vmatpush1.bf16.msra.mxu0 %v615
    %903 = vmatprep.subr.bf16.mxu0 %v624
    %904 = vmatpush1.bf16.msra.mxu0 %v623
    %905 = vmatprep.subr.bf16.mxu0 %v632
    %906 = vmatpush1.bf16.msra.mxu0 %v631
    %907 = vmatprep.subr.bf16.mxu0 %v640
    %908 = vmatpush1.bf16.msra.mxu0 %v639
    %909 = vmatprep.subr.bf16.mxu0 %v648
    %910 = vmatpush1.bf16.msra.mxu0 %v647
    %911 = vmatprep.subr.bf16.mxu0 %v656
    %912 = vmatpush1.bf16.msra.mxu0 %v655
    %913 = vmatprep.subr.bf16.mxu0 %v664
    %914 = vmatpush1.bf16.msra.mxu0 %v663
    %915 = vmatprep.subr.bf16.mxu0 %v672
    %916 = vmatpush1.bf16.msra.mxu0 %v671
    %917 = vmatprep.subr.bf16.mxu0 %v680
    %918 = vmatpush1.bf16.msra.mxu0 %v679
    %919 = vmatprep.subr.bf16.mxu0 %v688
    %920 = vmatpush1.bf16.msra.mxu0 %v687
    %921 = vmatprep.subr.bf16.mxu0 %v696
    %922 = vmatpush1.bf16.msra.mxu0 %v695
    %923 = vmatprep.subr.bf16.mxu0 %v704
    %924 = vmatpush1.bf16.msra.mxu0 %v703
    %925 = vmatprep.subr.bf16.mxu0 %v712
    %926 = vmatpush1.bf16.msra.mxu0 %v711
    %927 = vmatprep.subr.bf16.mxu0 %v720
    %928 = vmatpush1.bf16.msra.mxu0 %v719
    %929 = vmatprep.mubr.bf16.mxu0 %v596
    %930 = vmatmul.mubr.bf16.gmra.mrb[0].mxu0 %v595
    %v931 = vpop.f32.mrb[0].mxu0
    %v932 = vadd.f32 %v860, %v931
    %v933 = vpop.f32.mrb[0].mxu0
    %v934 = vadd.f32 %v864, %v933
    %v935 = vpop.f32.mrb[0].mxu0
    %v936 = vadd.f32 %v860, %v935
    %v937 = vpop.f32.mrb[0].mxu0
    %v938 = vadd.f32 %v864, %v937
    %939 = vdwg.mxu0
    %940 = vmatprep.subr.bf16.mxu0 %v728
    %941 = vmatpush1.bf16.msra.mxu0 %v727
    %942 = vmatprep.subr.bf16.mxu0 %v736
    %943 = vmatpush1.bf16.msra.mxu0 %v735
    %944 = vmatprep.subr.bf16.mxu0 %v744
    %945 = vmatpush1.bf16.msra.mxu0 %v743
    %946 = vmatprep.subr.bf16.mxu0 %v752
    %947 = vmatpush1.bf16.msra.mxu0 %v751
    %948 = vmatprep.subr.bf16.mxu0 %v760
    %949 = vmatpush1.bf16.msra.mxu0 %v759
    %950 = vmatprep.subr.bf16.mxu0 %v768
    %951 = vmatpush1.bf16.msra.mxu0 %v767
    %952 = vmatprep.subr.bf16.mxu0 %v776
    %953 = vmatpush1.bf16.msra.mxu0 %v775
    %954 = vmatprep.subr.bf16.mxu0 %v784
    %955 = vmatpush1.bf16.msra.mxu0 %v783
    %956 = vmatprep.subr.bf16.mxu0 %v792
    %957 = vmatpush1.bf16.msra.mxu0 %v791
    %958 = vmatprep.subr.bf16.mxu0 %v800
    %959 = vmatpush1.bf16.msra.mxu0 %v799
    %960 = vmatprep.subr.bf16.mxu0 %v808
    %961 = vmatpush1.bf16.msra.mxu0 %v807
    %962 = vmatprep.subr.bf16.mxu0 %v816
    %963 = vmatpush1.bf16.msra.mxu0 %v815
    %964 = vmatprep.subr.bf16.mxu0 %v824
    %965 = vmatpush1.bf16.msra.mxu0 %v823
    %966 = vmatprep.subr.bf16.mxu0 %v832
    %967 = vmatpush1.bf16.msra.mxu0 %v831
    %968 = vmatprep.subr.bf16.mxu0 %v840
    %969 = vmatpush1.bf16.msra.mxu0 %v839
    %970 = vmatprep.subr.bf16.mxu0 %v848
    %971 = vmatpush1.bf16.msra.mxu0 %v847
    %972 = vmatprep.mubr.bf16.mxu0 %v598
    %973 = vmatmul.mubr.bf16.gmra.mrb[0].mxu0 %v597
    %v974 = vpop.f32.mrb[0].mxu0
    %v975 = vadd.f32 %v932, %v974
    %v976 = vpop.f32.mrb[0].mxu0
    %v977 = vadd.f32 %v934, %v976
    %v978 = vpop.f32.mrb[0].mxu0
    %v979 = vadd.f32 %v936, %v978
    %v980 = vpop.f32.mrb[0].mxu0
    %v981 = vadd.f32 %v938, %v980
    %982 = vdwg.mxu0
    %983 = vmatprep.subr.bf16.mxu0 %v602
    %984 = vmatpush1.bf16.msra.mxu0 %v601
    %985 = vmatprep.subr.bf16.mxu0 %v610
    %986 = vmatpush1.bf16.msra.mxu0 %v609
    %987 = vmatprep.subr.bf16.mxu0 %v618
    %988 = vmatpush1.bf16.msra.mxu0 %v617
    %989 = vmatprep.subr.bf16.mxu0 %v626
    %990 = vmatpush1.bf16.msra.mxu0 %v625
    %991 = vmatprep.subr.bf16.mxu0 %v634
    %992 = vmatpush1.bf16.msra.mxu0 %v633
    %993 = vmatprep.subr.bf16.mxu0 %v642
    %994 = vmatpush1.bf16.msra.mxu0 %v641
    %995 = vmatprep.subr.bf16.mxu0 %v650
    %996 = vmatpush1.bf16.msra.mxu0 %v649
    %997 = vmatprep.subr.bf16.mxu0 %v658
    %998 = vmatpush1.bf16.msra.mxu0 %v657
    %999 = vmatprep.subr.bf16.mxu0 %v666
    %1000 = vmatpush1.bf16.msra.mxu0 %v665
    %1001 = vmatprep.subr.bf16.mxu0 %v674
    %1002 = vmatpush1.bf16.msra.mxu0 %v673
    %1003 = vmatprep.subr.bf16.mxu0 %v682
    %1004 = vmatpush1.bf16.msra.mxu0 %v681
    %1005 = vmatprep.subr.bf16.mxu0 %v690
    %1006 = vmatpush1.bf16.msra.mxu0 %v689
    %1007 = vmatprep.subr.bf16.mxu0 %v698
    %1008 = vmatpush1.bf16.msra.mxu0 %v697
    %1009 = vmatprep.subr.bf16.mxu0 %v706
    %1010 = vmatpush1.bf16.msra.mxu0 %v705
    %1011 = vmatprep.subr.bf16.mxu0 %v714
    %1012 = vmatpush1.bf16.msra.mxu0 %v713
    %1013 = vmatprep.subr.bf16.mxu0 %v722
    %1014 = vmatpush1.bf16.msra.mxu0 %v721
    %1015 = vmatprep.mubr.bf16.mxu0 %v596
    %1016 = vmatmul.mubr.bf16.gmra.mrb[0].mxu0 %v595
    %v1017 = vpop.f32.mrb[0].mxu0
    %v1018 = vadd.f32 %v868, %v1017
    %v1019 = vpop.f32.mrb[0].mxu0
    %v1020 = vadd.f32 %v872, %v1019
    %v1021 = vpop.f32.mrb[0].mxu0
    %v1022 = vadd.f32 %v868, %v1021
    %v1023 = vpop.f32.mrb[0].mxu0
    %v1024 = vadd.f32 %v872, %v1023
    %1025 = vdwg.mxu0
    %1026 = vmatprep.subr.bf16.mxu0 %v730
    %1027 = vmatpush1.bf16.msra.mxu0 %v729
    %1028 = vmatprep.subr.bf16.mxu0 %v738
    %1029 = vmatpush1.bf16.msra.mxu0 %v737
    %1030 = vmatprep.subr.bf16.mxu0 %v746
    %1031 = vmatpush1.bf16.msra.mxu0 %v745
    %1032 = vmatprep.subr.bf16.mxu0 %v754
    %1033 = vmatpush1.bf16.msra.mxu0 %v753
    %1034 = vmatprep.subr.bf16.mxu0 %v762
    %1035 = vmatpush1.bf16.msra.mxu0 %v761
    %1036 = vmatprep.subr.bf16.mxu0 %v770
    %1037 = vmatpush1.bf16.msra.mxu0 %v769
    %1038 = vmatprep.subr.bf16.mxu0 %v778
    %1039 = vmatpush1.bf16.msra.mxu0 %v777
    %1040 = vmatprep.subr.bf16.mxu0 %v786
    %1041 = vmatpush1.bf16.msra.mxu0 %v785
    %1042 = vmatprep.subr.bf16.mxu0 %v794
    %1043 = vmatpush1.bf16.msra.mxu0 %v793
    %1044 = vmatprep.subr.bf16.mxu0 %v802
    %1045 = vmatpush1.bf16.msra.mxu0 %v801
    %1046 = vmatprep.subr.bf16.mxu0 %v810
    %1047 = vmatpush1.bf16.msra.mxu0 %v809
    %1048 = vmatprep.subr.bf16.mxu0 %v818
    %1049 = vmatpush1.bf16.msra.mxu0 %v817
    %1050 = vmatprep.subr.bf16.mxu0 %v826
    %1051 = vmatpush1.bf16.msra.mxu0 %v825
    %1052 = vmatprep.subr.bf16.mxu0 %v834
    %1053 = vmatpush1.bf16.msra.mxu0 %v833
    %1054 = vmatprep.subr.bf16.mxu0 %v842
    %1055 = vmatpush1.bf16.msra.mxu0 %v841
    %1056 = vmatprep.subr.bf16.mxu0 %v850
    %1057 = vmatpush1.bf16.msra.mxu0 %v849
    %1058 = vmatprep.mubr.bf16.mxu0 %v598
    %1059 = vmatmul.mubr.bf16.gmra.mrb[0].mxu0 %v597
    %v1060 = vpop.f32.mrb[0].mxu0
    %v1061 = vadd.f32 %v1018, %v1060
    %v1062 = vpop.f32.mrb[0].mxu0
    %v1063 = vadd.f32 %v1020, %v1062
    %v1064 = vpop.f32.mrb[0].mxu0
    %v1065 = vadd.f32 %v1022, %v1064
    %v1066 = vpop.f32.mrb[0].mxu0
    %v1067 = vadd.f32 %v1024, %v1066
    %1068 = vdwg.mxu0
    %1069 = vmatprep.subr.bf16.mxu0 %v604
    %1070 = vmatpush1.bf16.msra.mxu0 %v603
    %1071 = vmatprep.subr.bf16.mxu0 %v612
    %1072 = vmatpush1.bf16.msra.mxu0 %v611
    %1073 = vmatprep.subr.bf16.mxu0 %v620
    %1074 = vmatpush1.bf16.msra.mxu0 %v619
    %1075 = vmatprep.subr.bf16.mxu0 %v628
    %1076 = vmatpush1.bf16.msra.mxu0 %v627
    %1077 = vmatprep.subr.bf16.mxu0 %v636
    %1078 = vmatpush1.bf16.msra.mxu0 %v635
    %1079 = vmatprep.subr.bf16.mxu0 %v644
    %1080 = vmatpush1.bf16.msra.mxu0 %v643
    %1081 = vmatprep.subr.bf16.mxu0 %v652
    %1082 = vmatpush1.bf16.msra.mxu0 %v651
    %1083 = vmatprep.subr.bf16.mxu0 %v660
    %1084 = vmatpush1.bf16.msra.mxu0 %v659
    %1085 = vmatprep.subr.bf16.mxu0 %v668
    %1086 = vmatpush1.bf16.msra.mxu0 %v667
    %1087 = vmatprep.subr.bf16.mxu0 %v676
    %1088 = vmatpush1.bf16.msra.mxu0 %v675
    %1089 = vmatprep.subr.bf16.mxu0 %v684
    %1090 = vmatpush1.bf16.msra.mxu0 %v683
    %1091 = vmatprep.subr.bf16.mxu0 %v692
    %1092 = vmatpush1.bf16.msra.mxu0 %v691
    %1093 = vmatprep.subr.bf16.mxu0 %v700
    %1094 = vmatpush1.bf16.msra.mxu0 %v699
    %1095 = vmatprep.subr.bf16.mxu0 %v708
    %1096 = vmatpush1.bf16.msra.mxu0 %v707
    %1097 = vmatprep.subr.bf16.mxu0 %v716
    %1098 = vmatpush1.bf16.msra.mxu0 %v715
    %1099 = vmatprep.subr.bf16.mxu0 %v724
    %1100 = vmatpush1.bf16.msra.mxu0 %v723
    %1101 = vmatprep.mubr.bf16.mxu0 %v596
    %1102 = vmatmul.mubr.bf16.gmra.mrb[0].mxu0 %v595
    %v1103 = vpop.f32.mrb[0].mxu0
    %v1104 = vadd.f32 %v876, %v1103
    %v1105 = vpop.f32.mrb[0].mxu0
    %v1106 = vadd.f32 %v880, %v1105
    %v1107 = vpop.f32.mrb[0].mxu0
    %v1108 = vadd.f32 %v876, %v1107
    %v1109 = vpop.f32.mrb[0].mxu0
    %v1110 = vadd.f32 %v880, %v1109
    %1111 = vdwg.mxu0
    %1112 = vmatprep.subr.bf16.mxu0 %v732
    %1113 = vmatpush1.bf16.msra.mxu0 %v731
    %1114 = vmatprep.subr.bf16.mxu0 %v740
    %1115 = vmatpush1.bf16.msra.mxu0 %v739
    %1116 = vmatprep.subr.bf16.mxu0 %v748
    %1117 = vmatpush1.bf16.msra.mxu0 %v747
    %1118 = vmatprep.subr.bf16.mxu0 %v756
    %1119 = vmatpush1.bf16.msra.mxu0 %v755
    %1120 = vmatprep.subr.bf16.mxu0 %v764
    %1121 = vmatpush1.bf16.msra.mxu0 %v763
    %1122 = vmatprep.subr.bf16.mxu0 %v772
    %1123 = vmatpush1.bf16.msra.mxu0 %v771
    %1124 = vmatprep.subr.bf16.mxu0 %v780
    %1125 = vmatpush1.bf16.msra.mxu0 %v779
    %1126 = vmatprep.subr.bf16.mxu0 %v788
    %1127 = vmatpush1.bf16.msra.mxu0 %v787
    %1128 = vmatprep.subr.bf16.mxu0 %v796
    %1129 = vmatpush1.bf16.msra.mxu0 %v795
    %1130 = vmatprep.subr.bf16.mxu0 %v804
    %1131 = vmatpush1.bf16.msra.mxu0 %v803
    %1132 = vmatprep.subr.bf16.mxu0 %v812
    %1133 = vmatpush1.bf16.msra.mxu0 %v811
    %1134 = vmatprep.subr.bf16.mxu0 %v820
    %1135 = vmatpush1.bf16.msra.mxu0 %v819
    %1136 = vmatprep.subr.bf16.mxu0 %v828
    %1137 = vmatpush1.bf16.msra.mxu0 %v827
    %1138 = vmatprep.subr.bf16.mxu0 %v836
    %1139 = vmatpush1.bf16.msra.mxu0 %v835
    %1140 = vmatprep.subr.bf16.mxu0 %v844
    %1141 = vmatpush1.bf16.msra.mxu0 %v843
    %1142 = vmatprep.subr.bf16.mxu0 %v852
    %1143 = vmatpush1.bf16.msra.mxu0 %v851
    %1144 = vmatprep.mubr.bf16.mxu0 %v598
    %1145 = vmatmul.mubr.bf16.gmra.mrb[0].mxu0 %v597
    %v1146 = vpop.f32.mrb[0].mxu0
    %v1147 = vadd.f32 %v1104, %v1146
    %v1148 = vpop.f32.mrb[0].mxu0
    %v1149 = vadd.f32 %v1106, %v1148
    %v1150 = vpop.f32.mrb[0].mxu0
    %v1151 = vadd.f32 %v1108, %v1150
    %v1152 = vpop.f32.mrb[0].mxu0
    %v1153 = vadd.f32 %v1110, %v1152
    %1154 = vdwg.mxu0
    %1155 = vmatprep.subr.bf16.mxu0 %v606
    %1156 = vmatpush1.bf16.msra.mxu0 %v605
    %1157 = vmatprep.subr.bf16.mxu0 %v614
    %1158 = vmatpush1.bf16.msra.mxu0 %v613
    %1159 = vmatprep.subr.bf16.mxu0 %v622
    %1160 = vmatpush1.bf16.msra.mxu0 %v621
    %1161 = vmatprep.subr.bf16.mxu0 %v630
    %1162 = vmatpush1.bf16.msra.mxu0 %v629
    %1163 = vmatprep.subr.bf16.mxu0 %v638
    %1164 = vmatpush1.bf16.msra.mxu0 %v637
    %1165 = vmatprep.subr.bf16.mxu0 %v646
    %1166 = vmatpush1.bf16.msra.mxu0 %v645
    %1167 = vmatprep.subr.bf16.mxu0 %v654
    %1168 = vmatpush1.bf16.msra.mxu0 %v653
    %1169 = vmatprep.subr.bf16.mxu0 %v662
    %1170 = vmatpush1.bf16.msra.mxu0 %v661
    %1171 = vmatprep.subr.bf16.mxu0 %v670
    %1172 = vmatpush1.bf16.msra.mxu0 %v669
    %1173 = vmatprep.subr.bf16.mxu0 %v678
    %1174 = vmatpush1.bf16.msra.mxu0 %v677
    %1175 = vmatprep.subr.bf16.mxu0 %v686
    %1176 = vmatpush1.bf16.msra.mxu0 %v685
    %1177 = vmatprep.subr.bf16.mxu0 %v694
    %1178 = vmatpush1.bf16.msra.mxu0 %v693
    %1179 = vmatprep.subr.bf16.mxu0 %v702
    %1180 = vmatpush1.bf16.msra.mxu0 %v701
    %1181 = vmatprep.subr.bf16.mxu0 %v710
    %1182 = vmatpush1.bf16.msra.mxu0 %v709
    %1183 = vmatprep.subr.bf16.mxu0 %v718
    %1184 = vmatpush1.bf16.msra.mxu0 %v717
    %1185 = vmatprep.subr.bf16.mxu0 %v726
    %1186 = vmatpush1.bf16.msra.mxu0 %v725
    %1187 = vmatprep.mubr.bf16.mxu0 %v596
    %1188 = vmatmul.mubr.bf16.gmra.mrb[0].mxu0 %v595
    %v1189 = vpop.f32.mrb[0].mxu0
    %v1190 = vadd.f32 %v884, %v1189
    %v1191 = vpop.f32.mrb[0].mxu0
    %v1192 = vadd.f32 %v888, %v1191
    %v1193 = vpop.f32.mrb[0].mxu0
    %v1194 = vadd.f32 %v884, %v1193
    %v1195 = vpop.f32.mrb[0].mxu0
    %v1196 = vadd.f32 %v888, %v1195
    %1197 = vdwg.mxu0
    %1198 = vmatprep.subr.bf16.mxu0 %v734
    %1199 = vmatpush1.bf16.msra.mxu0 %v733
    %1200 = vmatprep.subr.bf16.mxu0 %v742
    %1201 = vmatpush1.bf16.msra.mxu0 %v741
    %1202 = vmatprep.subr.bf16.mxu0 %v750
    %1203 = vmatpush1.bf16.msra.mxu0 %v749
    %1204 = vmatprep.subr.bf16.mxu0 %v758
    %1205 = vmatpush1.bf16.msra.mxu0 %v757
    %1206 = vmatprep.subr.bf16.mxu0 %v766
    %1207 = vmatpush1.bf16.msra.mxu0 %v765
    %1208 = vmatprep.subr.bf16.mxu0 %v774
    %1209 = vmatpush1.bf16.msra.mxu0 %v773
    %1210 = vmatprep.subr.bf16.mxu0 %v782
    %1211 = vmatpush1.bf16.msra.mxu0 %v781
    %1212 = vmatprep.subr.bf16.mxu0 %v790
    %1213 = vmatpush1.bf16.msra.mxu0 %v789
    %1214 = vmatprep.subr.bf16.mxu0 %v798
    %1215 = vmatpush1.bf16.msra.mxu0 %v797
    %1216 = vmatprep.subr.bf16.mxu0 %v806
    %1217 = vmatpush1.bf16.msra.mxu0 %v805
    %1218 = vmatprep.subr.bf16.mxu0 %v814
    %1219 = vmatpush1.bf16.msra.mxu0 %v813
    %1220 = vmatprep.subr.bf16.mxu0 %v822
    %1221 = vmatpush1.bf16.msra.mxu0 %v821
    %1222 = vmatprep.subr.bf16.mxu0 %v830
    %1223 = vmatpush1.bf16.msra.mxu0 %v829
    %1224 = vmatprep.subr.bf16.mxu0 %v838
    %1225 = vmatpush1.bf16.msra.mxu0 %v837
    %1226 = vmatprep.subr.bf16.mxu0 %v846
    %1227 = vmatpush1.bf16.msra.mxu0 %v845
    %1228 = vmatprep.subr.bf16.mxu0 %v854
    %1229 = vmatpush1.bf16.msra.mxu0 %v853
    %1230 = vmatprep.mubr.bf16.mxu0 %v598
    %1231 = vmatmul.mubr.bf16.gmra.mrb[0].mxu0 %v597
    %v1232 = vpop.f32.mrb[0].mxu0
    %v1233 = vadd.f32 %v1190, %v1232
    %v1234 = vpop.f32.mrb[0].mxu0
    %v1235 = vadd.f32 %v1192, %v1234
    %v1236 = vpop.f32.mrb[0].mxu0
    %v1237 = vadd.f32 %v1194, %v1236
    %v1238 = vpop.f32.mrb[0].mxu0
    %v1239 = vadd.f32 %v1196, %v1238
    %1240 = vdwg.mxu0
    %vm1241 = vcmp.gt.f32.partialorder %v975, 0.0
    %vm1242 = vcmp.gt.f32.partialorder %v977, 0.0
    %vm1243 = vcmp.gt.f32.partialorder %v1061, 0.0
    %vm1244 = vcmp.gt.f32.partialorder %v1063, 0.0
    %vm1245 = vcmp.gt.f32.partialorder %v1147, 0.0
    %vm1246 = vcmp.gt.f32.partialorder %v1149, 0.0
    %vm1247 = vcmp.gt.f32.partialorder %v1233, 0.0
    %vm1248 = vcmp.gt.f32.partialorder %v1235, 0.0
    %vm1249 = vcmp.gt.f32.partialorder %v979, 0.0
    %vm1250 = vcmp.gt.f32.partialorder %v981, 0.0
    %vm1251 = vcmp.gt.f32.partialorder %v1065, 0.0
    %vm1252 = vcmp.gt.f32.partialorder %v1067, 0.0
    %vm1253 = vcmp.gt.f32.partialorder %v1151, 0.0
    %vm1254 = vcmp.gt.f32.partialorder %v1153, 0.0
    %vm1255 = vcmp.gt.f32.partialorder %v1237, 0.0
    %vm1256 = vcmp.gt.f32.partialorder %v1239, 0.0
    %v1257 = vmul.f32 %v975, 0.2
    %v1258 = vmul.f32 %v977, 0.2
    %v1259 = vmul.f32 %v1061, 0.2
    %v1260 = vmul.f32 %v1063, 0.2
    %v1261 = vmul.f32 %v1147, 0.2
    %v1262 = vmul.f32 %v1149, 0.2
    %v1263 = vmul.f32 %v1233, 0.2
    %v1264 = vmul.f32 %v1235, 0.2
    %v1265 = vmul.f32 %v979, 0.2
    %v1266 = vmul.f32 %v981, 0.2
    %v1267 = vmul.f32 %v1065, 0.2
    %v1268 = vmul.f32 %v1067, 0.2
    %v1269 = vmul.f32 %v1151, 0.2
    %v1270 = vmul.f32 %v1153, 0.2
    %v1271 = vmul.f32 %v1237, 0.2
    %v1272 = vmul.f32 %v1239, 0.2
    %v1273 = vsel %vm1241, %v975, %v1257
    %v1274 = vsel %vm1242, %v977, %v1258
    %v1275 = vsel %vm1243, %v1061, %v1259
    %v1276 = vsel %vm1244, %v1063, %v1260
    %v1277 = vsel %vm1245, %v1147, %v1261
    %v1278 = vsel %vm1246, %v1149, %v1262
    %v1279 = vsel %vm1247, %v1233, %v1263
    %v1280 = vsel %vm1248, %v1235, %v1264
    %v1281 = vsel %vm1249, %v979, %v1265
    %v1282 = vsel %vm1250, %v981, %v1266
    %v1283 = vsel %vm1251, %v1065, %v1267
    %v1284 = vsel %vm1252, %v1067, %v1268
    %v1285 = vsel %vm1253, %v1151, %v1269
    %v1286 = vsel %vm1254, %v1153, %v1270
    %v1287 = vsel %vm1255, %v1237, %v1271
    %v1288 = vsel %vm1256, %v1239, %v1272
    // Predicated region
    $region62: #{tpu_custom_call.1} parent=1 // pred_check
      %p1289 = pneg %p102
    $region63: #{tpu_custom_call.1} parent=1 // pred_check_branch
      %1291 = sbr.rel (%p1289) target = $region65
    $region64: #{tpu_custom_call.1} parent=1 // pred_region
      %s1292 = scalar_lea.sflag [#allocation5], 2
      %s1293 = smul.u32 4, 128
      %s1294 = smul.u32 %s1293, 7
      %s1295 = sshll.u32 %s1294, 4
      %1296 = dma.done %s1292, %s1295
    $region65: #{tpu_custom_call.1} parent=1 // pred_fallthru
      _
    %v1297 = vpack.c.bf16 %v1281, %v1273
    %v1298 = vpack.c.bf16 %v1282, %v1274
    %v1299 = vpack.c.bf16 %v1283, %v1275
    %v1300 = vpack.c.bf16 %v1284, %v1276
    %v1301 = vpack.c.bf16 %v1285, %v1277
    %v1302 = vpack.c.bf16 %v1286, %v1278
    %v1303 = vpack.c.bf16 %v1287, %v1279
    %v1304 = vpack.c.bf16 %v1288, %v1280
    %v1305 = vld [vmem:[#allocation4] sm:$0xff]
    %v1306 = vld [vmem:[#allocation4 + $0x8] sm:$0xff]
    %v1307 = vld [vmem:[#allocation4 + $0x10] sm:$0xff]
    %v1308 = vld [vmem:[#allocation4 + $0x18] sm:$0xff]
    %v1309 = vld [vmem:[#allocation4 + $0x20] sm:$0xff]
    %v1310 = vld [vmem:[#allocation4 + $0x28] sm:$0xff]
    %v1311 = vld [vmem:[#allocation4 + $0x30] sm:$0xff]
    %v1312 = vld [vmem:[#allocation4 + $0x38] sm:$0xff]
    %v1313 = vld [vmem:[#allocation4 + $0x40] sm:$0xff]
    %v1314 = vld [vmem:[#allocation4 + $0x48] sm:$0xff]
    %v1315 = vld [vmem:[#allocation4 + $0x50] sm:$0xff]
    %v1316 = vld [vmem:[#allocation4 + $0x58] sm:$0xff]
    %v1317 = vld [vmem:[#allocation4 + $0x60] sm:$0xff]
    %v1318 = vld [vmem:[#allocation4 + $0x68] sm:$0xff]
    %v1319 = vld [vmem:[#allocation4 + $0x70] sm:$0xff]
    %v1320 = vld [vmem:[#allocation4 + $0x78] sm:$0xff]
    %v1321 = vld [vmem:[#allocation4 + $0x80] sm:$0xff]
    %v1322 = vld [vmem:[#allocation4 + $0x88] sm:$0xff]
    %v1323 = vld [vmem:[#allocation4 + $0x90] sm:$0xff]
    %v1324 = vld [vmem:[#allocation4 + $0x98] sm:$0xff]
    %v1325 = vld [vmem:[#allocation4 + $0xa0] sm:$0xff]
    %v1326 = vld [vmem:[#allocation4 + $0xa8] sm:$0xff]
    %v1327 = vld [vmem:[#allocation4 + $0xb0] sm:$0xff]
    %v1328 = vld [vmem:[#allocation4 + $0xb8] sm:$0xff]
    %v1329 = vld [vmem:[#allocation4 + $0xc0] sm:$0xff]
    %v1330 = vld [vmem:[#allocation4 + $0xc8] sm:$0xff]
    %v1331 = vld [vmem:[#allocation4 + $0xd0] sm:$0xff]
    %v1332 = vld [vmem:[#allocation4 + $0xd8] sm:$0xff]
    %v1333 = vld [vmem:[#allocation4 + $0xe0] sm:$0xff]
    %v1334 = vld [vmem:[#allocation4 + $0xe8] sm:$0xff]
    %v1335 = vld [vmem:[#allocation4 + $0xf0] sm:$0xff]
    %v1336 = vld [vmem:[#allocation4 + $0xf8] sm:$0xff]
    %v1337 = vld [vmem:[#allocation4 + $0x100] sm:$0xff]
    %v1338 = vld [vmem:[#allocation4 + $0x108] sm:$0xff]
    %v1339 = vld [vmem:[#allocation4 + $0x110] sm:$0xff]
    %v1340 = vld [vmem:[#allocation4 + $0x118] sm:$0xff]
    %v1341 = vld [vmem:[#allocation4 + $0x120] sm:$0xff]
    %v1342 = vld [vmem:[#allocation4 + $0x128] sm:$0xff]
    %v1343 = vld [vmem:[#allocation4 + $0x130] sm:$0xff]
    %v1344 = vld [vmem:[#allocation4 + $0x138] sm:$0xff]
    %v1345 = vld [vmem:[#allocation4 + $0x140] sm:$0xff]
    %v1346 = vld [vmem:[#allocation4 + $0x148] sm:$0xff]
    %v1347 = vld [vmem:[#allocation4 + $0x150] sm:$0xff]
    %v1348 = vld [vmem:[#allocation4 + $0x158] sm:$0xff]
    %v1349 = vld [vmem:[#allocation4 + $0x160] sm:$0xff]
    %v1350 = vld [vmem:[#allocation4 + $0x168] sm:$0xff]
    %v1351 = vld [vmem:[#allocation4 + $0x170] sm:$0xff]
    %v1352 = vld [vmem:[#allocation4 + $0x178] sm:$0xff]
    %v1353 = vld [vmem:[#allocation4 + $0x180] sm:$0xff]
    %v1354 = vld [vmem:[#allocation4 + $0x188] sm:$0xff]
    %v1355 = vld [vmem:[#allocation4 + $0x190] sm:$0xff]
    %v1356 = vld [vmem:[#allocation4 + $0x198] sm:$0xff]
    %v1357 = vld [vmem:[#allocation4 + $0x1a0] sm:$0xff]
    %v1358 = vld [vmem:[#allocation4 + $0x1a8] sm:$0xff]
    %v1359 = vld [vmem:[#allocation4 + $0x1b0] sm:$0xff]
    %v1360 = vld [vmem:[#allocation4 + $0x1b8] sm:$0xff]
    %v1361 = vld [vmem:[#allocation4 + $0x1c0] sm:$0xff]
    %v1362 = vld [vmem:[#allocation4 + $0x1c8] sm:$0xff]
    %v1363 = vld [vmem:[#allocation4 + $0x1d0] sm:$0xff]
    %v1364 = vld [vmem:[#allocation4 + $0x1d8] sm:$0xff]
    %v1365 = vld [vmem:[#allocation4 + $0x1e0] sm:$0xff]
    %v1366 = vld [vmem:[#allocation4 + $0x1e8] sm:$0xff]
    %v1367 = vld [vmem:[#allocation4 + $0x1f0] sm:$0xff]
    %v1368 = vld [vmem:[#allocation4 + $0x1f8] sm:$0xff]
    %v1369 = vld [vmem:[#allocation4 + $0x200] sm:$0xff]
    %v1370 = vld [vmem:[#allocation4 + $0x208] sm:$0xff]
    %v1371 = vld [vmem:[#allocation4 + $0x210] sm:$0xff]
    %v1372 = vld [vmem:[#allocation4 + $0x218] sm:$0xff]
    %v1373 = vld [vmem:[#allocation4 + $0x220] sm:$0xff]
    %v1374 = vld [vmem:[#allocation4 + $0x228] sm:$0xff]
    %v1375 = vld [vmem:[#allocation4 + $0x230] sm:$0xff]
    %v1376 = vld [vmem:[#allocation4 + $0x238] sm:$0xff]
    %v1377 = vld [vmem:[#allocation4 + $0x240] sm:$0xff]
    %v1378 = vld [vmem:[#allocation4 + $0x248] sm:$0xff]
    %v1379 = vld [vmem:[#allocation4 + $0x250] sm:$0xff]
    %v1380 = vld [vmem:[#allocation4 + $0x258] sm:$0xff]
    %v1381 = vld [vmem:[#allocation4 + $0x260] sm:$0xff]
    %v1382 = vld [vmem:[#allocation4 + $0x268] sm:$0xff]
    %v1383 = vld [vmem:[#allocation4 + $0x270] sm:$0xff]
    %v1384 = vld [vmem:[#allocation4 + $0x278] sm:$0xff]
    %v1385 = vld [vmem:[#allocation4 + $0x280] sm:$0xff]
    %v1386 = vld [vmem:[#allocation4 + $0x288] sm:$0xff]
    %v1387 = vld [vmem:[#allocation4 + $0x290] sm:$0xff]
    %v1388 = vld [vmem:[#allocation4 + $0x298] sm:$0xff]
    %v1389 = vld [vmem:[#allocation4 + $0x2a0] sm:$0xff]
    %v1390 = vld [vmem:[#allocation4 + $0x2a8] sm:$0xff]
    %v1391 = vld [vmem:[#allocation4 + $0x2b0] sm:$0xff]
    %v1392 = vld [vmem:[#allocation4 + $0x2b8] sm:$0xff]
    %v1393 = vld [vmem:[#allocation4 + $0x2c0] sm:$0xff]
    %v1394 = vld [vmem:[#allocation4 + $0x2c8] sm:$0xff]
    %v1395 = vld [vmem:[#allocation4 + $0x2d0] sm:$0xff]
    %v1396 = vld [vmem:[#allocation4 + $0x2d8] sm:$0xff]
    %v1397 = vld [vmem:[#allocation4 + $0x2e0] sm:$0xff]
    %v1398 = vld [vmem:[#allocation4 + $0x2e8] sm:$0xff]
    %v1399 = vld [vmem:[#allocation4 + $0x2f0] sm:$0xff]
    %v1400 = vld [vmem:[#allocation4 + $0x2f8] sm:$0xff]
    %v1401 = vld [vmem:[#allocation4 + $0x300] sm:$0xff]
    %v1402 = vld [vmem:[#allocation4 + $0x308] sm:$0xff]
    %v1403 = vld [vmem:[#allocation4 + $0x310] sm:$0xff]
    %v1404 = vld [vmem:[#allocation4 + $0x318] sm:$0xff]
    %v1405 = vld [vmem:[#allocation4 + $0x320] sm:$0xff]
    %v1406 = vld [vmem:[#allocation4 + $0x328] sm:$0xff]
    %v1407 = vld [vmem:[#allocation4 + $0x330] sm:$0xff]
    %v1408 = vld [vmem:[#allocation4 + $0x338] sm:$0xff]
    %v1409 = vld [vmem:[#allocation4 + $0x340] sm:$0xff]
    %v1410 = vld [vmem:[#allocation4 + $0x348] sm:$0xff]
    %v1411 = vld [vmem:[#allocation4 + $0x350] sm:$0xff]
    %v1412 = vld [vmem:[#allocation4 + $0x358] sm:$0xff]
    %v1413 = vld [vmem:[#allocation4 + $0x360] sm:$0xff]
    %v1414 = vld [vmem:[#allocation4 + $0x368] sm:$0xff]
    %v1415 = vld [vmem:[#allocation4 + $0x370] sm:$0xff]
    %v1416 = vld [vmem:[#allocation4 + $0x378] sm:$0xff]
    %v1417 = vld [vmem:[#allocation4 + $0x380] sm:$0xff]
    %v1418 = vld [vmem:[#allocation4 + $0x388] sm:$0xff]
    %v1419 = vld [vmem:[#allocation4 + $0x390] sm:$0xff]
    %v1420 = vld [vmem:[#allocation4 + $0x398] sm:$0xff]
    %v1421 = vld [vmem:[#allocation4 + $0x3a0] sm:$0xff]
    %v1422 = vld [vmem:[#allocation4 + $0x3a8] sm:$0xff]
    %v1423 = vld [vmem:[#allocation4 + $0x3b0] sm:$0xff]
    %v1424 = vld [vmem:[#allocation4 + $0x3b8] sm:$0xff]
    %v1425 = vld [vmem:[#allocation4 + $0x3c0] sm:$0xff]
    %v1426 = vld [vmem:[#allocation4 + $0x3c8] sm:$0xff]
    %v1427 = vld [vmem:[#allocation4 + $0x3d0] sm:$0xff]
    %v1428 = vld [vmem:[#allocation4 + $0x3d8] sm:$0xff]
    %v1429 = vld [vmem:[#allocation4 + $0x3e0] sm:$0xff]
    %v1430 = vld [vmem:[#allocation4 + $0x3e8] sm:$0xff]
    %v1431 = vld [vmem:[#allocation4 + $0x3f0] sm:$0xff]
    %v1432 = vld [vmem:[#allocation4 + $0x3f8] sm:$0xff]
    %v1433 = vld [vmem:[#allocation4 + $0x400] sm:$0xff]
    %v1434 = vld [vmem:[#allocation4 + $0x408] sm:$0xff]
    %v1435 = vld [vmem:[#allocation4 + $0x410] sm:$0xff]
    %v1436 = vld [vmem:[#allocation4 + $0x418] sm:$0xff]
    %v1437 = vld [vmem:[#allocation4 + $0x420] sm:$0xff]
    %v1438 = vld [vmem:[#allocation4 + $0x428] sm:$0xff]
    %v1439 = vld [vmem:[#allocation4 + $0x430] sm:$0xff]
    %v1440 = vld [vmem:[#allocation4 + $0x438] sm:$0xff]
    %v1441 = vld [vmem:[#allocation4 + $0x440] sm:$0xff]
    %v1442 = vld [vmem:[#allocation4 + $0x448] sm:$0xff]
    %v1443 = vld [vmem:[#allocation4 + $0x450] sm:$0xff]
    %v1444 = vld [vmem:[#allocation4 + $0x458] sm:$0xff]
    %v1445 = vld [vmem:[#allocation4 + $0x460] sm:$0xff]
    %v1446 = vld [vmem:[#allocation4 + $0x468] sm:$0xff]
    %v1447 = vld [vmem:[#allocation4 + $0x470] sm:$0xff]
    %v1448 = vld [vmem:[#allocation4 + $0x478] sm:$0xff]
    %v1449 = vld [vmem:[#allocation4 + $0x480] sm:$0xff]
    %v1450 = vld [vmem:[#allocation4 + $0x488] sm:$0xff]
    %v1451 = vld [vmem:[#allocation4 + $0x490] sm:$0xff]
    %v1452 = vld [vmem:[#allocation4 + $0x498] sm:$0xff]
    %v1453 = vld [vmem:[#allocation4 + $0x4a0] sm:$0xff]
    %v1454 = vld [vmem:[#allocation4 + $0x4a8] sm:$0xff]
    %v1455 = vld [vmem:[#allocation4 + $0x4b0] sm:$0xff]
    %v1456 = vld [vmem:[#allocation4 + $0x4b8] sm:$0xff]
    %v1457 = vld [vmem:[#allocation4 + $0x4c0] sm:$0xff]
    %v1458 = vld [vmem:[#allocation4 + $0x4c8] sm:$0xff]
    %v1459 = vld [vmem:[#allocation4 + $0x4d0] sm:$0xff]
    %v1460 = vld [vmem:[#allocation4 + $0x4d8] sm:$0xff]
    %v1461 = vld [vmem:[#allocation4 + $0x4e0] sm:$0xff]
    %v1462 = vld [vmem:[#allocation4 + $0x4e8] sm:$0xff]
    %v1463 = vld [vmem:[#allocation4 + $0x4f0] sm:$0xff]
    %v1464 = vld [vmem:[#allocation4 + $0x4f8] sm:$0xff]
    %v1465 = vld [vmem:[#allocation4 + $0x500] sm:$0xff]
    %v1466 = vld [vmem:[#allocation4 + $0x508] sm:$0xff]
    %v1467 = vld [vmem:[#allocation4 + $0x510] sm:$0xff]
    %v1468 = vld [vmem:[#allocation4 + $0x518] sm:$0xff]
    %v1469 = vld [vmem:[#allocation4 + $0x520] sm:$0xff]
    %v1470 = vld [vmem:[#allocation4 + $0x528] sm:$0xff]
    %v1471 = vld [vmem:[#allocation4 + $0x530] sm:$0xff]
    %v1472 = vld [vmem:[#allocation4 + $0x538] sm:$0xff]
    %v1473 = vld [vmem:[#allocation4 + $0x540] sm:$0xff]
    %v1474 = vld [vmem:[#allocation4 + $0x548] sm:$0xff]
    %v1475 = vld [vmem:[#allocation4 + $0x550] sm:$0xff]
    %v1476 = vld [vmem:[#allocation4 + $0x558] sm:$0xff]
    %v1477 = vld [vmem:[#allocation4 + $0x560] sm:$0xff]
    %v1478 = vld [vmem:[#allocation4 + $0x568] sm:$0xff]
    %v1479 = vld [vmem:[#allocation4 + $0x570] sm:$0xff]
    %v1480 = vld [vmem:[#allocation4 + $0x578] sm:$0xff]
    %v1481 = vld [vmem:[#allocation4 + $0x580] sm:$0xff]
    %v1482 = vld [vmem:[#allocation4 + $0x588] sm:$0xff]
    %v1483 = vld [vmem:[#allocation4 + $0x590] sm:$0xff]
    %v1484 = vld [vmem:[#allocation4 + $0x598] sm:$0xff]
    %v1485 = vld [vmem:[#allocation4 + $0x5a0] sm:$0xff]
    %v1486 = vld [vmem:[#allocation4 + $0x5a8] sm:$0xff]
    %v1487 = vld [vmem:[#allocation4 + $0x5b0] sm:$0xff]
    %v1488 = vld [vmem:[#allocation4 + $0x5b8] sm:$0xff]
    %v1489 = vld [vmem:[#allocation4 + $0x5c0] sm:$0xff]
    %v1490 = vld [vmem:[#allocation4 + $0x5c8] sm:$0xff]
    %v1491 = vld [vmem:[#allocation4 + $0x5d0] sm:$0xff]
    %v1492 = vld [vmem:[#allocation4 + $0x5d8] sm:$0xff]
    %v1493 = vld [vmem:[#allocation4 + $0x5e0] sm:$0xff]
    %v1494 = vld [vmem:[#allocation4 + $0x5e8] sm:$0xff]
    %v1495 = vld [vmem:[#allocation4 + $0x5f0] sm:$0xff]
    %v1496 = vld [vmem:[#allocation4 + $0x5f8] sm:$0xff]
    %v1497 = vld [vmem:[#allocation4 + $0x600] sm:$0xff]
    %v1498 = vld [vmem:[#allocation4 + $0x608] sm:$0xff]
    %v1499 = vld [vmem:[#allocation4 + $0x610] sm:$0xff]
    %v1500 = vld [vmem:[#allocation4 + $0x618] sm:$0xff]
    %v1501 = vld [vmem:[#allocation4 + $0x620] sm:$0xff]
    %v1502 = vld [vmem:[#allocation4 + $0x628] sm:$0xff]
    %v1503 = vld [vmem:[#allocation4 + $0x630] sm:$0xff]
    %v1504 = vld [vmem:[#allocation4 + $0x638] sm:$0xff]
    %v1505 = vld [vmem:[#allocation4 + $0x640] sm:$0xff]
    %v1506 = vld [vmem:[#allocation4 + $0x648] sm:$0xff]
    %v1507 = vld [vmem:[#allocation4 + $0x650] sm:$0xff]
    %v1508 = vld [vmem:[#allocation4 + $0x658] sm:$0xff]
    %v1509 = vld [vmem:[#allocation4 + $0x660] sm:$0xff]
    %v1510 = vld [vmem:[#allocation4 + $0x668] sm:$0xff]
    %v1511 = vld [vmem:[#allocation4 + $0x670] sm:$0xff]
    %v1512 = vld [vmem:[#allocation4 + $0x678] sm:$0xff]
    %v1513 = vld [vmem:[#allocation4 + $0x680] sm:$0xff]
    %v1514 = vld [vmem:[#allocation4 + $0x688] sm:$0xff]
    %v1515 = vld [vmem:[#allocation4 + $0x690] sm:$0xff]
    %v1516 = vld [vmem:[#allocation4 + $0x698] sm:$0xff]
    %v1517 = vld [vmem:[#allocation4 + $0x6a0] sm:$0xff]
    %v1518 = vld [vmem:[#allocation4 + $0x6a8] sm:$0xff]
    %v1519 = vld [vmem:[#allocation4 + $0x6b0] sm:$0xff]
    %v1520 = vld [vmem:[#allocation4 + $0x6b8] sm:$0xff]
    %v1521 = vld [vmem:[#allocation4 + $0x6c0] sm:$0xff]
    %v1522 = vld [vmem:[#allocation4 + $0x6c8] sm:$0xff]
    %v1523 = vld [vmem:[#allocation4 + $0x6d0] sm:$0xff]
    %v1524 = vld [vmem:[#allocation4 + $0x6d8] sm:$0xff]
    %v1525 = vld [vmem:[#allocation4 + $0x6e0] sm:$0xff]
    %v1526 = vld [vmem:[#allocation4 + $0x6e8] sm:$0xff]
    %v1527 = vld [vmem:[#allocation4 + $0x6f0] sm:$0xff]
    %v1528 = vld [vmem:[#allocation4 + $0x6f8] sm:$0xff]
    %v1529 = vld [vmem:[#allocation4 + $0x700] sm:$0xff]
    %v1530 = vld [vmem:[#allocation4 + $0x708] sm:$0xff]
    %v1531 = vld [vmem:[#allocation4 + $0x710] sm:$0xff]
    %v1532 = vld [vmem:[#allocation4 + $0x718] sm:$0xff]
    %v1533 = vld [vmem:[#allocation4 + $0x720] sm:$0xff]
    %v1534 = vld [vmem:[#allocation4 + $0x728] sm:$0xff]
    %v1535 = vld [vmem:[#allocation4 + $0x730] sm:$0xff]
    %v1536 = vld [vmem:[#allocation4 + $0x738] sm:$0xff]
    %v1537 = vld [vmem:[#allocation4 + $0x740] sm:$0xff]
    %v1538 = vld [vmem:[#allocation4 + $0x748] sm:$0xff]
    %v1539 = vld [vmem:[#allocation4 + $0x750] sm:$0xff]
    %v1540 = vld [vmem:[#allocation4 + $0x758] sm:$0xff]
    %v1541 = vld [vmem:[#allocation4 + $0x760] sm:$0xff]
    %v1542 = vld [vmem:[#allocation4 + $0x768] sm:$0xff]
    %v1543 = vld [vmem:[#allocation4 + $0x770] sm:$0xff]
    %v1544 = vld [vmem:[#allocation4 + $0x778] sm:$0xff]
    %v1545 = vld [vmem:[#allocation4 + $0x780] sm:$0xff]
    %v1546 = vld [vmem:[#allocation4 + $0x788] sm:$0xff]
    %v1547 = vld [vmem:[#allocation4 + $0x790] sm:$0xff]
    %v1548 = vld [vmem:[#allocation4 + $0x798] sm:$0xff]
    %v1549 = vld [vmem:[#allocation4 + $0x7a0] sm:$0xff]
    %v1550 = vld [vmem:[#allocation4 + $0x7a8] sm:$0xff]
    %v1551 = vld [vmem:[#allocation4 + $0x7b0] sm:$0xff]
    %v1552 = vld [vmem:[#allocation4 + $0x7b8] sm:$0xff]
    %v1553 = vld [vmem:[#allocation4 + $0x7c0] sm:$0xff]
    %v1554 = vld [vmem:[#allocation4 + $0x7c8] sm:$0xff]
    %v1555 = vld [vmem:[#allocation4 + $0x7d0] sm:$0xff]
    %v1556 = vld [vmem:[#allocation4 + $0x7d8] sm:$0xff]
    %v1557 = vld [vmem:[#allocation4 + $0x7e0] sm:$0xff]
    %v1558 = vld [vmem:[#allocation4 + $0x7e8] sm:$0xff]
    %v1559 = vld [vmem:[#allocation4 + $0x7f0] sm:$0xff]
    %v1560 = vld [vmem:[#allocation4 + $0x7f8] sm:$0xff]
    %v1561 = vld [vmem:[#allocation4 + $0x800] sm:$0xff]
    %v1562 = vld [vmem:[#allocation4 + $0x808] sm:$0xff]
    %v1563 = vld [vmem:[#allocation4 + $0x810] sm:$0xff]
    %v1564 = vld [vmem:[#allocation4 + $0x818] sm:$0xff]
    %v1565 = vld [vmem:[#allocation4 + $0x820] sm:$0xff]
    %v1566 = vld [vmem:[#allocation4 + $0x828] sm:$0xff]
    %v1567 = vld [vmem:[#allocation4 + $0x830] sm:$0xff]
    %v1568 = vld [vmem:[#allocation4 + $0x838] sm:$0xff]
    %v1569 = vld [vmem:[#allocation4 + $0x840] sm:$0xff]
    %v1570 = vld [vmem:[#allocation4 + $0x848] sm:$0xff]
    %v1571 = vld [vmem:[#allocation4 + $0x850] sm:$0xff]
    %v1572 = vld [vmem:[#allocation4 + $0x858] sm:$0xff]
    %v1573 = vld [vmem:[#allocation4 + $0x860] sm:$0xff]
    %v1574 = vld [vmem:[#allocation4 + $0x868] sm:$0xff]
    %v1575 = vld [vmem:[#allocation4 + $0x870] sm:$0xff]
    %v1576 = vld [vmem:[#allocation4 + $0x878] sm:$0xff]
    %v1577 = vld [vmem:[#allocation4 + $0x880] sm:$0xff]
    %v1578 = vld [vmem:[#allocation4 + $0x888] sm:$0xff]
    %v1579 = vld [vmem:[#allocation4 + $0x890] sm:$0xff]
    %v1580 = vld [vmem:[#allocation4 + $0x898] sm:$0xff]
    %v1581 = vld [vmem:[#allocation4 + $0x8a0] sm:$0xff]
    %v1582 = vld [vmem:[#allocation4 + $0x8a8] sm:$0xff]
    %v1583 = vld [vmem:[#allocation4 + $0x8b0] sm:$0xff]
    %v1584 = vld [vmem:[#allocation4 + $0x8b8] sm:$0xff]
    %v1585 = vld [vmem:[#allocation4 + $0x8c0] sm:$0xff]
    %v1586 = vld [vmem:[#allocation4 + $0x8c8] sm:$0xff]
    %v1587 = vld [vmem:[#allocation4 + $0x8d0] sm:$0xff]
    %v1588 = vld [vmem:[#allocation4 + $0x8d8] sm:$0xff]
    %v1589 = vld [vmem:[#allocation4 + $0x8e0] sm:$0xff]
    %v1590 = vld [vmem:[#allocation4 + $0x8e8] sm:$0xff]
    %v1591 = vld [vmem:[#allocation4 + $0x8f0] sm:$0xff]
    %v1592 = vld [vmem:[#allocation4 + $0x8f8] sm:$0xff]
    %v1593 = vld [vmem:[#allocation4 + $0x900] sm:$0xff]
    %v1594 = vld [vmem:[#allocation4 + $0x908] sm:$0xff]
    %v1595 = vld [vmem:[#allocation4 + $0x910] sm:$0xff]
    %v1596 = vld [vmem:[#allocation4 + $0x918] sm:$0xff]
    %v1597 = vld [vmem:[#allocation4 + $0x920] sm:$0xff]
    %v1598 = vld [vmem:[#allocation4 + $0x928] sm:$0xff]
    %v1599 = vld [vmem:[#allocation4 + $0x930] sm:$0xff]
    %v1600 = vld [vmem:[#allocation4 + $0x938] sm:$0xff]
    %v1601 = vld [vmem:[#allocation4 + $0x940] sm:$0xff]
    %v1602 = vld [vmem:[#allocation4 + $0x948] sm:$0xff]
    %v1603 = vld [vmem:[#allocation4 + $0x950] sm:$0xff]
    %v1604 = vld [vmem:[#allocation4 + $0x958] sm:$0xff]
    %v1605 = vld [vmem:[#allocation4 + $0x960] sm:$0xff]
    %v1606 = vld [vmem:[#allocation4 + $0x968] sm:$0xff]
    %v1607 = vld [vmem:[#allocation4 + $0x970] sm:$0xff]
    %v1608 = vld [vmem:[#allocation4 + $0x978] sm:$0xff]
    %v1609 = vld [vmem:[#allocation4 + $0x980] sm:$0xff]
    %v1610 = vld [vmem:[#allocation4 + $0x988] sm:$0xff]
    %v1611 = vld [vmem:[#allocation4 + $0x990] sm:$0xff]
    %v1612 = vld [vmem:[#allocation4 + $0x998] sm:$0xff]
    %v1613 = vld [vmem:[#allocation4 + $0x9a0] sm:$0xff]
    %v1614 = vld [vmem:[#allocation4 + $0x9a8] sm:$0xff]
    %v1615 = vld [vmem:[#allocation4 + $0x9b0] sm:$0xff]
    %v1616 = vld [vmem:[#allocation4 + $0x9b8] sm:$0xff]
    %v1617 = vld [vmem:[#allocation4 + $0x9c0] sm:$0xff]
    %v1618 = vld [vmem:[#allocation4 + $0x9c8] sm:$0xff]
    %v1619 = vld [vmem:[#allocation4 + $0x9d0] sm:$0xff]
    %v1620 = vld [vmem:[#allocation4 + $0x9d8] sm:$0xff]
    %v1621 = vld [vmem:[#allocation4 + $0x9e0] sm:$0xff]
    %v1622 = vld [vmem:[#allocation4 + $0x9e8] sm:$0xff]
    %v1623 = vld [vmem:[#allocation4 + $0x9f0] sm:$0xff]
    %v1624 = vld [vmem:[#allocation4 + $0x9f8] sm:$0xff]
    %v1625 = vld [vmem:[#allocation4 + $0xa00] sm:$0xff]
    %v1626 = vld [vmem:[#allocation4 + $0xa08] sm:$0xff]
    %v1627 = vld [vmem:[#allocation4 + $0xa10] sm:$0xff]
    %v1628 = vld [vmem:[#allocation4 + $0xa18] sm:$0xff]
    %v1629 = vld [vmem:[#allocation4 + $0xa20] sm:$0xff]
    %v1630 = vld [vmem:[#allocation4 + $0xa28] sm:$0xff]
    %v1631 = vld [vmem:[#allocation4 + $0xa30] sm:$0xff]
    %v1632 = vld [vmem:[#allocation4 + $0xa38] sm:$0xff]
    %v1633 = vld [vmem:[#allocation4 + $0xa40] sm:$0xff]
    %v1634 = vld [vmem:[#allocation4 + $0xa48] sm:$0xff]
    %v1635 = vld [vmem:[#allocation4 + $0xa50] sm:$0xff]
    %v1636 = vld [vmem:[#allocation4 + $0xa58] sm:$0xff]
    %v1637 = vld [vmem:[#allocation4 + $0xa60] sm:$0xff]
    %v1638 = vld [vmem:[#allocation4 + $0xa68] sm:$0xff]
    %v1639 = vld [vmem:[#allocation4 + $0xa70] sm:$0xff]
    %v1640 = vld [vmem:[#allocation4 + $0xa78] sm:$0xff]
    %v1641 = vld [vmem:[#allocation4 + $0xa80] sm:$0xff]
    %v1642 = vld [vmem:[#allocation4 + $0xa88] sm:$0xff]
    %v1643 = vld [vmem:[#allocation4 + $0xa90] sm:$0xff]
    %v1644 = vld [vmem:[#allocation4 + $0xa98] sm:$0xff]
    %v1645 = vld [vmem:[#allocation4 + $0xaa0] sm:$0xff]
    %v1646 = vld [vmem:[#allocation4 + $0xaa8] sm:$0xff]
    %v1647 = vld [vmem:[#allocation4 + $0xab0] sm:$0xff]
    %v1648 = vld [vmem:[#allocation4 + $0xab8] sm:$0xff]
    %v1649 = vld [vmem:[#allocation4 + $0xac0] sm:$0xff]
    %v1650 = vld [vmem:[#allocation4 + $0xac8] sm:$0xff]
    %v1651 = vld [vmem:[#allocation4 + $0xad0] sm:$0xff]
    %v1652 = vld [vmem:[#allocation4 + $0xad8] sm:$0xff]
    %v1653 = vld [vmem:[#allocation4 + $0xae0] sm:$0xff]
    %v1654 = vld [vmem:[#allocation4 + $0xae8] sm:$0xff]
    %v1655 = vld [vmem:[#allocation4 + $0xaf0] sm:$0xff]
    %v1656 = vld [vmem:[#allocation4 + $0xaf8] sm:$0xff]
    %v1657 = vld [vmem:[#allocation4 + $0xb00] sm:$0xff]
    %v1658 = vld [vmem:[#allocation4 + $0xb08] sm:$0xff]
    %v1659 = vld [vmem:[#allocation4 + $0xb10] sm:$0xff]
    %v1660 = vld [vmem:[#allocation4 + $0xb18] sm:$0xff]
    %v1661 = vld [vmem:[#allocation4 + $0xb20] sm:$0xff]
    %v1662 = vld [vmem:[#allocation4 + $0xb28] sm:$0xff]
    %v1663 = vld [vmem:[#allocation4 + $0xb30] sm:$0xff]
    %v1664 = vld [vmem:[#allocation4 + $0xb38] sm:$0xff]
    %v1665 = vld [vmem:[#allocation4 + $0xb40] sm:$0xff]
    %v1666 = vld [vmem:[#allocation4 + $0xb48] sm:$0xff]
    %v1667 = vld [vmem:[#allocation4 + $0xb50] sm:$0xff]
    %v1668 = vld [vmem:[#allocation4 + $0xb58] sm:$0xff]
    %v1669 = vld [vmem:[#allocation4 + $0xb60] sm:$0xff]
    %v1670 = vld [vmem:[#allocation4 + $0xb68] sm:$0xff]
    %v1671 = vld [vmem:[#allocation4 + $0xb70] sm:$0xff]
    %v1672 = vld [vmem:[#allocation4 + $0xb78] sm:$0xff]
    %v1673 = vld [vmem:[#allocation4 + $0xb80] sm:$0xff]
    %v1674 = vld [vmem:[#allocation4 + $0xb88] sm:$0xff]
    %v1675 = vld [vmem:[#allocation4 + $0xb90] sm:$0xff]
    %v1676 = vld [vmem:[#allocation4 + $0xb98] sm:$0xff]
    %v1677 = vld [vmem:[#allocation4 + $0xba0] sm:$0xff]
    %v1678 = vld [vmem:[#allocation4 + $0xba8] sm:$0xff]
    %v1679 = vld [vmem:[#allocation4 + $0xbb0] sm:$0xff]
    %v1680 = vld [vmem:[#allocation4 + $0xbb8] sm:$0xff]
    %v1681 = vld [vmem:[#allocation4 + $0xbc0] sm:$0xff]
    %v1682 = vld [vmem:[#allocation4 + $0xbc8] sm:$0xff]
    %v1683 = vld [vmem:[#allocation4 + $0xbd0] sm:$0xff]
    %v1684 = vld [vmem:[#allocation4 + $0xbd8] sm:$0xff]
    %v1685 = vld [vmem:[#allocation4 + $0xbe0] sm:$0xff]
    %v1686 = vld [vmem:[#allocation4 + $0xbe8] sm:$0xff]
    %v1687 = vld [vmem:[#allocation4 + $0xbf0] sm:$0xff]
    %v1688 = vld [vmem:[#allocation4 + $0xbf8] sm:$0xff]
    %v1689 = vld [vmem:[#allocation4 + $0xc00] sm:$0xff]
    %v1690 = vld [vmem:[#allocation4 + $0xc08] sm:$0xff]
    %v1691 = vld [vmem:[#allocation4 + $0xc10] sm:$0xff]
    %v1692 = vld [vmem:[#allocation4 + $0xc18] sm:$0xff]
    %v1693 = vld [vmem:[#allocation4 + $0xc20] sm:$0xff]
    %v1694 = vld [vmem:[#allocation4 + $0xc28] sm:$0xff]
    %v1695 = vld [vmem:[#allocation4 + $0xc30] sm:$0xff]
    %v1696 = vld [vmem:[#allocation4 + $0xc38] sm:$0xff]
    %v1697 = vld [vmem:[#allocation4 + $0xc40] sm:$0xff]
    %v1698 = vld [vmem:[#allocation4 + $0xc48] sm:$0xff]
    %v1699 = vld [vmem:[#allocation4 + $0xc50] sm:$0xff]
    %v1700 = vld [vmem:[#allocation4 + $0xc58] sm:$0xff]
    %v1701 = vld [vmem:[#allocation4 + $0xc60] sm:$0xff]
    %v1702 = vld [vmem:[#allocation4 + $0xc68] sm:$0xff]
    %v1703 = vld [vmem:[#allocation4 + $0xc70] sm:$0xff]
    %v1704 = vld [vmem:[#allocation4 + $0xc78] sm:$0xff]
    %v1705 = vld [vmem:[#allocation4 + $0xc80] sm:$0xff]
    %v1706 = vld [vmem:[#allocation4 + $0xc88] sm:$0xff]
    %v1707 = vld [vmem:[#allocation4 + $0xc90] sm:$0xff]
    %v1708 = vld [vmem:[#allocation4 + $0xc98] sm:$0xff]
    %v1709 = vld [vmem:[#allocation4 + $0xca0] sm:$0xff]
    %v1710 = vld [vmem:[#allocation4 + $0xca8] sm:$0xff]
    %v1711 = vld [vmem:[#allocation4 + $0xcb0] sm:$0xff]
    %v1712 = vld [vmem:[#allocation4 + $0xcb8] sm:$0xff]
    %v1713 = vld [vmem:[#allocation4 + $0xcc0] sm:$0xff]
    %v1714 = vld [vmem:[#allocation4 + $0xcc8] sm:$0xff]
    %v1715 = vld [vmem:[#allocation4 + $0xcd0] sm:$0xff]
    %v1716 = vld [vmem:[#allocation4 + $0xcd8] sm:$0xff]
    %v1717 = vld [vmem:[#allocation4 + $0xce0] sm:$0xff]
    %v1718 = vld [vmem:[#allocation4 + $0xce8] sm:$0xff]
    %v1719 = vld [vmem:[#allocation4 + $0xcf0] sm:$0xff]
    %v1720 = vld [vmem:[#allocation4 + $0xcf8] sm:$0xff]
    %v1721 = vld [vmem:[#allocation4 + $0xd00] sm:$0xff]
    %v1722 = vld [vmem:[#allocation4 + $0xd08] sm:$0xff]
    %v1723 = vld [vmem:[#allocation4 + $0xd10] sm:$0xff]
    %v1724 = vld [vmem:[#allocation4 + $0xd18] sm:$0xff]
    %v1725 = vld [vmem:[#allocation4 + $0xd20] sm:$0xff]
    %v1726 = vld [vmem:[#allocation4 + $0xd28] sm:$0xff]
    %v1727 = vld [vmem:[#allocation4 + $0xd30] sm:$0xff]
    %v1728 = vld [vmem:[#allocation4 + $0xd38] sm:$0xff]
    %v1729 = vld [vmem:[#allocation4 + $0xd40] sm:$0xff]
    %v1730 = vld [vmem:[#allocation4 + $0xd48] sm:$0xff]
    %v1731 = vld [vmem:[#allocation4 + $0xd50] sm:$0xff]
    %v1732 = vld [vmem:[#allocation4 + $0xd58] sm:$0xff]
    %v1733 = vld [vmem:[#allocation4 + $0xd60] sm:$0xff]
    %v1734 = vld [vmem:[#allocation4 + $0xd68] sm:$0xff]
    %v1735 = vld [vmem:[#allocation4 + $0xd70] sm:$0xff]
    %v1736 = vld [vmem:[#allocation4 + $0xd78] sm:$0xff]
    %v1737 = vld [vmem:[#allocation4 + $0xd80] sm:$0xff]
    %v1738 = vld [vmem:[#allocation4 + $0xd88] sm:$0xff]
    %v1739 = vld [vmem:[#allocation4 + $0xd90] sm:$0xff]
    %v1740 = vld [vmem:[#allocation4 + $0xd98] sm:$0xff]
    %v1741 = vld [vmem:[#allocation4 + $0xda0] sm:$0xff]
    %v1742 = vld [vmem:[#allocation4 + $0xda8] sm:$0xff]
    %v1743 = vld [vmem:[#allocation4 + $0xdb0] sm:$0xff]
    %v1744 = vld [vmem:[#allocation4 + $0xdb8] sm:$0xff]
    %v1745 = vld [vmem:[#allocation4 + $0xdc0] sm:$0xff]
    %v1746 = vld [vmem:[#allocation4 + $0xdc8] sm:$0xff]
    %v1747 = vld [vmem:[#allocation4 + $0xdd0] sm:$0xff]
    %v1748 = vld [vmem:[#allocation4 + $0xdd8] sm:$0xff]
    %v1749 = vld [vmem:[#allocation4 + $0xde0] sm:$0xff]
    %v1750 = vld [vmem:[#allocation4 + $0xde8] sm:$0xff]
    %v1751 = vld [vmem:[#allocation4 + $0xdf0] sm:$0xff]
    %v1752 = vld [vmem:[#allocation4 + $0xdf8] sm:$0xff]
    %v1753 = vld [vmem:[#allocation15] sm:$0xff]
    %v1755 = vlaneseq
    %v1756 = vshrl.u32 %v1755, 7
    %v1757 = vsub.s32 0, %v1756
    %v1758 = vrot.slane %v1753, %v1757
    %v1759 = vlaneseq
    %v1760 = vshrl.u32 %v1759, 7
    %v1761 = vsub.s32 1, %v1760
    %v1762 = vrot.slane %v1753, %v1761
    %v1763 = vlaneseq
    %v1764 = vshrl.u32 %v1763, 7
    %v1765 = vsub.s32 2, %v1764
    %v1766 = vrot.slane %v1753, %v1765
    %v1767 = vlaneseq
    %v1768 = vshrl.u32 %v1767, 7
    %v1769 = vsub.s32 3, %v1768
    %v1770 = vrot.slane %v1753, %v1769
    %v1771 = vlaneseq
    %v1772 = vshrl.u32 %v1771, 7
    %v1773 = vsub.s32 4, %v1772
    %v1774 = vrot.slane %v1753, %v1773
    %v1775 = vlaneseq
    %v1776 = vshrl.u32 %v1775, 7
    %v1777 = vsub.s32 5, %v1776
    %v1778 = vrot.slane %v1753, %v1777
    %v1779 = vlaneseq
    %v1780 = vshrl.u32 %v1779, 7
    %v1781 = vsub.s32 6, %v1780
    %v1782 = vrot.slane %v1753, %v1781
    %1790 = vmatprep.subr.bf16.mxu0 %v1306
    %1791 = vmatpush1.bf16.msra.mxu0 %v1305
    %1792 = vmatprep.subr.bf16.mxu0 %v1313
    %1793 = vmatpush1.bf16.msra.mxu0 %v1312
    %1794 = vmatprep.subr.bf16.mxu0 %v1320
    %1795 = vmatpush1.bf16.msra.mxu0 %v1319
    %1796 = vmatprep.subr.bf16.mxu0 %v1327
    %1797 = vmatpush1.bf16.msra.mxu0 %v1326
    %1798 = vmatprep.subr.bf16.mxu0 %v1334
    %1799 = vmatpush1.bf16.msra.mxu0 %v1333
    %1800 = vmatprep.subr.bf16.mxu0 %v1341
    %1801 = vmatpush1.bf16.msra.mxu0 %v1340
    %1802 = vmatprep.subr.bf16.mxu0 %v1348
    %1803 = vmatpush1.bf16.msra.mxu0 %v1347
    %1804 = vmatprep.subr.bf16.mxu0 %v1355
    %1805 = vmatpush1.bf16.msra.mxu0 %v1354
    %1806 = vmatprep.subr.bf16.mxu0 %v1362
    %1807 = vmatpush1.bf16.msra.mxu0 %v1361
    %1808 = vmatprep.subr.bf16.mxu0 %v1369
    %1809 = vmatpush1.bf16.msra.mxu0 %v1368
    %1810 = vmatprep.subr.bf16.mxu0 %v1376
    %1811 = vmatpush1.bf16.msra.mxu0 %v1375
    %1812 = vmatprep.subr.bf16.mxu0 %v1383
    %1813 = vmatpush1.bf16.msra.mxu0 %v1382
    %1814 = vmatprep.subr.bf16.mxu0 %v1390
    %1815 = vmatpush1.bf16.msra.mxu0 %v1389
    %1816 = vmatprep.subr.bf16.mxu0 %v1397
    %1817 = vmatpush1.bf16.msra.mxu0 %v1396
    %1818 = vmatprep.subr.bf16.mxu0 %v1404
    %1819 = vmatpush1.bf16.msra.mxu0 %v1403
    %1820 = vmatprep.subr.bf16.mxu0 %v1411
    %1821 = vmatpush1.bf16.msra.mxu0 %v1410
    %1822 = vmatprep.mubr.bf16.mxu0 %v1298
    %1823 = vmatmul.mubr.bf16.gmra.mrb[0].mxu0 %v1297
    %v1824 = vpop.f32.mrb[0].mxu0
    %v1825 = vadd.f32 %v1758, %v1824
    %v1826 = vpop.f32.mrb[0].mxu0
    %v1827 = vadd.f32 %v1762, %v1826
    %v1828 = vpop.f32.mrb[0].mxu0
    %v1829 = vadd.f32 %v1758, %v1828
    %v1830 = vpop.f32.mrb[0].mxu0
    %v1831 = vadd.f32 %v1762, %v1830
    %1832 = vdwg.mxu0
    %1833 = vmatprep.subr.bf16.mxu0 %v1418
    %1834 = vmatpush1.bf16.msra.mxu0 %v1417
    %1835 = vmatprep.subr.bf16.mxu0 %v1425
    %1836 = vmatpush1.bf16.msra.mxu0 %v1424
    %1837 = vmatprep.subr.bf16.mxu0 %v1432
    %1838 = vmatpush1.bf16.msra.mxu0 %v1431
    %1839 = vmatprep.subr.bf16.mxu0 %v1439
    %1840 = vmatpush1.bf16.msra.mxu0 %v1438
    %1841 = vmatprep.subr.bf16.mxu0 %v1446
    %1842 = vmatpush1.bf16.msra.mxu0 %v1445
    %1843 = vmatprep.subr.bf16.mxu0 %v1453
    %1844 = vmatpush1.bf16.msra.mxu0 %v1452
    %1845 = vmatprep.subr.bf16.mxu0 %v1460
    %1846 = vmatpush1.bf16.msra.mxu0 %v1459
    %1847 = vmatprep.subr.bf16.mxu0 %v1467
    %1848 = vmatpush1.bf16.msra.mxu0 %v1466
    %1849 = vmatprep.subr.bf16.mxu0 %v1474
    %1850 = vmatpush1.bf16.msra.mxu0 %v1473
    %1851 = vmatprep.subr.bf16.mxu0 %v1481
    %1852 = vmatpush1.bf16.msra.mxu0 %v1480
    %1853 = vmatprep.subr.bf16.mxu0 %v1488
    %1854 = vmatpush1.bf16.msra.mxu0 %v1487
    %1855 = vmatprep.subr.bf16.mxu0 %v1495
    %1856 = vmatpush1.bf16.msra.mxu0 %v1494
    %1857 = vmatprep.subr.bf16.mxu0 %v1502
    %1858 = vmatpush1.bf16.msra.mxu0 %v1501
    %1859 = vmatprep.subr.bf16.mxu0 %v1509
    %1860 = vmatpush1.bf16.msra.mxu0 %v1508
    %1861 = vmatprep.subr.bf16.mxu0 %v1516
    %1862 = vmatpush1.bf16.msra.mxu0 %v1515
    %1863 = vmatprep.subr.bf16.mxu0 %v1523
    %1864 = vmatpush1.bf16.msra.mxu0 %v1522
    %1865 = vmatprep.mubr.bf16.mxu0 %v1300
    %1866 = vmatmul.mubr.bf16.gmra.mrb[0].mxu0 %v1299
    %v1867 = vpop.f32.mrb[0].mxu0
    %v1868 = vadd.f32 %v1825, %v1867
    %v1869 = vpop.f32.mrb[0].mxu0
    %v1870 = vadd.f32 %v1827, %v1869
    %v1871 = vpop.f32.mrb[0].mxu0
    %v1872 = vadd.f32 %v1829, %v1871
    %v1873 = vpop.f32.mrb[0].mxu0
    %v1874 = vadd.f32 %v1831, %v1873
    %1875 = vdwg.mxu0
    %1876 = vmatprep.subr.bf16.mxu0 %v1530
    %1877 = vmatpush1.bf16.msra.mxu0 %v1529
    %1878 = vmatprep.subr.bf16.mxu0 %v1537
    %1879 = vmatpush1.bf16.msra.mxu0 %v1536
    %1880 = vmatprep.subr.bf16.mxu0 %v1544
    %1881 = vmatpush1.bf16.msra.mxu0 %v1543
    %1882 = vmatprep.subr.bf16.mxu0 %v1551
    %1883 = vmatpush1.bf16.msra.mxu0 %v1550
    %1884 = vmatprep.subr.bf16.mxu0 %v1558
    %1885 = vmatpush1.bf16.msra.mxu0 %v1557
    %1886 = vmatprep.subr.bf16.mxu0 %v1565
    %1887 = vmatpush1.bf16.msra.mxu0 %v1564
    %1888 = vmatprep.subr.bf16.mxu0 %v1572
    %1889 = vmatpush1.bf16.msra.mxu0 %v1571
    %1890 = vmatprep.subr.bf16.mxu0 %v1579
    %1891 = vmatpush1.bf16.msra.mxu0 %v1578
    %1892 = vmatprep.subr.bf16.mxu0 %v1586
    %1893 = vmatpush1.bf16.msra.mxu0 %v1585
    %1894 = vmatprep.subr.bf16.mxu0 %v1593
    %1895 = vmatpush1.bf16.msra.mxu0 %v1592
    %1896 = vmatprep.subr.bf16.mxu0 %v1600
    %1897 = vmatpush1.bf16.msra.mxu0 %v1599
    %1898 = vmatprep.subr.bf16.mxu0 %v1607
    %1899 = vmatpush1.bf16.msra.mxu0 %v1606
    %1900 = vmatprep.subr.bf16.mxu0 %v1614
    %1901 = vmatpush1.bf16.msra.mxu0 %v1613
    %1902 = vmatprep.subr.bf16.mxu0 %v1621
    %1903 = vmatpush1.bf16.msra.mxu0 %v1620
    %1904 = vmatprep.subr.bf16.mxu0 %v1628
    %1905 = vmatpush1.bf16.msra.mxu0 %v1627
    %1906 = vmatprep.subr.bf16.mxu0 %v1635
    %1907 = vmatpush1.bf16.msra.mxu0 %v1634
    %1908 = vmatprep.mubr.bf16.mxu0 %v1302
    %1909 = vmatmul.mubr.bf16.gmra.mrb[0].mxu0 %v1301
    %v1910 = vpop.f32.mrb[0].mxu0
    %v1911 = vadd.f32 %v1868, %v1910
    %v1912 = vpop.f32.mrb[0].mxu0
    %v1913 = vadd.f32 %v1870, %v1912
    %v1914 = vpop.f32.mrb[0].mxu0
    %v1915 = vadd.f32 %v1872, %v1914
    %v1916 = vpop.f32.mrb[0].mxu0
    %v1917 = vadd.f32 %v1874, %v1916
    %1918 = vdwg.mxu0
    %1919 = vmatprep.subr.bf16.mxu0 %v1642
    %1920 = vmatpush1.bf16.msra.mxu0 %v1641
    %1921 = vmatprep.subr.bf16.mxu0 %v1649
    %1922 = vmatpush1.bf16.msra.mxu0 %v1648
    %1923 = vmatprep.subr.bf16.mxu0 %v1656
    %1924 = vmatpush1.bf16.msra.mxu0 %v1655
    %1925 = vmatprep.subr.bf16.mxu0 %v1663
    %1926 = vmatpush1.bf16.msra.mxu0 %v1662
    %1927 = vmatprep.subr.bf16.mxu0 %v1670
    %1928 = vmatpush1.bf16.msra.mxu0 %v1669
    %1929 = vmatprep.subr.bf16.mxu0 %v1677
    %1930 = vmatpush1.bf16.msra.mxu0 %v1676
    %1931 = vmatprep.subr.bf16.mxu0 %v1684
    %1932 = vmatpush1.bf16.msra.mxu0 %v1683
    %1933 = vmatprep.subr.bf16.mxu0 %v1691
    %1934 = vmatpush1.bf16.msra.mxu0 %v1690
    %1935 = vmatprep.subr.bf16.mxu0 %v1698
    %1936 = vmatpush1.bf16.msra.mxu0 %v1697
    %1937 = vmatprep.subr.bf16.mxu0 %v1705
    %1938 = vmatpush1.bf16.msra.mxu0 %v1704
    %1939 = vmatprep.subr.bf16.mxu0 %v1712
    %1940 = vmatpush1.bf16.msra.mxu0 %v1711
    %1941 = vmatprep.subr.bf16.mxu0 %v1719
    %1942 = vmatpush1.bf16.msra.mxu0 %v1718
    %1943 = vmatprep.subr.bf16.mxu0 %v1726
    %1944 = vmatpush1.bf16.msra.mxu0 %v1725
    %1945 = vmatprep.subr.bf16.mxu0 %v1733
    %1946 = vmatpush1.bf16.msra.mxu0 %v1732
    %1947 = vmatprep.subr.bf16.mxu0 %v1740
    %1948 = vmatpush1.bf16.msra.mxu0 %v1739
    %1949 = vmatprep.subr.bf16.mxu0 %v1747
    %1950 = vmatpush1.bf16.msra.mxu0 %v1746
    %1951 = vmatprep.mubr.bf16.mxu0 %v1304
    %1952 = vmatmul.mubr.bf16.gmra.mrb[0].mxu0 %v1303
    %v1953 = vpop.f32.mrb[0].mxu0
    %v1954 = vadd.f32 %v1911, %v1953
    %v1955 = vpop.f32.mrb[0].mxu0
    %v1956 = vadd.f32 %v1913, %v1955
    %v1957 = vpop.f32.mrb[0].mxu0
    %v1958 = vadd.f32 %v1915, %v1957
    %v1959 = vpop.f32.mrb[0].mxu0
    %v1960 = vadd.f32 %v1917, %v1959
    %1961 = vdwg.mxu0
    %1962 = vmatprep.subr.bf16.mxu0 %v1308
    %1963 = vmatpush1.bf16.msra.mxu0 %v1307
    %1964 = vmatprep.subr.bf16.mxu0 %v1315
    %1965 = vmatpush1.bf16.msra.mxu0 %v1314
    %1966 = vmatprep.subr.bf16.mxu0 %v1322
    %1967 = vmatpush1.bf16.msra.mxu0 %v1321
    %1968 = vmatprep.subr.bf16.mxu0 %v1329
    %1969 = vmatpush1.bf16.msra.mxu0 %v1328
    %1970 = vmatprep.subr.bf16.mxu0 %v1336
    %1971 = vmatpush1.bf16.msra.mxu0 %v1335
    %1972 = vmatprep.subr.bf16.mxu0 %v1343
    %1973 = vmatpush1.bf16.msra.mxu0 %v1342
    %1974 = vmatprep.subr.bf16.mxu0 %v1350
    %1975 = vmatpush1.bf16.msra.mxu0 %v1349
    %1976 = vmatprep.subr.bf16.mxu0 %v1357
    %1977 = vmatpush1.bf16.msra.mxu0 %v1356
    %1978 = vmatprep.subr.bf16.mxu0 %v1364
    %1979 = vmatpush1.bf16.msra.mxu0 %v1363
    %1980 = vmatprep.subr.bf16.mxu0 %v1371
    %1981 = vmatpush1.bf16.msra.mxu0 %v1370
    %1982 = vmatprep.subr.bf16.mxu0 %v1378
    %1983 = vmatpush1.bf16.msra.mxu0 %v1377
    %1984 = vmatprep.subr.bf16.mxu0 %v1385
    %1985 = vmatpush1.bf16.msra.mxu0 %v1384
    %1986 = vmatprep.subr.bf16.mxu0 %v1392
    %1987 = vmatpush1.bf16.msra.mxu0 %v1391
    %1988 = vmatprep.subr.bf16.mxu0 %v1399
    %1989 = vmatpush1.bf16.msra.mxu0 %v1398
    %1990 = vmatprep.subr.bf16.mxu0 %v1406
    %1991 = vmatpush1.bf16.msra.mxu0 %v1405
    %1992 = vmatprep.subr.bf16.mxu0 %v1413
    %1993 = vmatpush1.bf16.msra.mxu0 %v1412
    %1994 = vmatprep.mubr.bf16.mxu0 %v1298
    %1995 = vmatmul.mubr.bf16.gmra.mrb[0].mxu0 %v1297
    %v1996 = vpop.f32.mrb[0].mxu0
    %v1997 = vadd.f32 %v1766, %v1996
    %v1998 = vpop.f32.mrb[0].mxu0
    %v1999 = vadd.f32 %v1770, %v1998
    %v2000 = vpop.f32.mrb[0].mxu0
    %v2001 = vadd.f32 %v1766, %v2000
    %v2002 = vpop.f32.mrb[0].mxu0
    %v2003 = vadd.f32 %v1770, %v2002
    %2004 = vdwg.mxu0
    %2005 = vmatprep.subr.bf16.mxu0 %v1420
    %2006 = vmatpush1.bf16.msra.mxu0 %v1419
    %2007 = vmatprep.subr.bf16.mxu0 %v1427
    %2008 = vmatpush1.bf16.msra.mxu0 %v1426
    %2009 = vmatprep.subr.bf16.mxu0 %v1434
    %2010 = vmatpush1.bf16.msra.mxu0 %v1433
    %2011 = vmatprep.subr.bf16.mxu0 %v1441
    %2012 = vmatpush1.bf16.msra.mxu0 %v1440
    %2013 = vmatprep.subr.bf16.mxu0 %v1448
    %2014 = vmatpush1.bf16.msra.mxu0 %v1447
    %2015 = vmatprep.subr.bf16.mxu0 %v1455
    %2016 = vmatpush1.bf16.msra.mxu0 %v1454
    %2017 = vmatprep.subr.bf16.mxu0 %v1462
    %2018 = vmatpush1.bf16.msra.mxu0 %v1461
    %2019 = vmatprep.subr.bf16.mxu0 %v1469
    %2020 = vmatpush1.bf16.msra.mxu0 %v1468
    %2021 = vmatprep.subr.bf16.mxu0 %v1476
    %2022 = vmatpush1.bf16.msra.mxu0 %v1475
    %2023 = vmatprep.subr.bf16.mxu0 %v1483
    %2024 = vmatpush1.bf16.msra.mxu0 %v1482
    %2025 = vmatprep.subr.bf16.mxu0 %v1490
    %2026 = vmatpush1.bf16.msra.mxu0 %v1489
    %2027 = vmatprep.subr.bf16.mxu0 %v1497
    %2028 = vmatpush1.bf16.msra.mxu0 %v1496
    %2029 = vmatprep.subr.bf16.mxu0 %v1504
    %2030 = vmatpush1.bf16.msra.mxu0 %v1503
    %2031 = vmatprep.subr.bf16.mxu0 %v1511
    %2032 = vmatpush1.bf16.msra.mxu0 %v1510
    %2033 = vmatprep.subr.bf16.mxu0 %v1518
    %2034 = vmatpush1.bf16.msra.mxu0 %v1517
    %2035 = vmatprep.subr.bf16.mxu0 %v1525
    %2036 = vmatpush1.bf16.msra.mxu0 %v1524
    %2037 = vmatprep.mubr.bf16.mxu0 %v1300
    %2038 = vmatmul.mubr.bf16.gmra.mrb[0].mxu0 %v1299
    %v2039 = vpop.f32.mrb[0].mxu0
    %v2040 = vadd.f32 %v1997, %v2039
    %v2041 = vpop.f32.mrb[0].mxu0
    %v2042 = vadd.f32 %v1999, %v2041
    %v2043 = vpop.f32.mrb[0].mxu0
    %v2044 = vadd.f32 %v2001, %v2043
    %v2045 = vpop.f32.mrb[0].mxu0
    %v2046 = vadd.f32 %v2003, %v2045
    %2047 = vdwg.mxu0
    %2048 = vmatprep.subr.bf16.mxu0 %v1532
    %2049 = vmatpush1.bf16.msra.mxu0 %v1531
    %2050 = vmatprep.subr.bf16.mxu0 %v1539
    %2051 = vmatpush1.bf16.msra.mxu0 %v1538
    %2052 = vmatprep.subr.bf16.mxu0 %v1546
    %2053 = vmatpush1.bf16.msra.mxu0 %v1545
    %2054 = vmatprep.subr.bf16.mxu0 %v1553
    %2055 = vmatpush1.bf16.msra.mxu0 %v1552
    %2056 = vmatprep.subr.bf16.mxu0 %v1560
    %2057 = vmatpush1.bf16.msra.mxu0 %v1559
    %2058 = vmatprep.subr.bf16.mxu0 %v1567
    %2059 = vmatpush1.bf16.msra.mxu0 %v1566
    %2060 = vmatprep.subr.bf16.mxu0 %v1574
    %2061 = vmatpush1.bf16.msra.mxu0 %v1573
    %2062 = vmatprep.subr.bf16.mxu0 %v1581
    %2063 = vmatpush1.bf16.msra.mxu0 %v1580
    %2064 = vmatprep.subr.bf16.mxu0 %v1588
    %2065 = vmatpush1.bf16.msra.mxu0 %v1587
    %2066 = vmatprep.subr.bf16.mxu0 %v1595
    %2067 = vmatpush1.bf16.msra.mxu0 %v1594
    %2068 = vmatprep.subr.bf16.mxu0 %v1602
    %2069 = vmatpush1.bf16.msra.mxu0 %v1601
    %2070 = vmatprep.subr.bf16.mxu0 %v1609
    %2071 = vmatpush1.bf16.msra.mxu0 %v1608
    %2072 = vmatprep.subr.bf16.mxu0 %v1616
    %2073 = vmatpush1.bf16.msra.mxu0 %v1615
    %2074 = vmatprep.subr.bf16.mxu0 %v1623
    %2075 = vmatpush1.bf16.msra.mxu0 %v1622
    %2076 = vmatprep.subr.bf16.mxu0 %v1630
    %2077 = vmatpush1.bf16.msra.mxu0 %v1629
    %2078 = vmatprep.subr.bf16.mxu0 %v1637
    %2079 = vmatpush1.bf16.msra.mxu0 %v1636
    %2080 = vmatprep.mubr.bf16.mxu0 %v1302
    %2081 = vmatmul.mubr.bf16.gmra.mrb[0].mxu0 %v1301
    %v2082 = vpop.f32.mrb[0].mxu0
    %v2083 = vadd.f32 %v2040, %v2082
    %v2084 = vpop.f32.mrb[0].mxu0
    %v2085 = vadd.f32 %v2042, %v2084
    %v2086 = vpop.f32.mrb[0].mxu0
    %v2087 = vadd.f32 %v2044, %v2086
    %v2088 = vpop.f32.mrb[0].mxu0
    %v2089 = vadd.f32 %v2046, %v2088
    %2090 = vdwg.mxu0
    %2091 = vmatprep.subr.bf16.mxu0 %v1644
    %2092 = vmatpush1.bf16.msra.mxu0 %v1643
    %2093 = vmatprep.subr.bf16.mxu0 %v1651
    %2094 = vmatpush1.bf16.msra.mxu0 %v1650
    %2095 = vmatprep.subr.bf16.mxu0 %v1658
    %2096 = vmatpush1.bf16.msra.mxu0 %v1657
    %2097 = vmatprep.subr.bf16.mxu0 %v1665
    %2098 = vmatpush1.bf16.msra.mxu0 %v1664
    %2099 = vmatprep.subr.bf16.mxu0 %v1672
    %2100 = vmatpush1.bf16.msra.mxu0 %v1671
    %2101 = vmatprep.subr.bf16.mxu0 %v1679
    %2102 = vmatpush1.bf16.msra.mxu0 %v1678
    %2103 = vmatprep.subr.bf16.mxu0 %v1686
    %2104 = vmatpush1.bf16.msra.mxu0 %v1685
    %2105 = vmatprep.subr.bf16.mxu0 %v1693
    %2106 = vmatpush1.bf16.msra.mxu0 %v1692
    %2107 = vmatprep.subr.bf16.mxu0 %v1700
    %2108 = vmatpush1.bf16.msra.mxu0 %v1699
    %2109 = vmatprep.subr.bf16.mxu0 %v1707
    %2110 = vmatpush1.bf16.msra.mxu0 %v1706
    %2111 = vmatprep.subr.bf16.mxu0 %v1714
    %2112 = vmatpush1.bf16.msra.mxu0 %v1713
    %2113 = vmatprep.subr.bf16.mxu0 %v1721
    %2114 = vmatpush1.bf16.msra.mxu0 %v1720
    %2115 = vmatprep.subr.bf16.mxu0 %v1728
    %2116 = vmatpush1.bf16.msra.mxu0 %v1727
    %2117 = vmatprep.subr.bf16.mxu0 %v1735
    %2118 = vmatpush1.bf16.msra.mxu0 %v1734
    %2119 = vmatprep.subr.bf16.mxu0 %v1742
    %2120 = vmatpush1.bf16.msra.mxu0 %v1741
    %2121 = vmatprep.subr.bf16.mxu0 %v1749
    %2122 = vmatpush1.bf16.msra.mxu0 %v1748
    %2123 = vmatprep.mubr.bf16.mxu0 %v1304
    %2124 = vmatmul.mubr.bf16.gmra.mrb[0].mxu0 %v1303
    %v2125 = vpop.f32.mrb[0].mxu0
    %v2126 = vadd.f32 %v2083, %v2125
    %v2127 = vpop.f32.mrb[0].mxu0
    %v2128 = vadd.f32 %v2085, %v2127
    %v2129 = vpop.f32.mrb[0].mxu0
    %v2130 = vadd.f32 %v2087, %v2129
    %v2131 = vpop.f32.mrb[0].mxu0
    %v2132 = vadd.f32 %v2089, %v2131
    %2133 = vdwg.mxu0
    %2134 = vmatprep.subr.bf16.mxu0 %v1310
    %2135 = vmatpush1.bf16.msra.mxu0 %v1309
    %2136 = vmatprep.subr.bf16.mxu0 %v1317
    %2137 = vmatpush1.bf16.msra.mxu0 %v1316
    %2138 = vmatprep.subr.bf16.mxu0 %v1324
    %2139 = vmatpush1.bf16.msra.mxu0 %v1323
    %2140 = vmatprep.subr.bf16.mxu0 %v1331
    %2141 = vmatpush1.bf16.msra.mxu0 %v1330
    %2142 = vmatprep.subr.bf16.mxu0 %v1338
    %2143 = vmatpush1.bf16.msra.mxu0 %v1337
    %2144 = vmatprep.subr.bf16.mxu0 %v1345
    %2145 = vmatpush1.bf16.msra.mxu0 %v1344
    %2146 = vmatprep.subr.bf16.mxu0 %v1352
    %2147 = vmatpush1.bf16.msra.mxu0 %v1351
    %2148 = vmatprep.subr.bf16.mxu0 %v1359
    %2149 = vmatpush1.bf16.msra.mxu0 %v1358
    %2150 = vmatprep.subr.bf16.mxu0 %v1366
    %2151 = vmatpush1.bf16.msra.mxu0 %v1365
    %2152 = vmatprep.subr.bf16.mxu0 %v1373
    %2153 = vmatpush1.bf16.msra.mxu0 %v1372
    %2154 = vmatprep.subr.bf16.mxu0 %v1380
    %2155 = vmatpush1.bf16.msra.mxu0 %v1379
    %2156 = vmatprep.subr.bf16.mxu0 %v1387
    %2157 = vmatpush1.bf16.msra.mxu0 %v1386
    %2158 = vmatprep.subr.bf16.mxu0 %v1394
    %2159 = vmatpush1.bf16.msra.mxu0 %v1393
    %2160 = vmatprep.subr.bf16.mxu0 %v1401
    %2161 = vmatpush1.bf16.msra.mxu0 %v1400
    %2162 = vmatprep.subr.bf16.mxu0 %v1408
    %2163 = vmatpush1.bf16.msra.mxu0 %v1407
    %2164 = vmatprep.subr.bf16.mxu0 %v1415
    %2165 = vmatpush1.bf16.msra.mxu0 %v1414
    %2166 = vmatprep.mubr.bf16.mxu0 %v1298
    %2167 = vmatmul.mubr.bf16.gmra.mrb[0].mxu0 %v1297
    %v2168 = vpop.f32.mrb[0].mxu0
    %v2169 = vadd.f32 %v1774, %v2168
    %v2170 = vpop.f32.mrb[0].mxu0
    %v2171 = vadd.f32 %v1778, %v2170
    %v2172 = vpop.f32.mrb[0].mxu0
    %v2173 = vadd.f32 %v1774, %v2172
    %v2174 = vpop.f32.mrb[0].mxu0
    %v2175 = vadd.f32 %v1778, %v2174
    %2176 = vdwg.mxu0
    %2177 = vmatprep.subr.bf16.mxu0 %v1422
    %2178 = vmatpush1.bf16.msra.mxu0 %v1421
    %2179 = vmatprep.subr.bf16.mxu0 %v1429
    %2180 = vmatpush1.bf16.msra.mxu0 %v1428
    %2181 = vmatprep.subr.bf16.mxu0 %v1436
    %2182 = vmatpush1.bf16.msra.mxu0 %v1435
    %2183 = vmatprep.subr.bf16.mxu0 %v1443
    %2184 = vmatpush1.bf16.msra.mxu0 %v1442
    %2185 = vmatprep.subr.bf16.mxu0 %v1450
    %2186 = vmatpush1.bf16.msra.mxu0 %v1449
    %2187 = vmatprep.subr.bf16.mxu0 %v1457
    %2188 = vmatpush1.bf16.msra.mxu0 %v1456
    %2189 = vmatprep.subr.bf16.mxu0 %v1464
    %2190 = vmatpush1.bf16.msra.mxu0 %v1463
    %2191 = vmatprep.subr.bf16.mxu0 %v1471
    %2192 = vmatpush1.bf16.msra.mxu0 %v1470
    %2193 = vmatprep.subr.bf16.mxu0 %v1478
    %2194 = vmatpush1.bf16.msra.mxu0 %v1477
    %2195 = vmatprep.subr.bf16.mxu0 %v1485
    %2196 = vmatpush1.bf16.msra.mxu0 %v1484
    %2197 = vmatprep.subr.bf16.mxu0 %v1492
    %2198 = vmatpush1.bf16.msra.mxu0 %v1491
    %2199 = vmatprep.subr.bf16.mxu0 %v1499
    %2200 = vmatpush1.bf16.msra.mxu0 %v1498
    %2201 = vmatprep.subr.bf16.mxu0 %v1506
    %2202 = vmatpush1.bf16.msra.mxu0 %v1505
    %2203 = vmatprep.subr.bf16.mxu0 %v1513
    %2204 = vmatpush1.bf16.msra.mxu0 %v1512
    %2205 = vmatprep.subr.bf16.mxu0 %v1520
    %2206 = vmatpush1.bf16.msra.mxu0 %v1519
    %2207 = vmatprep.subr.bf16.mxu0 %v1527
    %2208 = vmatpush1.bf16.msra.mxu0 %v1526
    %2209 = vmatprep.mubr.bf16.mxu0 %v1300
    %2210 = vmatmul.mubr.bf16.gmra.mrb[0].mxu0 %v1299
    %v2211 = vpop.f32.mrb[0].mxu0
    %v2212 = vadd.f32 %v2169, %v2211
    %v2213 = vpop.f32.mrb[0].mxu0
    %v2214 = vadd.f32 %v2171, %v2213
    %v2215 = vpop.f32.mrb[0].mxu0
    %v2216 = vadd.f32 %v2173, %v2215
    %v2217 = vpop.f32.mrb[0].mxu0
    %v2218 = vadd.f32 %v2175, %v2217
    %2219 = vdwg.mxu0
    %2220 = vmatprep.subr.bf16.mxu0 %v1534
    %2221 = vmatpush1.bf16.msra.mxu0 %v1533
    %2222 = vmatprep.subr.bf16.mxu0 %v1541
    %2223 = vmatpush1.bf16.msra.mxu0 %v1540
    %2224 = vmatprep.subr.bf16.mxu0 %v1548
    %2225 = vmatpush1.bf16.msra.mxu0 %v1547
    %2226 = vmatprep.subr.bf16.mxu0 %v1555
    %2227 = vmatpush1.bf16.msra.mxu0 %v1554
    %2228 = vmatprep.subr.bf16.mxu0 %v1562
    %2229 = vmatpush1.bf16.msra.mxu0 %v1561
    %2230 = vmatprep.subr.bf16.mxu0 %v1569
    %2231 = vmatpush1.bf16.msra.mxu0 %v1568
    %2232 = vmatprep.subr.bf16.mxu0 %v1576
    %2233 = vmatpush1.bf16.msra.mxu0 %v1575
    %2234 = vmatprep.subr.bf16.mxu0 %v1583
    %2235 = vmatpush1.bf16.msra.mxu0 %v1582
    %2236 = vmatprep.subr.bf16.mxu0 %v1590
    %2237 = vmatpush1.bf16.msra.mxu0 %v1589
    %2238 = vmatprep.subr.bf16.mxu0 %v1597
    %2239 = vmatpush1.bf16.msra.mxu0 %v1596
    %2240 = vmatprep.subr.bf16.mxu0 %v1604
    %2241 = vmatpush1.bf16.msra.mxu0 %v1603
    %2242 = vmatprep.subr.bf16.mxu0 %v1611
    %2243 = vmatpush1.bf16.msra.mxu0 %v1610
    %2244 = vmatprep.subr.bf16.mxu0 %v1618
    %2245 = vmatpush1.bf16.msra.mxu0 %v1617
    %2246 = vmatprep.subr.bf16.mxu0 %v1625
    %2247 = vmatpush1.bf16.msra.mxu0 %v1624
    %2248 = vmatprep.subr.bf16.mxu0 %v1632
    %2249 = vmatpush1.bf16.msra.mxu0 %v1631
    %2250 = vmatprep.subr.bf16.mxu0 %v1639
    %2251 = vmatpush1.bf16.msra.mxu0 %v1638
    %2252 = vmatprep.mubr.bf16.mxu0 %v1302
    %2253 = vmatmul.mubr.bf16.gmra.mrb[0].mxu0 %v1301
    %v2254 = vpop.f32.mrb[0].mxu0
    %v2255 = vadd.f32 %v2212, %v2254
    %v2256 = vpop.f32.mrb[0].mxu0
    %v2257 = vadd.f32 %v2214, %v2256
    %v2258 = vpop.f32.mrb[0].mxu0
    %v2259 = vadd.f32 %v2216, %v2258
    %v2260 = vpop.f32.mrb[0].mxu0
    %v2261 = vadd.f32 %v2218, %v2260
    %2262 = vdwg.mxu0
    %2263 = vmatprep.subr.bf16.mxu0 %v1646
    %2264 = vmatpush1.bf16.msra.mxu0 %v1645
    %2265 = vmatprep.subr.bf16.mxu0 %v1653
    %2266 = vmatpush1.bf16.msra.mxu0 %v1652
    %2267 = vmatprep.subr.bf16.mxu0 %v1660
    %2268 = vmatpush1.bf16.msra.mxu0 %v1659
    %2269 = vmatprep.subr.bf16.mxu0 %v1667
    %2270 = vmatpush1.bf16.msra.mxu0 %v1666
    %2271 = vmatprep.subr.bf16.mxu0 %v1674
    %2272 = vmatpush1.bf16.msra.mxu0 %v1673
    %2273 = vmatprep.subr.bf16.mxu0 %v1681
    %2274 = vmatpush1.bf16.msra.mxu0 %v1680
    %2275 = vmatprep.subr.bf16.mxu0 %v1688
    %2276 = vmatpush1.bf16.msra.mxu0 %v1687
    %2277 = vmatprep.subr.bf16.mxu0 %v1695
    %2278 = vmatpush1.bf16.msra.mxu0 %v1694
    %2279 = vmatprep.subr.bf16.mxu0 %v1702
    %2280 = vmatpush1.bf16.msra.mxu0 %v1701
    %2281 = vmatprep.subr.bf16.mxu0 %v1709
    %2282 = vmatpush1.bf16.msra.mxu0 %v1708
    %2283 = vmatprep.subr.bf16.mxu0 %v1716
    %2284 = vmatpush1.bf16.msra.mxu0 %v1715
    %2285 = vmatprep.subr.bf16.mxu0 %v1723
    %2286 = vmatpush1.bf16.msra.mxu0 %v1722
    %2287 = vmatprep.subr.bf16.mxu0 %v1730
    %2288 = vmatpush1.bf16.msra.mxu0 %v1729
    %2289 = vmatprep.subr.bf16.mxu0 %v1737
    %2290 = vmatpush1.bf16.msra.mxu0 %v1736
    %2291 = vmatprep.subr.bf16.mxu0 %v1744
    %2292 = vmatpush1.bf16.msra.mxu0 %v1743
    %2293 = vmatprep.subr.bf16.mxu0 %v1751
    %2294 = vmatpush1.bf16.msra.mxu0 %v1750
    %2295 = vmatprep.mubr.bf16.mxu0 %v1304
    %2296 = vmatmul.mubr.bf16.gmra.mrb[0].mxu0 %v1303
    %v2297 = vpop.f32.mrb[0].mxu0
    %v2298 = vadd.f32 %v2255, %v2297
    %v2299 = vpop.f32.mrb[0].mxu0
    %v2300 = vadd.f32 %v2257, %v2299
    %v2301 = vpop.f32.mrb[0].mxu0
    %v2302 = vadd.f32 %v2259, %v2301
    %v2303 = vpop.f32.mrb[0].mxu0
    %v2304 = vadd.f32 %v2261, %v2303
    %2305 = vdwg.mxu0
    %2306 = vmatprep.subr.bf16.mxu0 0
    %2307 = vmatpush1.bf16.msra.mxu0 %v1311
    %2308 = vmatprep.subr.bf16.mxu0 0
    %2309 = vmatpush1.bf16.msra.mxu0 %v1318
    %2310 = vmatprep.subr.bf16.mxu0 0
    %2311 = vmatpush1.bf16.msra.mxu0 %v1325
    %2312 = vmatprep.subr.bf16.mxu0 0
    %2313 = vmatpush1.bf16.msra.mxu0 %v1332
    %2314 = vmatprep.subr.bf16.mxu0 0
    %2315 = vmatpush1.bf16.msra.mxu0 %v1339
    %2316 = vmatprep.subr.bf16.mxu0 0
    %2317 = vmatpush1.bf16.msra.mxu0 %v1346
    %2318 = vmatprep.subr.bf16.mxu0 0
    %2319 = vmatpush1.bf16.msra.mxu0 %v1353
    %2320 = vmatprep.subr.bf16.mxu0 0
    %2321 = vmatpush1.bf16.msra.mxu0 %v1360
    %2322 = vmatprep.subr.bf16.mxu0 0
    %2323 = vmatpush1.bf16.msra.mxu0 %v1367
    %2324 = vmatprep.subr.bf16.mxu0 0
    %2325 = vmatpush1.bf16.msra.mxu0 %v1374
    %2326 = vmatprep.subr.bf16.mxu0 0
    %2327 = vmatpush1.bf16.msra.mxu0 %v1381
    %2328 = vmatprep.subr.bf16.mxu0 0
    %2329 = vmatpush1.bf16.msra.mxu0 %v1388
    %2330 = vmatprep.subr.bf16.mxu0 0
    %2331 = vmatpush1.bf16.msra.mxu0 %v1395
    %2332 = vmatprep.subr.bf16.mxu0 0
    %2333 = vmatpush1.bf16.msra.mxu0 %v1402
    %2334 = vmatprep.subr.bf16.mxu0 0
    %2335 = vmatpush1.bf16.msra.mxu0 %v1409
    %2336 = vmatprep.subr.bf16.mxu0 0
    %2337 = vmatpush1.bf16.msra.mxu0 %v1416
    %2338 = vmatprep.mubr.bf16.mxu0 %v1298
    %2339 = vmatmul.mubr.bf16.gmra.mrb[0].mxu0 %v1297
    %v2340 = vpop.f32.mrb[0].mxu0
    %v2341 = vadd.f32 %v1782, %v2340
    %v2342 = vpop.f32.mrb[0].mxu0
    %v2343 = vpop.f32.mrb[0].mxu0
    %v2344 = vadd.f32 %v1782, %v2343
    %v2345 = vpop.f32.mrb[0].mxu0
    %2346 = vdwg.mxu0
    %2347 = vmatprep.subr.bf16.mxu0 0
    %2348 = vmatpush1.bf16.msra.mxu0 %v1423
    %2349 = vmatprep.subr.bf16.mxu0 0
    %2350 = vmatpush1.bf16.msra.mxu0 %v1430
    %2351 = vmatprep.subr.bf16.mxu0 0
    %2352 = vmatpush1.bf16.msra.mxu0 %v1437
    %2353 = vmatprep.subr.bf16.mxu0 0
    %2354 = vmatpush1.bf16.msra.mxu0 %v1444
    %2355 = vmatprep.subr.bf16.mxu0 0
    %2356 = vmatpush1.bf16.msra.mxu0 %v1451
    %2357 = vmatprep.subr.bf16.mxu0 0
    %2358 = vmatpush1.bf16.msra.mxu0 %v1458
    %2359 = vmatprep.subr.bf16.mxu0 0
    %2360 = vmatpush1.bf16.msra.mxu0 %v1465
    %2361 = vmatprep.subr.bf16.mxu0 0
    %2362 = vmatpush1.bf16.msra.mxu0 %v1472
    %2363 = vmatprep.subr.bf16.mxu0 0
    %2364 = vmatpush1.bf16.msra.mxu0 %v1479
    %2365 = vmatprep.subr.bf16.mxu0 0
    %2366 = vmatpush1.bf16.msra.mxu0 %v1486
    %2367 = vmatprep.subr.bf16.mxu0 0
    %2368 = vmatpush1.bf16.msra.mxu0 %v1493
    %2369 = vmatprep.subr.bf16.mxu0 0
    %2370 = vmatpush1.bf16.msra.mxu0 %v1500
    %2371 = vmatprep.subr.bf16.mxu0 0
    %2372 = vmatpush1.bf16.msra.mxu0 %v1507
    %2373 = vmatprep.subr.bf16.mxu0 0
    %2374 = vmatpush1.bf16.msra.mxu0 %v1514
    %2375 = vmatprep.subr.bf16.mxu0 0
    %2376 = vmatpush1.bf16.msra.mxu0 %v1521
    %2377 = vmatprep.subr.bf16.mxu0 0
    %2378 = vmatpush1.bf16.msra.mxu0 %v1528
    %2379 = vmatprep.mubr.bf16.mxu0 %v1300
    %2380 = vmatmul.mubr.bf16.gmra.mrb[0].mxu0 %v1299
    %v2381 = vpop.f32.mrb[0].mxu0
    %v2382 = vadd.f32 %v2341, %v2381
    %v2383 = vpop.f32.mrb[0].mxu0
    %v2384 = vpop.f32.mrb[0].mxu0
    %v2385 = vadd.f32 %v2344, %v2384
    %v2386 = vpop.f32.mrb[0].mxu0
    %2387 = vdwg.mxu0
    %2388 = vmatprep.subr.bf16.mxu0 0
    %2389 = vmatpush1.bf16.msra.mxu0 %v1535
    %2390 = vmatprep.subr.bf16.mxu0 0
    %2391 = vmatpush1.bf16.msra.mxu0 %v1542
    %2392 = vmatprep.subr.bf16.mxu0 0
    %2393 = vmatpush1.bf16.msra.mxu0 %v1549
    %2394 = vmatprep.subr.bf16.mxu0 0
    %2395 = vmatpush1.bf16.msra.mxu0 %v1556
    %2396 = vmatprep.subr.bf16.mxu0 0
    %2397 = vmatpush1.bf16.msra.mxu0 %v1563
    %2398 = vmatprep.subr.bf16.mxu0 0
    %2399 = vmatpush1.bf16.msra.mxu0 %v1570
    %2400 = vmatprep.subr.bf16.mxu0 0
    %2401 = vmatpush1.bf16.msra.mxu0 %v1577
    %2402 = vmatprep.subr.bf16.mxu0 0
    %2403 = vmatpush1.bf16.msra.mxu0 %v1584
    %2404 = vmatprep.subr.bf16.mxu0 0
    %2405 = vmatpush1.bf16.msra.mxu0 %v1591
    %2406 = vmatprep.subr.bf16.mxu0 0
    %2407 = vmatpush1.bf16.msra.mxu0 %v1598
    %2408 = vmatprep.subr.bf16.mxu0 0
    %2409 = vmatpush1.bf16.msra.mxu0 %v1605
    %2410 = vmatprep.subr.bf16.mxu0 0
    %2411 = vmatpush1.bf16.msra.mxu0 %v1612
    %2412 = vmatprep.subr.bf16.mxu0 0
    %2413 = vmatpush1.bf16.msra.mxu0 %v1619
    %2414 = vmatprep.subr.bf16.mxu0 0
    %2415 = vmatpush1.bf16.msra.mxu0 %v1626
    %2416 = vmatprep.subr.bf16.mxu0 0
    %2417 = vmatpush1.bf16.msra.mxu0 %v1633
    %2418 = vmatprep.subr.bf16.mxu0 0
    %2419 = vmatpush1.bf16.msra.mxu0 %v1640
    %2420 = vmatprep.mubr.bf16.mxu0 %v1302
    %2421 = vmatmul.mubr.bf16.gmra.mrb[0].mxu0 %v1301
    %v2422 = vpop.f32.mrb[0].mxu0
    %v2423 = vadd.f32 %v2382, %v2422
    %v2424 = vpop.f32.mrb[0].mxu0
    %v2425 = vpop.f32.mrb[0].mxu0
    %v2426 = vadd.f32 %v2385, %v2425
    %v2427 = vpop.f32.mrb[0].mxu0
    %2428 = vdwg.mxu0
    %2429 = vmatprep.subr.bf16.mxu0 0
    %2430 = vmatpush1.bf16.msra.mxu0 %v1647
    %2431 = vmatprep.subr.bf16.mxu0 0
    %2432 = vmatpush1.bf16.msra.mxu0 %v1654
    %2433 = vmatprep.subr.bf16.mxu0 0
    %2434 = vmatpush1.bf16.msra.mxu0 %v1661
    %2435 = vmatprep.subr.bf16.mxu0 0
    %2436 = vmatpush1.bf16.msra.mxu0 %v1668
    %2437 = vmatprep.subr.bf16.mxu0 0
    %2438 = vmatpush1.bf16.msra.mxu0 %v1675
    %2439 = vmatprep.subr.bf16.mxu0 0
    %2440 = vmatpush1.bf16.msra.mxu0 %v1682
    %2441 = vmatprep.subr.bf16.mxu0 0
    %2442 = vmatpush1.bf16.msra.mxu0 %v1689
    %2443 = vmatprep.subr.bf16.mxu0 0
    %2444 = vmatpush1.bf16.msra.mxu0 %v1696
    %2445 = vmatprep.subr.bf16.mxu0 0
    %2446 = vmatpush1.bf16.msra.mxu0 %v1703
    %2447 = vmatprep.subr.bf16.mxu0 0
    %2448 = vmatpush1.bf16.msra.mxu0 %v1710
    %2449 = vmatprep.subr.bf16.mxu0 0
    %2450 = vmatpush1.bf16.msra.mxu0 %v1717
    %2451 = vmatprep.subr.bf16.mxu0 0
    %2452 = vmatpush1.bf16.msra.mxu0 %v1724
    %2453 = vmatprep.subr.bf16.mxu0 0
    %2454 = vmatpush1.bf16.msra.mxu0 %v1731
    %2455 = vmatprep.subr.bf16.mxu0 0
    %2456 = vmatpush1.bf16.msra.mxu0 %v1738
    %2457 = vmatprep.subr.bf16.mxu0 0
    %2458 = vmatpush1.bf16.msra.mxu0 %v1745
    %2459 = vmatprep.subr.bf16.mxu0 0
    %2460 = vmatpush1.bf16.msra.mxu0 %v1752
    %2461 = vmatprep.mubr.bf16.mxu0 %v1304
    %2462 = vmatmul.mubr.bf16.gmra.mrb[0].mxu0 %v1303
    %v2463 = vpop.f32.mrb[0].mxu0
    %v2464 = vadd.f32 %v2423, %v2463
    %v2465 = vpop.f32.mrb[0].mxu0
    %v2466 = vpop.f32.mrb[0].mxu0
    %v2467 = vadd.f32 %v2426, %v2466
    %v2468 = vpop.f32.mrb[0].mxu0
    %2469 = vdwg.mxu0
    %v2470 = vtanh.pop %v1954
    %v2471 = vtanh.pop %v1956
    %v2472 = vtanh.pop %v2126
    %v2473 = vtanh.pop %v2128
    %v2474 = vtanh.pop %v2298
    %v2475 = vtanh.pop %v2300
    %v2476 = vtanh.pop %v2464
    %v2477 = vtanh.pop %v1958
    %v2478 = vtanh.pop %v1960
    %v2479 = vtanh.pop %v2130
    %v2480 = vtanh.pop %v2132
    %v2481 = vtanh.pop %v2302
    %v2482 = vtanh.pop %v2304
    %v2483 = vtanh.pop %v2467
    %v2484 = vpack.c.bf16 %v2477, %v2470
    %v2485 = vpack.c.bf16 %v2478, %v2471
    %v2486 = vpack.c.bf16 %v2479, %v2472
    %v2487 = vpack.c.bf16 %v2480, %v2473
    %v2488 = vpack.c.bf16 %v2481, %v2474
    %v2489 = vpack.c.bf16 %v2482, %v2475
    %v2490 = vpack.c.bf16 %v2483, %v2476
    %v2498 = vunpack.c.l.b16 %v2484
    %v2499 = vunpack.c.l.b16 %v2485
    %v2500 = vunpack.c.l.b16 %v2486
    %v2501 = vunpack.c.l.b16 %v2487
    %v2502 = vunpack.c.l.b16 %v2488
    %v2503 = vunpack.c.l.b16 %v2489
    %v2504 = vunpack.c.l.b16 %v2490
    %v2505 = vunpack.c.h.b16 %v2484
    %v2506 = vunpack.c.h.b16 %v2485
    %v2507 = vunpack.c.h.b16 %v2486
    %v2508 = vunpack.c.h.b16 %v2487
    %v2509 = vunpack.c.h.b16 %v2488
    %v2510 = vunpack.c.h.b16 %v2489
    %v2511 = vunpack.c.h.b16 %v2490
    %v2512 = vpack.c.b16 %v2499, %v2498
    %v2513 = vpack.c.b16 %v2501, %v2500
    %v2514 = vpack.c.b16 %v2503, %v2502
    %v2515 = vpack.c.b16 %v2504, %v2504
    %v2516 = vpack.c.b16 %v2506, %v2505
    %v2517 = vpack.c.b16 %v2508, %v2507
    %v2518 = vpack.c.b16 %v2510, %v2509
    %v2519 = vpack.c.b16 %v2511, %v2511
    %2528 = vst [vmem:[#allocation17] sm:$0xff] %v2512
    %2529 = vst [vmem:[#allocation17 + $0x8] sm:$0xff] %v2513
    %2530 = vst [vmem:[#allocation17 + $0x10] sm:$0xff] %v2514
    %2531 = vst [vmem:[#allocation17 + $0x18] sm:$0xf] %v2515
    %2532 = vst [vmem:[#allocation17 + $0x1c] sm:$0xff] %v2516
    %2533 = vst [vmem:[#allocation17 + $0x24] sm:$0xff] %v2517
    %2534 = vst [vmem:[#allocation17 + $0x2c] sm:$0xff] %v2518
    %2535 = vst [vmem:[#allocation17 + $0x34] sm:$0xf] %v2519
    // Predicated region
    $region66: #{tpu_custom_call.1} parent=1 // pred_check
      _
    $region67: #{tpu_custom_call.1} parent=1 // pred_check_branch
      %2537 = sbr.rel (0) target = $region69
    $region68: #{tpu_custom_call.1} parent=1 // pred_region
      %s2539 = ssub.s32 896, 896
      %2540 = vsyncadd [#allocation8], %s2539
      %s2541 = sshll.u32 [#allocation17], 4
      %s2542 = int_to_ptr.vmem [resolvable:$true] %s2541
      %2547 = dma.vmem_to_hbm [thread:$0]  %s2542, 896, %s9, [#allocation8], 448, 448, 28
    $region69: #{tpu_custom_call.1} parent=1 // pred_fallthru
      _
    // Predicated region
    $region70: #{tpu_custom_call.1} parent=1 // pred_check
      _
    $region71: #{tpu_custom_call.1} parent=1 // pred_check_branch
      %2549 = sbr.rel (0) target = $region73
    $region72: #{tpu_custom_call.1} parent=1 // pred_region
      %2550 = dma.done [#allocation8], 896
    $region73: #{tpu_custom_call.1} parent=1 // pred_fallthru
      _
    %2551 = vsyncpa [#allocation7], 1
    %2552 = vsyncpa [#allocation10], 1
    %2553 = vsyncpa [#allocation13], 1
    %2554 = vsyncpa [#allocation16], 1
    %2555 = vsyncpa [#allocation8], 1
  %2556 = vsyncmov [#allocation5]
  %s2557 = vpop.sfrf %2556
  %p2558 = scmp.eq.s32.totalorder %s2557, 0
  %p2559 = pneg %p2558
  %2561 = shalt.err (%p2559)
  %s2562 = scalar_lea.sflag [#allocation5], 1
  %2563 = vsyncmov %s2562
  %s2564 = vpop.sfrf %2563
  %p2565 = scmp.eq.s32.totalorder %s2564, 0
  %p2566 = pneg %p2565
  %2568 = shalt.err (%p2566)
  %s2569 = scalar_lea.sflag [#allocation5], 2
  %2570 = vsyncmov %s2569
  %s2571 = vpop.sfrf %2570
  %p2572 = scmp.eq.s32.totalorder %s2571, 0
  %p2573 = pneg %p2572
  %2575 = shalt.err (%p2573)

</llo_original>
